<compile_context>
chip_gen: v6e
topology: v6e:2x2x1
jax: 0.10.0
libtpu: 0.0.40
codegen_flags: <defaults>
</compile_context>

<pallas_src>
import functools
import math

import jax
import jax.numpy as jnp
import numpy as np
from jax.experimental import pallas as pl
from jax.experimental.pallas import tpu as pltpu

_LN_EPS = 1e-5  # PyTorch nn.LayerNorm default


# ---------------------------------------------------------------------------
# Pallas kernels
# ---------------------------------------------------------------------------

def _attn_ln_kernel(q_ref, kv_ref, bias_ref,
                    wq_ref, bq_ref, wk_ref, bk_ref, wv_ref, bv_ref,
                    wo_ref, bo_ref, g_ref, beta_ref, o_ref,
                    *, n_heads, matmul_dtype, approx_recip):
    """Fused MHA + residual + LayerNorm for one block of TB batch elements.

    q_ref   : (TB, Sq, D) f32  queries (also the residual stream)
    kv_ref  : (TB, Sk, D) f32  keys/values source
    bias_ref: (TB, Sq, Sk) f32 additive mask bias (already divided by scale)
    w*_ref  : (D, D) weights pre-transposed to (in, out); wq/bq pre-scaled by
              1/sqrt(dim_per_head); weights pre-cast to `matmul_dtype`.
    b*_ref  : (1, D) f32 biases;  g/beta : (1, D) f32 LayerNorm params.
    """
    TB, Sq, D = q_ref.shape
    Sk = kv_ref.shape[1]
    dh = D // n_heads
    md = matmul_dtype
    f32 = jnp.float32

    x_res = q_ref[...].reshape(TB * Sq, D)              # f32 residual stream
    xq = x_res.astype(md)
    xkv = kv_ref[...].reshape(TB * Sk, D).astype(md)

    # Projections on a flattened (TB*S, D) slab -> large MXU M dimension,
    # weights already (in, out): no in-kernel transpose.
    q = jnp.dot(xq, wq_ref[...], preferred_element_type=f32) + bq_ref[...]
    k = jnp.dot(xkv, wk_ref[...], preferred_element_type=f32) + bk_ref[...]
    v = jnp.dot(xkv, wv_ref[...], preferred_element_type=f32) + bv_ref[...]

    q3 = q.reshape(TB, Sq, D).astype(md)
    k3 = k.reshape(TB, Sk, D).astype(md)
    v3 = v.reshape(TB, Sk, D).astype(md)
    bias = bias_ref[...]                                # (TB, Sq, Sk) f32
    wo = wo_ref[...]                                    # (D, D) matmul dtype

    # Per-head attention; the head re-merge is folded into the output projection
    # (accumulate ctx_h @ wo[h*dh:(h+1)*dh, :]) -- no concatenate.
    out_acc = jnp.zeros((TB * Sq, D), f32)
    for h in range(n_heads):                            # static unroll, small H
        sl = slice(h * dh, (h + 1) * dh)
        s = jnp.einsum('bqd,bkd->bqk', q3[:, :, sl], k3[:, :, sl],
                       preferred_element_type=f32)
        s = s + bias                                    # masking: one f32 add
        m = jnp.max(s, axis=-1, keepdims=True)
        e = jnp.exp(s - m)                              # softmax kept in f32
        denom = jnp.sum(e, axis=-1, keepdims=True)
        if approx_recip:
            inv = pl.reciprocal(denom, approx=True)     # EUP slot, nearly free
        else:
            inv = 1.0 / denom                           # exact (f32 check mode)
        ctx = jnp.einsum('bqk,bkd->bqd', e.astype(md), v3[:, :, sl],
                         preferred_element_type=f32) * inv
        out_acc = out_acc + jnp.dot(ctx.reshape(TB * Sq, dh).astype(md),
                                    wo[sl, :], preferred_element_type=f32)

    y = out_acc + bo_ref[...] + x_res                   # out_lin bias + residual
    # LayerNorm over the feature dim (f32).
    mu = jnp.mean(y, axis=-1, keepdims=True)
    var = jnp.mean(jnp.square(y - mu), axis=-1, keepdims=True)
    y = (y - mu) * jax.lax.rsqrt(var + _LN_EPS)
    y = y * g_ref[...] + beta_ref[...]
    o_ref[...] = y.reshape(TB, Sq, D).astype(o_ref.dtype)


def _ffn_ln_kernel(x_ref, w1_ref, b1_ref, w2_ref, b2_ref, g_ref, beta_ref,
                   o_ref, *, matmul_dtype):
    """Fused FFN (lin1 -> ReLU -> lin2) + residual + LayerNorm."""
    TB, S, D = x_ref.shape
    md = matmul_dtype
    f32 = jnp.float32

    x_res = x_ref[...].reshape(TB * S, D)
    h = jnp.dot(x_res.astype(md), w1_ref[...], preferred_element_type=f32)
    h = jnp.maximum(h + b1_ref[...], 0.0)               # bias + ReLU in f32
    y = jnp.dot(h.astype(md), w2_ref[...], preferred_element_type=f32)
    y = y + b2_ref[...] + x_res                         # bias + residual
    mu = jnp.mean(y, axis=-1, keepdims=True)
    var = jnp.mean(jnp.square(y - mu), axis=-1, keepdims=True)
    y = (y - mu) * jax.lax.rsqrt(var + _LN_EPS)
    y = y * g_ref[...] + beta_ref[...]
    o_ref[...] = y.reshape(TB, S, D).astype(o_ref.dtype)


# ---------------------------------------------------------------------------
# pallas_call wrappers
# ---------------------------------------------------------------------------

def _block_batch(B, S, target_rows=256):
    """Largest divisor of B so that TB*S is roughly >= target MXU rows."""
    tb = max(1, min(B, max(1, target_rows // max(S, 1))))
    while B % tb:
        tb -= 1
    return tb


def _rep_spec(shape):
    """Grid-invariant (broadcast) block: same block every grid step."""
    nd = len(shape)
    return pl.BlockSpec(shape, lambda b: (0,) * nd)


def _compiler_params(block_bytes):
    # Explicit VMEM budget (v7x only has 64 MiB physical): double-buffered blocks
    # plus headroom for compiler temporaries, floored at the 32 MiB default.
    vmem = int(min(max(4 * block_bytes, 32 * 1024 * 1024), 100 * 1024 * 1024))
    return pltpu.CompilerParams(dimension_semantics=("parallel",),
                                vmem_limit_bytes=vmem)


def _attention_block(x, kv, bias, attn_p, ln_p, n_heads, matmul_dtype,
                     approx_recip):
    B, Sq, D = x.shape
    Sk = kv.shape[1]
    tb = _block_batch(B, Sq)
    wq, bq, wk, bk, wv, bv, wo, bo = attn_p
    g, beta = ln_p
    g = g.reshape(1, D).astype(jnp.float32)
    beta = beta.reshape(1, D).astype(jnp.float32)

    kernel = functools.partial(_attn_ln_kernel, n_heads=n_heads,
                               matmul_dtype=matmul_dtype,
                               approx_recip=approx_recip)

    wb = jnp.dtype(matmul_dtype).itemsize
    block_bytes = (2 * tb * Sq * D + tb * Sk * D + tb * Sq * Sk + 6 * D) * 4 \
        + 4 * D * D * wb
    flops = 2 * B * D * D * (2 * Sq + 2 * Sk) + 4 * B * Sq * Sk * D
    transcendentals = B * n_heads * Sq * (Sk + 1) + B * Sq
    bytes_accessed = 4 * (x.size + kv.size + bias.size + B * Sq * D + 6 * D) \
        + 4 * D * D * wb
    cost = pl.CostEstimate(flops=flops, transcendentals=transcendentals,
                           bytes_accessed=bytes_accessed)

    return pl.pallas_call(
        kernel,
        out_shape=jax.ShapeDtypeStruct((B, Sq, D), jnp.float32),
        grid=(B // tb,),
        in_specs=[
            pl.BlockSpec((tb, Sq, D), lambda b: (b, 0, 0)),
            pl.BlockSpec((tb, Sk, D), lambda b: (b, 0, 0)),
            pl.BlockSpec((tb, Sq, Sk), lambda b: (b, 0, 0)),
            _rep_spec((D, D)), _rep_spec((1, D)),       # q_lin
            _rep_spec((D, D)), _rep_spec((1, D)),       # k_lin
            _rep_spec((D, D)), _rep_spec((1, D)),       # v_lin
            _rep_spec((D, D)), _rep_spec((1, D)),       # out_lin
            _rep_spec((1, D)), _rep_spec((1, D)),       # LayerNorm gamma / beta
        ],
        out_specs=pl.BlockSpec((tb, Sq, D), lambda b: (b, 0, 0)),
        compiler_params=_compiler_params(block_bytes),
        cost_estimate=cost,
    )(x, kv, bias, wq, bq, wk, bk, wv, bv, wo, bo, g, beta)


def _ffn_block(x, ffn_p, ln_p, matmul_dtype):
    B, S, D = x.shape
    w1, b1, w2, b2 = ffn_p                              # already (in, out)
    F = w1.shape[1]
    tb = _block_batch(B, S)
    g, beta = ln_p
    g = g.reshape(1, D).astype(jnp.float32)
    beta = beta.reshape(1, D).astype(jnp.float32)

    kernel = functools.partial(_ffn_ln_kernel, matmul_dtype=matmul_dtype)

    wb = jnp.dtype(matmul_dtype).itemsize
    block_bytes = (2 * tb * S * D + F + 3 * D) * 4 + 2 * D * F * wb
    cost = pl.CostEstimate(
        flops=4 * B * S * D * F, transcendentals=B * S,
        bytes_accessed=4 * (2 * x.size + F + 3 * D) + 2 * D * F * wb)

    return pl.pallas_call(
        kernel,
        out_shape=jax.ShapeDtypeStruct((B, S, D), jnp.float32),
        grid=(B // tb,),
        in_specs=[
            pl.BlockSpec((tb, S, D), lambda b: (b, 0, 0)),
            _rep_spec((D, F)), _rep_spec((1, F)),       # lin1
            _rep_spec((F, D)), _rep_spec((1, D)),       # lin2
            _rep_spec((1, D)), _rep_spec((1, D)),       # LayerNorm gamma / beta
        ],
        out_specs=pl.BlockSpec((tb, S, D), lambda b: (b, 0, 0)),
        compiler_params=_compiler_params(block_bytes),
        cost_estimate=cost,
    )(x, w1, b1, w2, b2, g, beta)


# ---------------------------------------------------------------------------
# Parameter preparation (one-time XLA transposes / scaling / dtype casts)
# ---------------------------------------------------------------------------

def _prep_attn_params(p, scale, matmul_dtype):
    """PyTorch-layout (out, in) weights -> (in, out); fold 1/scale into Q."""
    wq, bq, wk, bk, wv, bv, wo, bo = p
    D = wq.shape[0]
    wd = matmul_dtype
    f32 = jnp.float32
    return ((wq.T / scale).astype(wd), (bq / scale).reshape(1, D).astype(f32),
            wk.T.astype(wd), bk.reshape(1, D).astype(f32),
            wv.T.astype(wd), bv.reshape(1, D).astype(f32),
            wo.T.astype(wd), bo.reshape(1, D).astype(f32))


def _prep_ffn_params(p, matmul_dtype):
    w1, b1, w2, b2 = p
    F, D = w1.shape
    wd = matmul_dtype
    f32 = jnp.float32
    return (w1.T.astype(wd), b1.reshape(1, F).astype(f32),
            w2.T.astype(wd), b2.reshape(1, D).astype(f32))


# ---------------------------------------------------------------------------
# Full TransformerDecoder forward (Pallas)
# ---------------------------------------------------------------------------

@functools.partial(jax.jit,
                   static_argnames=("n_heads", "embeddings_scale", "matmul_dtype"))
def decoder_forward(tokens, encoder_output, encoder_mask, embedding,
                    position_codes, layers, *, n_heads,
                    embeddings_scale=True, matmul_dtype=jnp.bfloat16):
    B, S = tokens.shape
    D = embedding.shape[1]
    Se = encoder_output.shape[1]
    scale = math.sqrt(D // n_heads)

    # Token + positional embeddings.
    # TODO(synk): the vocab gather stays in XLA; a PrefetchScalarGridSpec row-gather
    # kernel could fold it into the first layer.
    x = jnp.take(embedding, tokens, axis=0).astype(jnp.float32)
    if embeddings_scale:
        x = x * jnp.float32(math.sqrt(D))
    x = x + position_codes[:S][None, :, :].astype(jnp.float32)

    # Additive mask biases, built once (reference: masked_fill(-1e20) then /scale,
    # so masked logits land at -1e20/scale; softmax output is identical for any
    # row with at least one unmasked key — always true here thanks to the causal
    # diagonal / non-empty encoder mask).
    neg = jnp.float32(-1e20 / scale)
    causal = jnp.tril(jnp.ones((S, S), jnp.float32))
    self_bias = jnp.broadcast_to(
        jnp.where(causal == 0, neg, jnp.float32(0.0))[None], (B, S, S))
    enc_bias = jnp.broadcast_to(
        jnp.where(encoder_mask[:, None, :] == 0, neg, jnp.float32(0.0)),
        (B, S, Se))

    enc_out = encoder_output.astype(jnp.float32)
    approx = (matmul_dtype != jnp.float32)      # EUP approx reciprocal in perf mode

    for lp in layers:
        sa = _prep_attn_params(lp["self_attn"], scale, matmul_dtype)
        x = _attention_block(x, x, self_bias, sa, lp["norm1"],
                             n_heads, matmul_dtype, approx)
        ea = _prep_attn_params(lp["enc_attn"], scale, matmul_dtype)
        x = _attention_block(x, enc_out, enc_bias, ea, lp["norm2"],
                             n_heads, matmul_dtype, approx)
        fp = _prep_ffn_params(lp["ffn"], matmul_dtype)
        x = _ffn_block(x, fp, lp["norm3"], matmul_dtype)
    return x


# ---------------------------------------------------------------------------
# Pure-JAX reference mirroring the PyTorch module exactly
# ---------------------------------------------------------------------------

def _layer_norm_ref(x, g, b):
    mu = x.mean(-1, keepdims=True)
    var = ((x - mu) ** 2).mean(-1, keepdims=True)
    return (x - mu) / jnp.sqrt(var + _LN_EPS) * g + b


def _mha_ref(query, key, value, mask, p, n_heads):
    wq, bq, wk, bk, wv, bv, wo, bo = p
    B, Sq, D = query.shape
    dh = D // n_heads
    scale = math.sqrt(dh)

    def prep(t):
        return t.reshape(B, -1, n_heads, dh).transpose(0, 2, 1, 3)

    q = prep(query @ wq.T + bq)
    k = prep(key @ wk.T + bk)
    v = prep(value @ wv.T + bv)
    dot = jnp.einsum("bhqd,bhkd->bhqk", q, k)
    attn_mask = (mask == 0)[:, None, :, :]
    dot = jnp.where(attn_mask, -1e20, dot)
    w = jax.nn.softmax(dot / scale, axis=-1)
    ctx = jnp.einsum("bhqk,bhkd->bhqd", w, v)
    ctx = ctx.transpose(0, 2, 1, 3).reshape(B, Sq, D)
    return ctx @ wo.T + bo


def decoder_forward_ref(tokens, encoder_output, encoder_mask, embedding,
                        position_codes, layers, n_heads, embeddings_scale=True):
    B, S = tokens.shape
    D = embedding.shape[1]
    x = embedding[tokens]
    if embeddings_scale:
        x = x * math.sqrt(D)
    x = x + position_codes[:S][None]
    causal = jnp.tril(jnp.ones((S, S), jnp.float32))
    self_mask = jnp.broadcast_to(causal[None], (B, S, S))
    enc_mask = encoder_mask[:, None, :]
    for lp in layers:
        res = x
        x = _mha_ref(x, x, x, self_mask, lp["self_attn"], n_heads)
        x = _layer_norm_ref(x + res, *lp["norm1"])
        res = x
        x = _mha_ref(x, encoder_output, encoder_output, enc_mask,
                     lp["enc_attn"], n_heads)
        x = _layer_norm_ref(res + x, *lp["norm2"])
        res = x
        w1, b1, w2, b2 = lp["ffn"]
        x = jnp.maximum(x @ w1.T + b1, 0.0) @ w2.T + b2
        x = _layer_norm_ref(res + x, *lp["norm3"])
    return x


# ---------------------------------------------------------------------------
# Parameter / table construction
# ---------------------------------------------------------------------------

def create_position_codes(n_pos, dim):
    pe = np.array([[pos / np.power(10000.0, 2 * (j // 2) / dim)
                    for j in range(dim)] for pos in range(n_pos)])
    out = np.zeros((n_pos, dim), dtype=np.float32)
    out[:, 0::2] = np.sin(pe[:, 0::2])
    out[:, 1::2] = np.cos(pe[:, 1::2])
    return jnp.asarray(out)


def init_decoder_params(key, n_layers, dim, ffn_dim):
    """PyTorch-layout (out_features, in_features) weights. xavier_normal_ for
    attention, xavier_uniform_ for FFN, default Linear uniform biases.
    LayerNorm params are lightly perturbed so the scale/shift path is exercised."""
    def xavier_normal(k, out_f, in_f):
        std = math.sqrt(2.0 / (out_f + in_f))
        return std * jax.random.normal(k, (out_f, in_f), jnp.float32)

    def xavier_uniform(k, out_f, in_f):
        bound = math.sqrt(6.0 / (out_f + in_f))
        return jax.random.uniform(k, (out_f, in_f), jnp.float32, -bound, bound)

    def linear_bias(k, out_f, in_f):
        bound = 1.0 / math.sqrt(in_f)
        return jax.random.uniform(k, (out_f,), jnp.float32, -bound, bound)

    def attn(k):
        ks = jax.random.split(k, 8)
        return (xavier_normal(ks[0], dim, dim), linear_bias(ks[1], dim, dim),
                xavier_normal(ks[2], dim, dim), linear_bias(ks[3], dim, dim),
                xavier_normal(ks[4], dim, dim), linear_bias(ks[5], dim, dim),
                xavier_normal(ks[6], dim, dim), linear_bias(ks[7], dim, dim))

    def norm(k):
        k1, k2 = jax.random.split(k)
        return (1.0 + 0.05 * jax.random.normal(k1, (dim,), jnp.float32),
                0.05 * jax.random.normal(k2, (dim,), jnp.float32))

    def ffn(k):
        ks = jax.random.split(k, 4)
        return (xavier_uniform(ks[0], ffn_dim, dim), linear_bias(ks[1], ffn_dim, dim),
                xavier_uniform(ks[2], dim, ffn_dim), linear_bias(ks[3], dim, ffn_dim))

    layers = []
    for lk in jax.random.split(key, n_layers):
        ks = jax.random.split(lk, 6)
        layers.append({
            "self_attn": attn(ks[0]), "norm1": norm(ks[1]),
            "enc_attn": attn(ks[2]), "norm2": norm(ks[3]),
            "ffn": ffn(ks[4]), "norm3": norm(ks[5]),
        })
    return layers


# ---------------------------------------------------------------------------
# Self-test
# ---------------------------------------------------------------------------

if __name__ == "__main__":
    B, S, S_ENC = 2, 8, 16           # batch, decoder seq, encoder seq
    D, H, FFN = 128, 4, 256          # hidden (lane-dense), heads, ffn size
    N_LAYERS, VOCAB, N_POS = 2, 64, 32

    root = jax.random.PRNGKey(0)
    k_tok, k_enc, k_emb, k_par = jax.random.split(root, 4)
    tokens = jax.random.randint(k_tok, (B, S), 0, VOCAB)
    encoder_output = jax.random.normal(k_enc, (B, S_ENC, D), jnp.float32)
    # Encoder padding mask: 1 = attend, 0 = masked (mask last 5 keys of elem 1).
    encoder_mask = jnp.ones((B, S_ENC), jnp.int32).at[1, -5:].set(0)
    embedding = 0.1 * jax.random.normal(k_emb, (VOCAB, D), jnp.float32)
    position_codes = create_position_codes(N_POS, D)
    layers = init_decoder_params(k_par, N_LAYERS, D, FFN)

    ref = decoder_forward_ref(tokens, encoder_output, encoder_mask, embedding,
                              position_codes, layers, H)

    # f32 mode: tight correctness check of the fused kernels.
    out_f32 = decoder_forward(tokens, encoder_output, encoder_mask, embedding,
                              position_codes, layers, n_heads=H,
                              matmul_dtype=jnp.float32)
    out_f32 = jax.block_until_ready(out_f32)
    assert out_f32.shape == (B, S, D)
    assert jnp.allclose(out_f32, ref, atol=5e-3, rtol=5e-3), (
        "f32 kernel mismatch vs reference, max abs err = "
        f"{float(jnp.max(jnp.abs(out_f32 - ref))):.3e}")

    # bf16-MXU mode (perf config for v5e/v6e/v7x): matmul operands in bf16,
    # mask/softmax/bias/LayerNorm in f32. Expect ~1e-2-scale deviations on the
    # unit-scale (post-LayerNorm) outputs vs the f32 reference.
    out_bf16 = decoder_forward(tokens, encoder_output, encoder_mask, embedding,
                               position_codes, layers, n_heads=H,
                               matmul_dtype=jnp.bfloat16)
    out_bf16 = jax.block_until_ready(out_bf16)
    bf16_err = float(jnp.max(jnp.abs(out_bf16 - ref)))
    assert bf16_err < 0.25, f"bf16-mode kernel error too large: {bf16_err:.3e}"

    print("KERNEL_OK")
</pallas_src>

<mosaic_0001>
module attributes {stable_mosaic.version = 11 : i64} {
  func.func @_attn_ln_kernel(%arg0: i32, %arg1: memref<2x8x128xf32, #tpu.memory_space<vmem>>, %arg2: memref<2x16x128xf32, #tpu.memory_space<vmem>>, %arg3: memref<2x8x16xf32, #tpu.memory_space<vmem>>, %arg4: memref<128x128xf32, #tpu.memory_space<vmem>>, %arg5: memref<1x128xf32, #tpu.memory_space<vmem>>, %arg6: memref<128x128xf32, #tpu.memory_space<vmem>>, %arg7: memref<1x128xf32, #tpu.memory_space<vmem>>, %arg8: memref<128x128xf32, #tpu.memory_space<vmem>>, %arg9: memref<1x128xf32, #tpu.memory_space<vmem>>, %arg10: memref<128x128xf32, #tpu.memory_space<vmem>>, %arg11: memref<1x128xf32, #tpu.memory_space<vmem>>, %arg12: memref<1x128xf32, #tpu.memory_space<vmem>>, %arg13: memref<1x128xf32, #tpu.memory_space<vmem>>, %arg14: memref<2x8x128xf32, #tpu.memory_space<vmem>>) attributes {dimension_semantics = [#tpu.dimension_semantics<parallel>], iteration_bounds = array<i64: 1>, scalar_prefetch = 0 : i64, scratch_operands = 0 : i64, tpu.core_type = #tpu.core_type<tc>, window_params = [{transform_indices = @transform_0, window_bounds = array<i64: 2, 8, 128>}, {transform_indices = @transform_1, window_bounds = array<i64: 2, 16, 128>}, {transform_indices = @transform_2, window_bounds = array<i64: 2, 8, 16>}, {pipeline_mode = #tpu.pipeline_mode<synchronous>, transform_indices = @transform_3, window_bounds = array<i64: 128, 128>}, {pipeline_mode = #tpu.pipeline_mode<synchronous>, transform_indices = @transform_4, window_bounds = array<i64: 1, 128>}, {pipeline_mode = #tpu.pipeline_mode<synchronous>, transform_indices = @transform_5, window_bounds = array<i64: 128, 128>}, {pipeline_mode = #tpu.pipeline_mode<synchronous>, transform_indices = @transform_6, window_bounds = array<i64: 1, 128>}, {pipeline_mode = #tpu.pipeline_mode<synchronous>, transform_indices = @transform_7, window_bounds = array<i64: 128, 128>}, {pipeline_mode = #tpu.pipeline_mode<synchronous>, transform_indices = @transform_8, window_bounds = array<i64: 1, 128>}, {pipeline_mode = #tpu.pipeline_mode<synchronous>, transform_indices = @transform_9, window_bounds = array<i64: 128, 128>}, {pipeline_mode = #tpu.pipeline_mode<synchronous>, transform_indices = @transform_10, window_bounds = array<i64: 1, 128>}, {pipeline_mode = #tpu.pipeline_mode<synchronous>, transform_indices = @transform_11, window_bounds = array<i64: 1, 128>}, {pipeline_mode = #tpu.pipeline_mode<synchronous>, transform_indices = @transform_12, window_bounds = array<i64: 1, 128>}, {transform_indices = @transform_13, window_bounds = array<i64: 2, 8, 128>}]} {
    %c0 = arith.constant 0 : index
    %c0_0 = arith.constant 0 : index
    %c0_1 = arith.constant 0 : index
    %0 = vector.load %arg1[%c0, %c0_0, %c0_1] : memref<2x8x128xf32, #tpu.memory_space<vmem>>, vector<2x8x128xf32>
    %1 = vector.shape_cast %0 : vector<2x8x128xf32> to vector<16x128xf32>
    %c0_2 = arith.constant 0 : index
    %c0_3 = arith.constant 0 : index
    %c0_4 = arith.constant 0 : index
    %2 = vector.load %arg2[%c0_2, %c0_3, %c0_4] : memref<2x16x128xf32, #tpu.memory_space<vmem>>, vector<2x16x128xf32>
    %3 = vector.shape_cast %2 : vector<2x16x128xf32> to vector<32x128xf32>
    %c0_5 = arith.constant 0 : index
    %c0_6 = arith.constant 0 : index
    %4 = vector.load %arg4[%c0_5, %c0_6] : memref<128x128xf32, #tpu.memory_space<vmem>>, vector<128x128xf32>
    %cst = arith.constant dense<0.000000e+00> : vector<16x128xf32>
    %5 = tpu.matmul %1, %4, %cst {dimension_numbers = #tpu.dot_dimension_numbers<[1], [0], [0], [1], [0, 0, 1, 1], [], []>} : vector<16x128xf32>, vector<128x128xf32>, vector<16x128xf32> -> vector<16x128xf32>
    %c0_7 = arith.constant 0 : index
    %c0_8 = arith.constant 0 : index
    %6 = vector.load %arg5[%c0_7, %c0_8] : memref<1x128xf32, #tpu.memory_space<vmem>>, vector<1x128xf32>
    %7 = vector.broadcast %6 : vector<1x128xf32> to vector<16x128xf32>
    %8 = arith.addf %5, %7 : vector<16x128xf32>
    %c0_9 = arith.constant 0 : index
    %c0_10 = arith.constant 0 : index
    %9 = vector.load %arg6[%c0_9, %c0_10] : memref<128x128xf32, #tpu.memory_space<vmem>>, vector<128x128xf32>
    %cst_11 = arith.constant dense<0.000000e+00> : vector<32x128xf32>
    %10 = tpu.matmul %3, %9, %cst_11 {dimension_numbers = #tpu.dot_dimension_numbers<[1], [0], [0], [1], [0, 0, 1, 1], [], []>} : vector<32x128xf32>, vector<128x128xf32>, vector<32x128xf32> -> vector<32x128xf32>
    %c0_12 = arith.constant 0 : index
    %c0_13 = arith.constant 0 : index
    %11 = vector.load %arg7[%c0_12, %c0_13] : memref<1x128xf32, #tpu.memory_space<vmem>>, vector<1x128xf32>
    %12 = vector.broadcast %11 : vector<1x128xf32> to vector<32x128xf32>
    %13 = arith.addf %10, %12 : vector<32x128xf32>
    %c0_14 = arith.constant 0 : index
    %c0_15 = arith.constant 0 : index
    %14 = vector.load %arg8[%c0_14, %c0_15] : memref<128x128xf32, #tpu.memory_space<vmem>>, vector<128x128xf32>
    %cst_16 = arith.constant dense<0.000000e+00> : vector<32x128xf32>
    %15 = tpu.matmul %3, %14, %cst_16 {dimension_numbers = #tpu.dot_dimension_numbers<[1], [0], [0], [1], [0, 0, 1, 1], [], []>} : vector<32x128xf32>, vector<128x128xf32>, vector<32x128xf32> -> vector<32x128xf32>
    %c0_17 = arith.constant 0 : index
    %c0_18 = arith.constant 0 : index
    %16 = vector.load %arg9[%c0_17, %c0_18] : memref<1x128xf32, #tpu.memory_space<vmem>>, vector<1x128xf32>
    %17 = vector.broadcast %16 : vector<1x128xf32> to vector<32x128xf32>
    %18 = arith.addf %15, %17 : vector<32x128xf32>
    %19 = vector.shape_cast %8 : vector<16x128xf32> to vector<2x8x128xf32>
    %20 = vector.shape_cast %13 : vector<32x128xf32> to vector<2x16x128xf32>
    %21 = vector.shape_cast %18 : vector<32x128xf32> to vector<2x16x128xf32>
    %c0_19 = arith.constant 0 : index
    %c0_20 = arith.constant 0 : index
    %c0_21 = arith.constant 0 : index
    %22 = vector.load %arg3[%c0_19, %c0_20, %c0_21] : memref<2x8x16xf32, #tpu.memory_space<vmem>>, vector<2x8x16xf32>
    %c0_22 = arith.constant 0 : index
    %c0_23 = arith.constant 0 : index
    %23 = vector.load %arg10[%c0_22, %c0_23] : memref<128x128xf32, #tpu.memory_space<vmem>>, vector<128x128xf32>
    %cst_24 = arith.constant 0.000000e+00 : f32
    %24 = vector.broadcast %cst_24 : f32 to vector<16x128xf32>
    %25 = vector.extract_strided_slice %19 {offsets = [0, 0, 0], sizes = [2, 8, 32], strides = [1, 1, 1]} : vector<2x8x128xf32> to vector<2x8x32xf32>
    %26 = vector.extract_strided_slice %20 {offsets = [0, 0, 0], sizes = [2, 16, 32], strides = [1, 1, 1]} : vector<2x16x128xf32> to vector<2x16x32xf32>
    "tpu.trace_start"() <{level = 10 : i32, message = "bqd,bkd->bqk"}> : () -> ()
    %cst_25 = arith.constant dense<0.000000e+00> : vector<2x8x16xf32>
    %27 = tpu.matmul %25, %26, %cst_25 {dimension_numbers = #tpu.dot_dimension_numbers<[2], [2], [1], [1], [0, 0, 0, 1, 1, 1], [0], [0]>} : vector<2x8x32xf32>, vector<2x16x32xf32>, vector<2x8x16xf32> -> vector<2x8x16xf32>
    "tpu.trace_stop"() : () -> ()
    %28 = arith.addf %27, %22 : vector<2x8x16xf32>
    %cst_26 = arith.constant dense<0xFF800000> : vector<2x8xf32>
    %29 = vector.multi_reduction <maximumf>, %28, %cst_26 [2] : vector<2x8x16xf32> to vector<2x8xf32>
    %30 = vector.shape_cast %29 : vector<2x8xf32> to vector<2x8x1xf32>
    %31 = vector.broadcast %30 : vector<2x8x1xf32> to vector<2x8x16xf32>
    %32 = arith.subf %28, %31 : vector<2x8x16xf32>
    %33 = math.exp %32 : vector<2x8x16xf32>
    %cst_27 = arith.constant dense<0.000000e+00> : vector<2x8xf32>
    %34 = vector.multi_reduction <add>, %33, %cst_27 [2] : vector<2x8x16xf32> to vector<2x8xf32>
    %35 = vector.shape_cast %34 : vector<2x8xf32> to vector<2x8x1xf32>
    %cst_28 = arith.constant 1.000000e+00 : f32
    %36 = vector.broadcast %cst_28 : f32 to vector<2x8x1xf32>
    %37 = arith.divf %36, %35 : vector<2x8x1xf32>
    %38 = vector.extract_strided_slice %21 {offsets = [0, 0, 0], sizes = [2, 16, 32], strides = [1, 1, 1]} : vector<2x16x128xf32> to vector<2x16x32xf32>
    "tpu.trace_start"() <{level = 10 : i32, message = "bqk,bkd->bqd"}> : () -> ()
    %cst_29 = arith.constant dense<0.000000e+00> : vector<2x8x32xf32>
    %39 = tpu.matmul %33, %38, %cst_29 {dimension_numbers = #tpu.dot_dimension_numbers<[2], [1], [1], [2], [0, 0, 0, 1, 1, 2], [0], [0]>} : vector<2x8x16xf32>, vector<2x16x32xf32>, vector<2x8x32xf32> -> vector<2x8x32xf32>
    "tpu.trace_stop"() : () -> ()
    %40 = vector.broadcast %37 : vector<2x8x1xf32> to vector<2x8x32xf32>
    %41 = arith.mulf %39, %40 : vector<2x8x32xf32>
    %42 = vector.shape_cast %41 : vector<2x8x32xf32> to vector<16x32xf32>
    %43 = vector.extract_strided_slice %23 {offsets = [0, 0], sizes = [32, 128], strides = [1, 1]} : vector<128x128xf32> to vector<32x128xf32>
    %cst_30 = arith.constant dense<0.000000e+00> : vector<16x128xf32>
    %44 = tpu.matmul %42, %43, %cst_30 {dimension_numbers = #tpu.dot_dimension_numbers<[1], [0], [0], [1], [0, 0, 1, 1], [], []>} : vector<16x32xf32>, vector<32x128xf32>, vector<16x128xf32> -> vector<16x128xf32>
    %45 = arith.addf %24, %44 : vector<16x128xf32>
    %46 = vector.extract_strided_slice %19 {offsets = [0, 0, 32], sizes = [2, 8, 32], strides = [1, 1, 1]} : vector<2x8x128xf32> to vector<2x8x32xf32>
    %47 = vector.extract_strided_slice %20 {offsets = [0, 0, 32], sizes = [2, 16, 32], strides = [1, 1, 1]} : vector<2x16x128xf32> to vector<2x16x32xf32>
    "tpu.trace_start"() <{level = 10 : i32, message = "bqd,bkd->bqk"}> : () -> ()
    %cst_31 = arith.constant dense<0.000000e+00> : vector<2x8x16xf32>
    %48 = tpu.matmul %46, %47, %cst_31 {dimension_numbers = #tpu.dot_dimension_numbers<[2], [2], [1], [1], [0, 0, 0, 1, 1, 1], [0], [0]>} : vector<2x8x32xf32>, vector<2x16x32xf32>, vector<2x8x16xf32> -> vector<2x8x16xf32>
    "tpu.trace_stop"() : () -> ()
    %49 = arith.addf %48, %22 : vector<2x8x16xf32>
    %cst_32 = arith.constant dense<0xFF800000> : vector<2x8xf32>
    %50 = vector.multi_reduction <maximumf>, %49, %cst_32 [2] : vector<2x8x16xf32> to vector<2x8xf32>
    %51 = vector.shape_cast %50 : vector<2x8xf32> to vector<2x8x1xf32>
    %52 = vector.broadcast %51 : vector<2x8x1xf32> to vector<2x8x16xf32>
    %53 = arith.subf %49, %52 : vector<2x8x16xf32>
    %54 = math.exp %53 : vector<2x8x16xf32>
    %cst_33 = arith.constant dense<0.000000e+00> : vector<2x8xf32>
    %55 = vector.multi_reduction <add>, %54, %cst_33 [2] : vector<2x8x16xf32> to vector<2x8xf32>
    %56 = vector.shape_cast %55 : vector<2x8xf32> to vector<2x8x1xf32>
    %cst_34 = arith.constant 1.000000e+00 : f32
    %57 = vector.broadcast %cst_34 : f32 to vector<2x8x1xf32>
    %58 = arith.divf %57, %56 : vector<2x8x1xf32>
    %59 = vector.extract_strided_slice %21 {offsets = [0, 0, 32], sizes = [2, 16, 32], strides = [1, 1, 1]} : vector<2x16x128xf32> to vector<2x16x32xf32>
    "tpu.trace_start"() <{level = 10 : i32, message = "bqk,bkd->bqd"}> : () -> ()
    %cst_35 = arith.constant dense<0.000000e+00> : vector<2x8x32xf32>
    %60 = tpu.matmul %54, %59, %cst_35 {dimension_numbers = #tpu.dot_dimension_numbers<[2], [1], [1], [2], [0, 0, 0, 1, 1, 2], [0], [0]>} : vector<2x8x16xf32>, vector<2x16x32xf32>, vector<2x8x32xf32> -> vector<2x8x32xf32>
    "tpu.trace_stop"() : () -> ()
    %61 = vector.broadcast %58 : vector<2x8x1xf32> to vector<2x8x32xf32>
    %62 = arith.mulf %60, %61 : vector<2x8x32xf32>
    %63 = vector.shape_cast %62 : vector<2x8x32xf32> to vector<16x32xf32>
    %64 = vector.extract_strided_slice %23 {offsets = [32, 0], sizes = [32, 128], strides = [1, 1]} : vector<128x128xf32> to vector<32x128xf32>
    %cst_36 = arith.constant dense<0.000000e+00> : vector<16x128xf32>
    %65 = tpu.matmul %63, %64, %cst_36 {dimension_numbers = #tpu.dot_dimension_numbers<[1], [0], [0], [1], [0, 0, 1, 1], [], []>} : vector<16x32xf32>, vector<32x128xf32>, vector<16x128xf32> -> vector<16x128xf32>
    %66 = arith.addf %45, %65 : vector<16x128xf32>
    %67 = vector.extract_strided_slice %19 {offsets = [0, 0, 64], sizes = [2, 8, 32], strides = [1, 1, 1]} : vector<2x8x128xf32> to vector<2x8x32xf32>
    %68 = vector.extract_strided_slice %20 {offsets = [0, 0, 64], sizes = [2, 16, 32], strides = [1, 1, 1]} : vector<2x16x128xf32> to vector<2x16x32xf32>
    "tpu.trace_start"() <{level = 10 : i32, message = "bqd,bkd->bqk"}> : () -> ()
    %cst_37 = arith.constant dense<0.000000e+00> : vector<2x8x16xf32>
    %69 = tpu.matmul %67, %68, %cst_37 {dimension_numbers = #tpu.dot_dimension_numbers<[2], [2], [1], [1], [0, 0, 0, 1, 1, 1], [0], [0]>} : vector<2x8x32xf32>, vector<2x16x32xf32>, vector<2x8x16xf32> -> vector<2x8x16xf32>
    "tpu.trace_stop"() : () -> ()
    %70 = arith.addf %69, %22 : vector<2x8x16xf32>
    %cst_38 = arith.constant dense<0xFF800000> : vector<2x8xf32>
    %71 = vector.multi_reduction <maximumf>, %70, %cst_38 [2] : vector<2x8x16xf32> to vector<2x8xf32>
    %72 = vector.shape_cast %71 : vector<2x8xf32> to vector<2x8x1xf32>
    %73 = vector.broadcast %72 : vector<2x8x1xf32> to vector<2x8x16xf32>
    %74 = arith.subf %70, %73 : vector<2x8x16xf32>
    %75 = math.exp %74 : vector<2x8x16xf32>
    %cst_39 = arith.constant dense<0.000000e+00> : vector<2x8xf32>
    %76 = vector.multi_reduction <add>, %75, %cst_39 [2] : vector<2x8x16xf32> to vector<2x8xf32>
    %77 = vector.shape_cast %76 : vector<2x8xf32> to vector<2x8x1xf32>
    %cst_40 = arith.constant 1.000000e+00 : f32
    %78 = vector.broadcast %cst_40 : f32 to vector<2x8x1xf32>
    %79 = arith.divf %78, %77 : vector<2x8x1xf32>
    %80 = vector.extract_strided_slice %21 {offsets = [0, 0, 64], sizes = [2, 16, 32], strides = [1, 1, 1]} : vector<2x16x128xf32> to vector<2x16x32xf32>
    "tpu.trace_start"() <{level = 10 : i32, message = "bqk,bkd->bqd"}> : () -> ()
    %cst_41 = arith.constant dense<0.000000e+00> : vector<2x8x32xf32>
    %81 = tpu.matmul %75, %80, %cst_41 {dimension_numbers = #tpu.dot_dimension_numbers<[2], [1], [1], [2], [0, 0, 0, 1, 1, 2], [0], [0]>} : vector<2x8x16xf32>, vector<2x16x32xf32>, vector<2x8x32xf32> -> vector<2x8x32xf32>
    "tpu.trace_stop"() : () -> ()
    %82 = vector.broadcast %79 : vector<2x8x1xf32> to vector<2x8x32xf32>
    %83 = arith.mulf %81, %82 : vector<2x8x32xf32>
    %84 = vector.shape_cast %83 : vector<2x8x32xf32> to vector<16x32xf32>
    %85 = vector.extract_strided_slice %23 {offsets = [64, 0], sizes = [32, 128], strides = [1, 1]} : vector<128x128xf32> to vector<32x128xf32>
    %cst_42 = arith.constant dense<0.000000e+00> : vector<16x128xf32>
    %86 = tpu.matmul %84, %85, %cst_42 {dimension_numbers = #tpu.dot_dimension_numbers<[1], [0], [0], [1], [0, 0, 1, 1], [], []>} : vector<16x32xf32>, vector<32x128xf32>, vector<16x128xf32> -> vector<16x128xf32>
    %87 = arith.addf %66, %86 : vector<16x128xf32>
    %88 = vector.extract_strided_slice %19 {offsets = [0, 0, 96], sizes = [2, 8, 32], strides = [1, 1, 1]} : vector<2x8x128xf32> to vector<2x8x32xf32>
    %89 = vector.extract_strided_slice %20 {offsets = [0, 0, 96], sizes = [2, 16, 32], strides = [1, 1, 1]} : vector<2x16x128xf32> to vector<2x16x32xf32>
    "tpu.trace_start"() <{level = 10 : i32, message = "bqd,bkd->bqk"}> : () -> ()
    %cst_43 = arith.constant dense<0.000000e+00> : vector<2x8x16xf32>
    %90 = tpu.matmul %88, %89, %cst_43 {dimension_numbers = #tpu.dot_dimension_numbers<[2], [2], [1], [1], [0, 0, 0, 1, 1, 1], [0], [0]>} : vector<2x8x32xf32>, vector<2x16x32xf32>, vector<2x8x16xf32> -> vector<2x8x16xf32>
    "tpu.trace_stop"() : () -> ()
    %91 = arith.addf %90, %22 : vector<2x8x16xf32>
    %cst_44 = arith.constant dense<0xFF800000> : vector<2x8xf32>
    %92 = vector.multi_reduction <maximumf>, %91, %cst_44 [2] : vector<2x8x16xf32> to vector<2x8xf32>
    %93 = vector.shape_cast %92 : vector<2x8xf32> to vector<2x8x1xf32>
    %94 = vector.broadcast %93 : vector<2x8x1xf32> to vector<2x8x16xf32>
    %95 = arith.subf %91, %94 : vector<2x8x16xf32>
    %96 = math.exp %95 : vector<2x8x16xf32>
    %cst_45 = arith.constant dense<0.000000e+00> : vector<2x8xf32>
    %97 = vector.multi_reduction <add>, %96, %cst_45 [2] : vector<2x8x16xf32> to vector<2x8xf32>
    %98 = vector.shape_cast %97 : vector<2x8xf32> to vector<2x8x1xf32>
    %cst_46 = arith.constant 1.000000e+00 : f32
    %99 = vector.broadcast %cst_46 : f32 to vector<2x8x1xf32>
    %100 = arith.divf %99, %98 : vector<2x8x1xf32>
    %101 = vector.extract_strided_slice %21 {offsets = [0, 0, 96], sizes = [2, 16, 32], strides = [1, 1, 1]} : vector<2x16x128xf32> to vector<2x16x32xf32>
    "tpu.trace_start"() <{level = 10 : i32, message = "bqk,bkd->bqd"}> : () -> ()
    %cst_47 = arith.constant dense<0.000000e+00> : vector<2x8x32xf32>
    %102 = tpu.matmul %96, %101, %cst_47 {dimension_numbers = #tpu.dot_dimension_numbers<[2], [1], [1], [2], [0, 0, 0, 1, 1, 2], [0], [0]>} : vector<2x8x16xf32>, vector<2x16x32xf32>, vector<2x8x32xf32> -> vector<2x8x32xf32>
    "tpu.trace_stop"() : () -> ()
    %103 = vector.broadcast %100 : vector<2x8x1xf32> to vector<2x8x32xf32>
    %104 = arith.mulf %102, %103 : vector<2x8x32xf32>
    %105 = vector.shape_cast %104 : vector<2x8x32xf32> to vector<16x32xf32>
    %106 = vector.extract_strided_slice %23 {offsets = [96, 0], sizes = [32, 128], strides = [1, 1]} : vector<128x128xf32> to vector<32x128xf32>
    %cst_48 = arith.constant dense<0.000000e+00> : vector<16x128xf32>
    %107 = tpu.matmul %105, %106, %cst_48 {dimension_numbers = #tpu.dot_dimension_numbers<[1], [0], [0], [1], [0, 0, 1, 1], [], []>} : vector<16x32xf32>, vector<32x128xf32>, vector<16x128xf32> -> vector<16x128xf32>
    %108 = arith.addf %87, %107 : vector<16x128xf32>
    %c0_49 = arith.constant 0 : index
    %c0_50 = arith.constant 0 : index
    %109 = vector.load %arg11[%c0_49, %c0_50] : memref<1x128xf32, #tpu.memory_space<vmem>>, vector<1x128xf32>
    %110 = vector.broadcast %109 : vector<1x128xf32> to vector<16x128xf32>
    %111 = arith.addf %108, %110 : vector<16x128xf32>
    %112 = arith.addf %111, %1 : vector<16x128xf32>
    %cst_51 = arith.constant dense<0.000000e+00> : vector<16xf32>
    %113 = vector.multi_reduction <add>, %112, %cst_51 [1] : vector<16x128xf32> to vector<16xf32>
    %114 = vector.shape_cast %113 : vector<16xf32> to vector<16x1xf32>
    %cst_52 = arith.constant 1.280000e+02 : f32
    %115 = vector.broadcast %cst_52 : f32 to vector<16x1xf32>
    %116 = arith.divf %114, %115 : vector<16x1xf32>
    %117 = vector.broadcast %116 : vector<16x1xf32> to vector<16x128xf32>
    %118 = arith.subf %112, %117 : vector<16x128xf32>
    %119 = arith.mulf %118, %118 : vector<16x128xf32>
    %cst_53 = arith.constant dense<0.000000e+00> : vector<16xf32>
    %120 = vector.multi_reduction <add>, %119, %cst_53 [1] : vector<16x128xf32> to vector<16xf32>
    %121 = vector.shape_cast %120 : vector<16xf32> to vector<16x1xf32>
    %cst_54 = arith.constant 1.280000e+02 : f32
    %122 = vector.broadcast %cst_54 : f32 to vector<16x1xf32>
    %123 = arith.divf %121, %122 : vector<16x1xf32>
    %124 = vector.broadcast %116 : vector<16x1xf32> to vector<16x128xf32>
    %125 = arith.subf %112, %124 : vector<16x128xf32>
    %cst_55 = arith.constant 9.99999974E-6 : f32
    %126 = vector.broadcast %cst_55 : f32 to vector<16x1xf32>
    %127 = arith.addf %123, %126 : vector<16x1xf32>
    %128 = math.rsqrt %127 : vector<16x1xf32>
    %129 = vector.broadcast %128 : vector<16x1xf32> to vector<16x128xf32>
    %130 = arith.mulf %125, %129 : vector<16x128xf32>
    %c0_56 = arith.constant 0 : index
    %c0_57 = arith.constant 0 : index
    %131 = vector.load %arg12[%c0_56, %c0_57] : memref<1x128xf32, #tpu.memory_space<vmem>>, vector<1x128xf32>
    %132 = vector.broadcast %131 : vector<1x128xf32> to vector<16x128xf32>
    %133 = arith.mulf %130, %132 : vector<16x128xf32>
    %c0_58 = arith.constant 0 : index
    %c0_59 = arith.constant 0 : index
    %134 = vector.load %arg13[%c0_58, %c0_59] : memref<1x128xf32, #tpu.memory_space<vmem>>, vector<1x128xf32>
    %135 = vector.broadcast %134 : vector<1x128xf32> to vector<16x128xf32>
    %136 = arith.addf %133, %135 : vector<16x128xf32>
    %137 = vector.shape_cast %136 : vector<16x128xf32> to vector<2x8x128xf32>
    %c0_60 = arith.constant 0 : index
    %c0_61 = arith.constant 0 : index
    %c0_62 = arith.constant 0 : index
    %138 = vector.load %arg14[%c0_60, %c0_61, %c0_62] : memref<2x8x128xf32, #tpu.memory_space<vmem>>, vector<2x8x128xf32>
    tpu.vector_store %arg14[%c0_60, %c0_61, %c0_62], %137 {strides = array<i32>} : memref<2x8x128xf32, #tpu.memory_space<vmem>>, vector<2x8x128xf32>,
    return
  }
  func.func @transform_0(%arg0: i32) -> (i32, i32, i32) {
    %c0_i32 = arith.constant 0 : i32
    %c0_i32_0 = arith.constant 0 : i32
    %c0_i32_1 = arith.constant 0 : i32
    return %arg0, %c0_i32, %c0_i32_0 : i32, i32, i32
  }
  func.func @transform_1(%arg0: i32) -> (i32, i32, i32) {
    %c0_i32 = arith.constant 0 : i32
    %c0_i32_0 = arith.constant 0 : i32
    %c0_i32_1 = arith.constant 0 : i32
    return %arg0, %c0_i32, %c0_i32_0 : i32, i32, i32
  }
  func.func @transform_2(%arg0: i32) -> (i32, i32, i32) {
    %c0_i32 = arith.constant 0 : i32
    %c0_i32_0 = arith.constant 0 : i32
    %c0_i32_1 = arith.constant 0 : i32
    return %arg0, %c0_i32, %c0_i32_0 : i32, i32, i32
  }
  func.func @transform_3(%arg0: i32) -> (i32, i32) {
    %c0_i32 = arith.constant 0 : i32
    %c0_i32_0 = arith.constant 0 : i32
    %c0_i32_1 = arith.constant 0 : i32
    return %c0_i32, %c0_i32_0 : i32, i32
  }
  func.func @transform_4(%arg0: i32) -> (i32, i32) {
    %c0_i32 = arith.constant 0 : i32
    %c0_i32_0 = arith.constant 0 : i32
    %c0_i32_1 = arith.constant 0 : i32
    return %c0_i32, %c0_i32_0 : i32, i32
  }
  func.func @transform_5(%arg0: i32) -> (i32, i32) {
    %c0_i32 = arith.constant 0 : i32
    %c0_i32_0 = arith.constant 0 : i32
    %c0_i32_1 = arith.constant 0 : i32
    return %c0_i32, %c0_i32_0 : i32, i32
  }
  func.func @transform_6(%arg0: i32) -> (i32, i32) {
    %c0_i32 = arith.constant 0 : i32
    %c0_i32_0 = arith.constant 0 : i32
    %c0_i32_1 = arith.constant 0 : i32
    return %c0_i32, %c0_i32_0 : i32, i32
  }
  func.func @transform_7(%arg0: i32) -> (i32, i32) {
    %c0_i32 = arith.constant 0 : i32
    %c0_i32_0 = arith.constant 0 : i32
    %c0_i32_1 = arith.constant 0 : i32
    return %c0_i32, %c0_i32_0 : i32, i32
  }
  func.func @transform_8(%arg0: i32) -> (i32, i32) {
    %c0_i32 = arith.constant 0 : i32
    %c0_i32_0 = arith.constant 0 : i32
    %c0_i32_1 = arith.constant 0 : i32
    return %c0_i32, %c0_i32_0 : i32, i32
  }
  func.func @transform_9(%arg0: i32) -> (i32, i32) {
    %c0_i32 = arith.constant 0 : i32
    %c0_i32_0 = arith.constant 0 : i32
    %c0_i32_1 = arith.constant 0 : i32
    return %c0_i32, %c0_i32_0 : i32, i32
  }
  func.func @transform_10(%arg0: i32) -> (i32, i32) {
    %c0_i32 = arith.constant 0 : i32
    %c0_i32_0 = arith.constant 0 : i32
    %c0_i32_1 = arith.constant 0 : i32
    return %c0_i32, %c0_i32_0 : i32, i32
  }
  func.func @transform_11(%arg0: i32) -> (i32, i32) {
    %c0_i32 = arith.constant 0 : i32
    %c0_i32_0 = arith.constant 0 : i32
    %c0_i32_1 = arith.constant 0 : i32
    return %c0_i32, %c0_i32_0 : i32, i32
  }
  func.func @transform_12(%arg0: i32) -> (i32, i32) {
    %c0_i32 = arith.constant 0 : i32
    %c0_i32_0 = arith.constant 0 : i32
    %c0_i32_1 = arith.constant 0 : i32
    return %c0_i32, %c0_i32_0 : i32, i32
  }
  func.func @transform_13(%arg0: i32) -> (i32, i32, i32) {
    %c0_i32 = arith.constant 0 : i32
    %c0_i32_0 = arith.constant 0 : i32
    %c0_i32_1 = arith.constant 0 : i32
    return %arg0, %c0_i32, %c0_i32_0 : i32, i32, i32
  }
}

module attributes {stable_mosaic.version = 11 : i64} {
  func.func @_attn_ln_kernel(%arg0: i32, %arg1: memref<2x8x128xf32, #tpu.memory_space<vmem>>, %arg2: memref<2x8x128xf32, #tpu.memory_space<vmem>>, %arg3: memref<2x8x8xf32, #tpu.memory_space<vmem>>, %arg4: memref<128x128xf32, #tpu.memory_space<vmem>>, %arg5: memref<1x128xf32, #tpu.memory_space<vmem>>, %arg6: memref<128x128xf32, #tpu.memory_space<vmem>>, %arg7: memref<1x128xf32, #tpu.memory_space<vmem>>, %arg8: memref<128x128xf32, #tpu.memory_space<vmem>>, %arg9: memref<1x128xf32, #tpu.memory_space<vmem>>, %arg10: memref<128x128xf32, #tpu.memory_space<vmem>>, %arg11: memref<1x128xf32, #tpu.memory_space<vmem>>, %arg12: memref<1x128xf32, #tpu.memory_space<vmem>>, %arg13: memref<1x128xf32, #tpu.memory_space<vmem>>, %arg14: memref<2x8x128xf32, #tpu.memory_space<vmem>>) attributes {dimension_semantics = [#tpu.dimension_semantics<parallel>], iteration_bounds = array<i64: 1>, scalar_prefetch = 0 : i64, scratch_operands = 0 : i64, tpu.core_type = #tpu.core_type<tc>, window_params = [{transform_indices = @transform_0, window_bounds = array<i64: 2, 8, 128>}, {transform_indices = @transform_1, window_bounds = array<i64: 2, 8, 128>}, {transform_indices = @transform_2, window_bounds = array<i64: 2, 8, 8>}, {pipeline_mode = #tpu.pipeline_mode<synchronous>, transform_indices = @transform_3, window_bounds = array<i64: 128, 128>}, {pipeline_mode = #tpu.pipeline_mode<synchronous>, transform_indices = @transform_4, window_bounds = array<i64: 1, 128>}, {pipeline_mode = #tpu.pipeline_mode<synchronous>, transform_indices = @transform_5, window_bounds = array<i64: 128, 128>}, {pipeline_mode = #tpu.pipeline_mode<synchronous>, transform_indices = @transform_6, window_bounds = array<i64: 1, 128>}, {pipeline_mode = #tpu.pipeline_mode<synchronous>, transform_indices = @transform_7, window_bounds = array<i64: 128, 128>}, {pipeline_mode = #tpu.pipeline_mode<synchronous>, transform_indices = @transform_8, window_bounds = array<i64: 1, 128>}, {pipeline_mode = #tpu.pipeline_mode<synchronous>, transform_indices = @transform_9, window_bounds = array<i64: 128, 128>}, {pipeline_mode = #tpu.pipeline_mode<synchronous>, transform_indices = @transform_10, window_bounds = array<i64: 1, 128>}, {pipeline_mode = #tpu.pipeline_mode<synchronous>, transform_indices = @transform_11, window_bounds = array<i64: 1, 128>}, {pipeline_mode = #tpu.pipeline_mode<synchronous>, transform_indices = @transform_12, window_bounds = array<i64: 1, 128>}, {transform_indices = @transform_13, window_bounds = array<i64: 2, 8, 128>}]} {
    %c0 = arith.constant 0 : index
    %c0_0 = arith.constant 0 : index
    %c0_1 = arith.constant 0 : index
    %0 = vector.load %arg1[%c0, %c0_0, %c0_1] : memref<2x8x128xf32, #tpu.memory_space<vmem>>, vector<2x8x128xf32>
    %1 = vector.shape_cast %0 : vector<2x8x128xf32> to vector<16x128xf32>
    %c0_2 = arith.constant 0 : index
    %c0_3 = arith.constant 0 : index
    %c0_4 = arith.constant 0 : index
    %2 = vector.load %arg2[%c0_2, %c0_3, %c0_4] : memref<2x8x128xf32, #tpu.memory_space<vmem>>, vector<2x8x128xf32>
    %3 = vector.shape_cast %2 : vector<2x8x128xf32> to vector<16x128xf32>
    %c0_5 = arith.constant 0 : index
    %c0_6 = arith.constant 0 : index
    %4 = vector.load %arg4[%c0_5, %c0_6] : memref<128x128xf32, #tpu.memory_space<vmem>>, vector<128x128xf32>
    %cst = arith.constant dense<0.000000e+00> : vector<16x128xf32>
    %5 = tpu.matmul %1, %4, %cst {dimension_numbers = #tpu.dot_dimension_numbers<[1], [0], [0], [1], [0, 0, 1, 1], [], []>} : vector<16x128xf32>, vector<128x128xf32>, vector<16x128xf32> -> vector<16x128xf32>
    %c0_7 = arith.constant 0 : index
    %c0_8 = arith.constant 0 : index
    %6 = vector.load %arg5[%c0_7, %c0_8] : memref<1x128xf32, #tpu.memory_space<vmem>>, vector<1x128xf32>
    %7 = vector.broadcast %6 : vector<1x128xf32> to vector<16x128xf32>
    %8 = arith.addf %5, %7 : vector<16x128xf32>
    %c0_9 = arith.constant 0 : index
    %c0_10 = arith.constant 0 : index
    %9 = vector.load %arg6[%c0_9, %c0_10] : memref<128x128xf32, #tpu.memory_space<vmem>>, vector<128x128xf32>
    %cst_11 = arith.constant dense<0.000000e+00> : vector<16x128xf32>
    %10 = tpu.matmul %3, %9, %cst_11 {dimension_numbers = #tpu.dot_dimension_numbers<[1], [0], [0], [1], [0, 0, 1, 1], [], []>} : vector<16x128xf32>, vector<128x128xf32>, vector<16x128xf32> -> vector<16x128xf32>
    %c0_12 = arith.constant 0 : index
    %c0_13 = arith.constant 0 : index
    %11 = vector.load %arg7[%c0_12, %c0_13] : memref<1x128xf32, #tpu.memory_space<vmem>>, vector<1x128xf32>
    %12 = vector.broadcast %11 : vector<1x128xf32> to vector<16x128xf32>
    %13 = arith.addf %10, %12 : vector<16x128xf32>
    %c0_14 = arith.constant 0 : index
    %c0_15 = arith.constant 0 : index
    %14 = vector.load %arg8[%c0_14, %c0_15] : memref<128x128xf32, #tpu.memory_space<vmem>>, vector<128x128xf32>
    %cst_16 = arith.constant dense<0.000000e+00> : vector<16x128xf32>
    %15 = tpu.matmul %3, %14, %cst_16 {dimension_numbers = #tpu.dot_dimension_numbers<[1], [0], [0], [1], [0, 0, 1, 1], [], []>} : vector<16x128xf32>, vector<128x128xf32>, vector<16x128xf32> -> vector<16x128xf32>
    %c0_17 = arith.constant 0 : index
    %c0_18 = arith.constant 0 : index
    %16 = vector.load %arg9[%c0_17, %c0_18] : memref<1x128xf32, #tpu.memory_space<vmem>>, vector<1x128xf32>
    %17 = vector.broadcast %16 : vector<1x128xf32> to vector<16x128xf32>
    %18 = arith.addf %15, %17 : vector<16x128xf32>
    %19 = vector.shape_cast %8 : vector<16x128xf32> to vector<2x8x128xf32>
    %20 = vector.shape_cast %13 : vector<16x128xf32> to vector<2x8x128xf32>
    %21 = vector.shape_cast %18 : vector<16x128xf32> to vector<2x8x128xf32>
    %c0_19 = arith.constant 0 : index
    %c0_20 = arith.constant 0 : index
    %c0_21 = arith.constant 0 : index
    %22 = vector.load %arg3[%c0_19, %c0_20, %c0_21] : memref<2x8x8xf32, #tpu.memory_space<vmem>>, vector<2x8x8xf32>
    %c0_22 = arith.constant 0 : index
    %c0_23 = arith.constant 0 : index
    %23 = vector.load %arg10[%c0_22, %c0_23] : memref<128x128xf32, #tpu.memory_space<vmem>>, vector<128x128xf32>
    %cst_24 = arith.constant 0.000000e+00 : f32
    %24 = vector.broadcast %cst_24 : f32 to vector<16x128xf32>
    %25 = vector.extract_strided_slice %19 {offsets = [0, 0, 0], sizes = [2, 8, 32], strides = [1, 1, 1]} : vector<2x8x128xf32> to vector<2x8x32xf32>
    %26 = vector.extract_strided_slice %20 {offsets = [0, 0, 0], sizes = [2, 8, 32], strides = [1, 1, 1]} : vector<2x8x128xf32> to vector<2x8x32xf32>
    "tpu.trace_start"() <{level = 10 : i32, message = "bqd,bkd->bqk"}> : () -> ()
    %cst_25 = arith.constant dense<0.000000e+00> : vector<2x8x8xf32>
    %27 = tpu.matmul %25, %26, %cst_25 {dimension_numbers = #tpu.dot_dimension_numbers<[2], [2], [1], [1], [0, 0, 0, 1, 1, 1], [0], [0]>} : vector<2x8x32xf32>, vector<2x8x32xf32>, vector<2x8x8xf32> -> vector<2x8x8xf32>
    "tpu.trace_stop"() : () -> ()
    %28 = arith.addf %27, %22 : vector<2x8x8xf32>
    %cst_26 = arith.constant dense<0xFF800000> : vector<2x8xf32>
    %29 = vector.multi_reduction <maximumf>, %28, %cst_26 [2] : vector<2x8x8xf32> to vector<2x8xf32>
    %30 = vector.shape_cast %29 : vector<2x8xf32> to vector<2x8x1xf32>
    %31 = vector.broadcast %30 : vector<2x8x1xf32> to vector<2x8x8xf32>
    %32 = arith.subf %28, %31 : vector<2x8x8xf32>
    %33 = math.exp %32 : vector<2x8x8xf32>
    %cst_27 = arith.constant dense<0.000000e+00> : vector<2x8xf32>
    %34 = vector.multi_reduction <add>, %33, %cst_27 [2] : vector<2x8x8xf32> to vector<2x8xf32>
    %35 = vector.shape_cast %34 : vector<2x8xf32> to vector<2x8x1xf32>
    %cst_28 = arith.constant 1.000000e+00 : f32
    %36 = vector.broadcast %cst_28 : f32 to vector<2x8x1xf32>
    %37 = arith.divf %36, %35 : vector<2x8x1xf32>
    %38 = vector.extract_strided_slice %21 {offsets = [0, 0, 0], sizes = [2, 8, 32], strides = [1, 1, 1]} : vector<2x8x128xf32> to vector<2x8x32xf32>
    "tpu.trace_start"() <{level = 10 : i32, message = "bqk,bkd->bqd"}> : () -> ()
    %cst_29 = arith.constant dense<0.000000e+00> : vector<2x8x32xf32>
    %39 = tpu.matmul %33, %38, %cst_29 {dimension_numbers = #tpu.dot_dimension_numbers<[2], [1], [1], [2], [0, 0, 0, 1, 1, 2], [0], [0]>} : vector<2x8x8xf32>, vector<2x8x32xf32>, vector<2x8x32xf32> -> vector<2x8x32xf32>
    "tpu.trace_stop"() : () -> ()
    %40 = vector.broadcast %37 : vector<2x8x1xf32> to vector<2x8x32xf32>
    %41 = arith.mulf %39, %40 : vector<2x8x32xf32>
    %42 = vector.shape_cast %41 : vector<2x8x32xf32> to vector<16x32xf32>
    %43 = vector.extract_strided_slice %23 {offsets = [0, 0], sizes = [32, 128], strides = [1, 1]} : vector<128x128xf32> to vector<32x128xf32>
    %cst_30 = arith.constant dense<0.000000e+00> : vector<16x128xf32>
    %44 = tpu.matmul %42, %43, %cst_30 {dimension_numbers = #tpu.dot_dimension_numbers<[1], [0], [0], [1], [0, 0, 1, 1], [], []>} : vector<16x32xf32>, vector<32x128xf32>, vector<16x128xf32> -> vector<16x128xf32>
    %45 = arith.addf %24, %44 : vector<16x128xf32>
    %46 = vector.extract_strided_slice %19 {offsets = [0, 0, 32], sizes = [2, 8, 32], strides = [1, 1, 1]} : vector<2x8x128xf32> to vector<2x8x32xf32>
    %47 = vector.extract_strided_slice %20 {offsets = [0, 0, 32], sizes = [2, 8, 32], strides = [1, 1, 1]} : vector<2x8x128xf32> to vector<2x8x32xf32>
    "tpu.trace_start"() <{level = 10 : i32, message = "bqd,bkd->bqk"}> : () -> ()
    %cst_31 = arith.constant dense<0.000000e+00> : vector<2x8x8xf32>
    %48 = tpu.matmul %46, %47, %cst_31 {dimension_numbers = #tpu.dot_dimension_numbers<[2], [2], [1], [1], [0, 0, 0, 1, 1, 1], [0], [0]>} : vector<2x8x32xf32>, vector<2x8x32xf32>, vector<2x8x8xf32> -> vector<2x8x8xf32>
    "tpu.trace_stop"() : () -> ()
    %49 = arith.addf %48, %22 : vector<2x8x8xf32>
    %cst_32 = arith.constant dense<0xFF800000> : vector<2x8xf32>
    %50 = vector.multi_reduction <maximumf>, %49, %cst_32 [2] : vector<2x8x8xf32> to vector<2x8xf32>
    %51 = vector.shape_cast %50 : vector<2x8xf32> to vector<2x8x1xf32>
    %52 = vector.broadcast %51 : vector<2x8x1xf32> to vector<2x8x8xf32>
    %53 = arith.subf %49, %52 : vector<2x8x8xf32>
    %54 = math.exp %53 : vector<2x8x8xf32>
    %cst_33 = arith.constant dense<0.000000e+00> : vector<2x8xf32>
    %55 = vector.multi_reduction <add>, %54, %cst_33 [2] : vector<2x8x8xf32> to vector<2x8xf32>
    %56 = vector.shape_cast %55 : vector<2x8xf32> to vector<2x8x1xf32>
    %cst_34 = arith.constant 1.000000e+00 : f32
    %57 = vector.broadcast %cst_34 : f32 to vector<2x8x1xf32>
    %58 = arith.divf %57, %56 : vector<2x8x1xf32>
    %59 = vector.extract_strided_slice %21 {offsets = [0, 0, 32], sizes = [2, 8, 32], strides = [1, 1, 1]} : vector<2x8x128xf32> to vector<2x8x32xf32>
    "tpu.trace_start"() <{level = 10 : i32, message = "bqk,bkd->bqd"}> : () -> ()
    %cst_35 = arith.constant dense<0.000000e+00> : vector<2x8x32xf32>
    %60 = tpu.matmul %54, %59, %cst_35 {dimension_numbers = #tpu.dot_dimension_numbers<[2], [1], [1], [2], [0, 0, 0, 1, 1, 2], [0], [0]>} : vector<2x8x8xf32>, vector<2x8x32xf32>, vector<2x8x32xf32> -> vector<2x8x32xf32>
    "tpu.trace_stop"() : () -> ()
    %61 = vector.broadcast %58 : vector<2x8x1xf32> to vector<2x8x32xf32>
    %62 = arith.mulf %60, %61 : vector<2x8x32xf32>
    %63 = vector.shape_cast %62 : vector<2x8x32xf32> to vector<16x32xf32>
    %64 = vector.extract_strided_slice %23 {offsets = [32, 0], sizes = [32, 128], strides = [1, 1]} : vector<128x128xf32> to vector<32x128xf32>
    %cst_36 = arith.constant dense<0.000000e+00> : vector<16x128xf32>
    %65 = tpu.matmul %63, %64, %cst_36 {dimension_numbers = #tpu.dot_dimension_numbers<[1], [0], [0], [1], [0, 0, 1, 1], [], []>} : vector<16x32xf32>, vector<32x128xf32>, vector<16x128xf32> -> vector<16x128xf32>
    %66 = arith.addf %45, %65 : vector<16x128xf32>
    %67 = vector.extract_strided_slice %19 {offsets = [0, 0, 64], sizes = [2, 8, 32], strides = [1, 1, 1]} : vector<2x8x128xf32> to vector<2x8x32xf32>
    %68 = vector.extract_strided_slice %20 {offsets = [0, 0, 64], sizes = [2, 8, 32], strides = [1, 1, 1]} : vector<2x8x128xf32> to vector<2x8x32xf32>
    "tpu.trace_start"() <{level = 10 : i32, message = "bqd,bkd->bqk"}> : () -> ()
    %cst_37 = arith.constant dense<0.000000e+00> : vector<2x8x8xf32>
    %69 = tpu.matmul %67, %68, %cst_37 {dimension_numbers = #tpu.dot_dimension_numbers<[2], [2], [1], [1], [0, 0, 0, 1, 1, 1], [0], [0]>} : vector<2x8x32xf32>, vector<2x8x32xf32>, vector<2x8x8xf32> -> vector<2x8x8xf32>
    "tpu.trace_stop"() : () -> ()
    %70 = arith.addf %69, %22 : vector<2x8x8xf32>
    %cst_38 = arith.constant dense<0xFF800000> : vector<2x8xf32>
    %71 = vector.multi_reduction <maximumf>, %70, %cst_38 [2] : vector<2x8x8xf32> to vector<2x8xf32>
    %72 = vector.shape_cast %71 : vector<2x8xf32> to vector<2x8x1xf32>
    %73 = vector.broadcast %72 : vector<2x8x1xf32> to vector<2x8x8xf32>
    %74 = arith.subf %70, %73 : vector<2x8x8xf32>
    %75 = math.exp %74 : vector<2x8x8xf32>
    %cst_39 = arith.constant dense<0.000000e+00> : vector<2x8xf32>
    %76 = vector.multi_reduction <add>, %75, %cst_39 [2] : vector<2x8x8xf32> to vector<2x8xf32>
    %77 = vector.shape_cast %76 : vector<2x8xf32> to vector<2x8x1xf32>
    %cst_40 = arith.constant 1.000000e+00 : f32
    %78 = vector.broadcast %cst_40 : f32 to vector<2x8x1xf32>
    %79 = arith.divf %78, %77 : vector<2x8x1xf32>
    %80 = vector.extract_strided_slice %21 {offsets = [0, 0, 64], sizes = [2, 8, 32], strides = [1, 1, 1]} : vector<2x8x128xf32> to vector<2x8x32xf32>
    "tpu.trace_start"() <{level = 10 : i32, message = "bqk,bkd->bqd"}> : () -> ()
    %cst_41 = arith.constant dense<0.000000e+00> : vector<2x8x32xf32>
    %81 = tpu.matmul %75, %80, %cst_41 {dimension_numbers = #tpu.dot_dimension_numbers<[2], [1], [1], [2], [0, 0, 0, 1, 1, 2], [0], [0]>} : vector<2x8x8xf32>, vector<2x8x32xf32>, vector<2x8x32xf32> -> vector<2x8x32xf32>
    "tpu.trace_stop"() : () -> ()
    %82 = vector.broadcast %79 : vector<2x8x1xf32> to vector<2x8x32xf32>
    %83 = arith.mulf %81, %82 : vector<2x8x32xf32>
    %84 = vector.shape_cast %83 : vector<2x8x32xf32> to vector<16x32xf32>
    %85 = vector.extract_strided_slice %23 {offsets = [64, 0], sizes = [32, 128], strides = [1, 1]} : vector<128x128xf32> to vector<32x128xf32>
    %cst_42 = arith.constant dense<0.000000e+00> : vector<16x128xf32>
    %86 = tpu.matmul %84, %85, %cst_42 {dimension_numbers = #tpu.dot_dimension_numbers<[1], [0], [0], [1], [0, 0, 1, 1], [], []>} : vector<16x32xf32>, vector<32x128xf32>, vector<16x128xf32> -> vector<16x128xf32>
    %87 = arith.addf %66, %86 : vector<16x128xf32>
    %88 = vector.extract_strided_slice %19 {offsets = [0, 0, 96], sizes = [2, 8, 32], strides = [1, 1, 1]} : vector<2x8x128xf32> to vector<2x8x32xf32>
    %89 = vector.extract_strided_slice %20 {offsets = [0, 0, 96], sizes = [2, 8, 32], strides = [1, 1, 1]} : vector<2x8x128xf32> to vector<2x8x32xf32>
    "tpu.trace_start"() <{level = 10 : i32, message = "bqd,bkd->bqk"}> : () -> ()
    %cst_43 = arith.constant dense<0.000000e+00> : vector<2x8x8xf32>
    %90 = tpu.matmul %88, %89, %cst_43 {dimension_numbers = #tpu.dot_dimension_numbers<[2], [2], [1], [1], [0, 0, 0, 1, 1, 1], [0], [0]>} : vector<2x8x32xf32>, vector<2x8x32xf32>, vector<2x8x8xf32> -> vector<2x8x8xf32>
    "tpu.trace_stop"() : () -> ()
    %91 = arith.addf %90, %22 : vector<2x8x8xf32>
    %cst_44 = arith.constant dense<0xFF800000> : vector<2x8xf32>
    %92 = vector.multi_reduction <maximumf>, %91, %cst_44 [2] : vector<2x8x8xf32> to vector<2x8xf32>
    %93 = vector.shape_cast %92 : vector<2x8xf32> to vector<2x8x1xf32>
    %94 = vector.broadcast %93 : vector<2x8x1xf32> to vector<2x8x8xf32>
    %95 = arith.subf %91, %94 : vector<2x8x8xf32>
    %96 = math.exp %95 : vector<2x8x8xf32>
    %cst_45 = arith.constant dense<0.000000e+00> : vector<2x8xf32>
    %97 = vector.multi_reduction <add>, %96, %cst_45 [2] : vector<2x8x8xf32> to vector<2x8xf32>
    %98 = vector.shape_cast %97 : vector<2x8xf32> to vector<2x8x1xf32>
    %cst_46 = arith.constant 1.000000e+00 : f32
    %99 = vector.broadcast %cst_46 : f32 to vector<2x8x1xf32>
    %100 = arith.divf %99, %98 : vector<2x8x1xf32>
    %101 = vector.extract_strided_slice %21 {offsets = [0, 0, 96], sizes = [2, 8, 32], strides = [1, 1, 1]} : vector<2x8x128xf32> to vector<2x8x32xf32>
    "tpu.trace_start"() <{level = 10 : i32, message = "bqk,bkd->bqd"}> : () -> ()
    %cst_47 = arith.constant dense<0.000000e+00> : vector<2x8x32xf32>
    %102 = tpu.matmul %96, %101, %cst_47 {dimension_numbers = #tpu.dot_dimension_numbers<[2], [1], [1], [2], [0, 0, 0, 1, 1, 2], [0], [0]>} : vector<2x8x8xf32>, vector<2x8x32xf32>, vector<2x8x32xf32> -> vector<2x8x32xf32>
    "tpu.trace_stop"() : () -> ()
    %103 = vector.broadcast %100 : vector<2x8x1xf32> to vector<2x8x32xf32>
    %104 = arith.mulf %102, %103 : vector<2x8x32xf32>
    %105 = vector.shape_cast %104 : vector<2x8x32xf32> to vector<16x32xf32>
    %106 = vector.extract_strided_slice %23 {offsets = [96, 0], sizes = [32, 128], strides = [1, 1]} : vector<128x128xf32> to vector<32x128xf32>
    %cst_48 = arith.constant dense<0.000000e+00> : vector<16x128xf32>
    %107 = tpu.matmul %105, %106, %cst_48 {dimension_numbers = #tpu.dot_dimension_numbers<[1], [0], [0], [1], [0, 0, 1, 1], [], []>} : vector<16x32xf32>, vector<32x128xf32>, vector<16x128xf32> -> vector<16x128xf32>
    %108 = arith.addf %87, %107 : vector<16x128xf32>
    %c0_49 = arith.constant 0 : index
    %c0_50 = arith.constant 0 : index
    %109 = vector.load %arg11[%c0_49, %c0_50] : memref<1x128xf32, #tpu.memory_space<vmem>>, vector<1x128xf32>
    %110 = vector.broadcast %109 : vector<1x128xf32> to vector<16x128xf32>
    %111 = arith.addf %108, %110 : vector<16x128xf32>
    %112 = arith.addf %111, %1 : vector<16x128xf32>
    %cst_51 = arith.constant dense<0.000000e+00> : vector<16xf32>
    %113 = vector.multi_reduction <add>, %112, %cst_51 [1] : vector<16x128xf32> to vector<16xf32>
    %114 = vector.shape_cast %113 : vector<16xf32> to vector<16x1xf32>
    %cst_52 = arith.constant 1.280000e+02 : f32
    %115 = vector.broadcast %cst_52 : f32 to vector<16x1xf32>
    %116 = arith.divf %114, %115 : vector<16x1xf32>
    %117 = vector.broadcast %116 : vector<16x1xf32> to vector<16x128xf32>
    %118 = arith.subf %112, %117 : vector<16x128xf32>
    %119 = arith.mulf %118, %118 : vector<16x128xf32>
    %cst_53 = arith.constant dense<0.000000e+00> : vector<16xf32>
    %120 = vector.multi_reduction <add>, %119, %cst_53 [1] : vector<16x128xf32> to vector<16xf32>
    %121 = vector.shape_cast %120 : vector<16xf32> to vector<16x1xf32>
    %cst_54 = arith.constant 1.280000e+02 : f32
    %122 = vector.broadcast %cst_54 : f32 to vector<16x1xf32>
    %123 = arith.divf %121, %122 : vector<16x1xf32>
    %124 = vector.broadcast %116 : vector<16x1xf32> to vector<16x128xf32>
    %125 = arith.subf %112, %124 : vector<16x128xf32>
    %cst_55 = arith.constant 9.99999974E-6 : f32
    %126 = vector.broadcast %cst_55 : f32 to vector<16x1xf32>
    %127 = arith.addf %123, %126 : vector<16x1xf32>
    %128 = math.rsqrt %127 : vector<16x1xf32>
    %129 = vector.broadcast %128 : vector<16x1xf32> to vector<16x128xf32>
    %130 = arith.mulf %125, %129 : vector<16x128xf32>
    %c0_56 = arith.constant 0 : index
    %c0_57 = arith.constant 0 : index
    %131 = vector.load %arg12[%c0_56, %c0_57] : memref<1x128xf32, #tpu.memory_space<vmem>>, vector<1x128xf32>
    %132 = vector.broadcast %131 : vector<1x128xf32> to vector<16x128xf32>
    %133 = arith.mulf %130, %132 : vector<16x128xf32>
    %c0_58 = arith.constant 0 : index
    %c0_59 = arith.constant 0 : index
    %134 = vector.load %arg13[%c0_58, %c0_59] : memref<1x128xf32, #tpu.memory_space<vmem>>, vector<1x128xf32>
    %135 = vector.broadcast %134 : vector<1x128xf32> to vector<16x128xf32>
    %136 = arith.addf %133, %135 : vector<16x128xf32>
    %137 = vector.shape_cast %136 : vector<16x128xf32> to vector<2x8x128xf32>
    %c0_60 = arith.constant 0 : index
    %c0_61 = arith.constant 0 : index
    %c0_62 = arith.constant 0 : index
    %138 = vector.load %arg14[%c0_60, %c0_61, %c0_62] : memref<2x8x128xf32, #tpu.memory_space<vmem>>, vector<2x8x128xf32>
    tpu.vector_store %arg14[%c0_60, %c0_61, %c0_62], %137 {strides = array<i32>} : memref<2x8x128xf32, #tpu.memory_space<vmem>>, vector<2x8x128xf32>,
    return
  }
  func.func @transform_0(%arg0: i32) -> (i32, i32, i32) {
    %c0_i32 = arith.constant 0 : i32
    %c0_i32_0 = arith.constant 0 : i32
    %c0_i32_1 = arith.constant 0 : i32
    return %arg0, %c0_i32, %c0_i32_0 : i32, i32, i32
  }
  func.func @transform_1(%arg0: i32) -> (i32, i32, i32) {
    %c0_i32 = arith.constant 0 : i32
    %c0_i32_0 = arith.constant 0 : i32
    %c0_i32_1 = arith.constant 0 : i32
    return %arg0, %c0_i32, %c0_i32_0 : i32, i32, i32
  }
  func.func @transform_2(%arg0: i32) -> (i32, i32, i32) {
    %c0_i32 = arith.constant 0 : i32
    %c0_i32_0 = arith.constant 0 : i32
    %c0_i32_1 = arith.constant 0 : i32
    return %arg0, %c0_i32, %c0_i32_0 : i32, i32, i32
  }
  func.func @transform_3(%arg0: i32) -> (i32, i32) {
    %c0_i32 = arith.constant 0 : i32
    %c0_i32_0 = arith.constant 0 : i32
    %c0_i32_1 = arith.constant 0 : i32
    return %c0_i32, %c0_i32_0 : i32, i32
  }
  func.func @transform_4(%arg0: i32) -> (i32, i32) {
    %c0_i32 = arith.constant 0 : i32
    %c0_i32_0 = arith.constant 0 : i32
    %c0_i32_1 = arith.constant 0 : i32
    return %c0_i32, %c0_i32_0 : i32, i32
  }
  func.func @transform_5(%arg0: i32) -> (i32, i32) {
    %c0_i32 = arith.constant 0 : i32
    %c0_i32_0 = arith.constant 0 : i32
    %c0_i32_1 = arith.constant 0 : i32
    return %c0_i32, %c0_i32_0 : i32, i32
  }
  func.func @transform_6(%arg0: i32) -> (i32, i32) {
    %c0_i32 = arith.constant 0 : i32
    %c0_i32_0 = arith.constant 0 : i32
    %c0_i32_1 = arith.constant 0 : i32
    return %c0_i32, %c0_i32_0 : i32, i32
  }
  func.func @transform_7(%arg0: i32) -> (i32, i32) {
    %c0_i32 = arith.constant 0 : i32
    %c0_i32_0 = arith.constant 0 : i32
    %c0_i32_1 = arith.constant 0 : i32
    return %c0_i32, %c0_i32_0 : i32, i32
  }
  func.func @transform_8(%arg0: i32) -> (i32, i32) {
    %c0_i32 = arith.constant 0 : i32
    %c0_i32_0 = arith.constant 0 : i32
    %c0_i32_1 = arith.constant 0 : i32
    return %c0_i32, %c0_i32_0 : i32, i32
  }
  func.func @transform_9(%arg0: i32) -> (i32, i32) {
    %c0_i32 = arith.constant 0 : i32
    %c0_i32_0 = arith.constant 0 : i32
    %c0_i32_1 = arith.constant 0 : i32
    return %c0_i32, %c0_i32_0 : i32, i32
  }
  func.func @transform_10(%arg0: i32) -> (i32, i32) {
    %c0_i32 = arith.constant 0 : i32
    %c0_i32_0 = arith.constant 0 : i32
    %c0_i32_1 = arith.constant 0 : i32
    return %c0_i32, %c0_i32_0 : i32, i32
  }
  func.func @transform_11(%arg0: i32) -> (i32, i32) {
    %c0_i32 = arith.constant 0 : i32
    %c0_i32_0 = arith.constant 0 : i32
    %c0_i32_1 = arith.constant 0 : i32
    return %c0_i32, %c0_i32_0 : i32, i32
  }
  func.func @transform_12(%arg0: i32) -> (i32, i32) {
    %c0_i32 = arith.constant 0 : i32
    %c0_i32_0 = arith.constant 0 : i32
    %c0_i32_1 = arith.constant 0 : i32
    return %c0_i32, %c0_i32_0 : i32, i32
  }
  func.func @transform_13(%arg0: i32) -> (i32, i32, i32) {
    %c0_i32 = arith.constant 0 : i32
    %c0_i32_0 = arith.constant 0 : i32
    %c0_i32_1 = arith.constant 0 : i32
    return %arg0, %c0_i32, %c0_i32_0 : i32, i32, i32
  }
}

module attributes {stable_mosaic.version = 11 : i64} {
  func.func @_ffn_ln_kernel(%arg0: i32, %arg1: memref<2x8x128xf32, #tpu.memory_space<vmem>>, %arg2: memref<128x256xf32, #tpu.memory_space<vmem>>, %arg3: memref<1x256xf32, #tpu.memory_space<vmem>>, %arg4: memref<256x128xf32, #tpu.memory_space<vmem>>, %arg5: memref<1x128xf32, #tpu.memory_space<vmem>>, %arg6: memref<1x128xf32, #tpu.memory_space<vmem>>, %arg7: memref<1x128xf32, #tpu.memory_space<vmem>>, %arg8: memref<2x8x128xf32, #tpu.memory_space<vmem>>) attributes {dimension_semantics = [#tpu.dimension_semantics<parallel>], iteration_bounds = array<i64: 1>, scalar_prefetch = 0 : i64, scratch_operands = 0 : i64, tpu.core_type = #tpu.core_type<tc>, window_params = [{transform_indices = @transform_0, window_bounds = array<i64: 2, 8, 128>}, {pipeline_mode = #tpu.pipeline_mode<synchronous>, transform_indices = @transform_1, window_bounds = array<i64: 128, 256>}, {pipeline_mode = #tpu.pipeline_mode<synchronous>, transform_indices = @transform_2, window_bounds = array<i64: 1, 256>}, {pipeline_mode = #tpu.pipeline_mode<synchronous>, transform_indices = @transform_3, window_bounds = array<i64: 256, 128>}, {pipeline_mode = #tpu.pipeline_mode<synchronous>, transform_indices = @transform_4, window_bounds = array<i64: 1, 128>}, {pipeline_mode = #tpu.pipeline_mode<synchronous>, transform_indices = @transform_5, window_bounds = array<i64: 1, 128>}, {pipeline_mode = #tpu.pipeline_mode<synchronous>, transform_indices = @transform_6, window_bounds = array<i64: 1, 128>}, {transform_indices = @transform_7, window_bounds = array<i64: 2, 8, 128>}]} {
    %c0 = arith.constant 0 : index
    %c0_0 = arith.constant 0 : index
    %c0_1 = arith.constant 0 : index
    %0 = vector.load %arg1[%c0, %c0_0, %c0_1] : memref<2x8x128xf32, #tpu.memory_space<vmem>>, vector<2x8x128xf32>
    %1 = vector.shape_cast %0 : vector<2x8x128xf32> to vector<16x128xf32>
    %c0_2 = arith.constant 0 : index
    %c0_3 = arith.constant 0 : index
    %2 = vector.load %arg2[%c0_2, %c0_3] : memref<128x256xf32, #tpu.memory_space<vmem>>, vector<128x256xf32>
    %cst = arith.constant dense<0.000000e+00> : vector<16x256xf32>
    %3 = tpu.matmul %1, %2, %cst {dimension_numbers = #tpu.dot_dimension_numbers<[1], [0], [0], [1], [0, 0, 1, 1], [], []>} : vector<16x128xf32>, vector<128x256xf32>, vector<16x256xf32> -> vector<16x256xf32>
    %c0_4 = arith.constant 0 : index
    %c0_5 = arith.constant 0 : index
    %4 = vector.load %arg3[%c0_4, %c0_5] : memref<1x256xf32, #tpu.memory_space<vmem>>, vector<1x256xf32>
    %5 = vector.broadcast %4 : vector<1x256xf32> to vector<16x256xf32>
    %6 = arith.addf %3, %5 : vector<16x256xf32>
    %cst_6 = arith.constant 0.000000e+00 : f32
    %7 = vector.broadcast %cst_6 : f32 to vector<16x256xf32>
    %8 = arith.maximumf %6, %7 : vector<16x256xf32>
    %c0_7 = arith.constant 0 : index
    %c0_8 = arith.constant 0 : index
    %9 = vector.load %arg4[%c0_7, %c0_8] : memref<256x128xf32, #tpu.memory_space<vmem>>, vector<256x128xf32>
    %cst_9 = arith.constant dense<0.000000e+00> : vector<16x128xf32>
    %10 = tpu.matmul %8, %9, %cst_9 {dimension_numbers = #tpu.dot_dimension_numbers<[1], [0], [0], [1], [0, 0, 1, 1], [], []>} : vector<16x256xf32>, vector<256x128xf32>, vector<16x128xf32> -> vector<16x128xf32>
    %c0_10 = arith.constant 0 : index
    %c0_11 = arith.constant 0 : index
    %11 = vector.load %arg5[%c0_10, %c0_11] : memref<1x128xf32, #tpu.memory_space<vmem>>, vector<1x128xf32>
    %12 = vector.broadcast %11 : vector<1x128xf32> to vector<16x128xf32>
    %13 = arith.addf %10, %12 : vector<16x128xf32>
    %14 = arith.addf %13, %1 : vector<16x128xf32>
    %cst_12 = arith.constant dense<0.000000e+00> : vector<16xf32>
    %15 = vector.multi_reduction <add>, %14, %cst_12 [1] : vector<16x128xf32> to vector<16xf32>
    %16 = vector.shape_cast %15 : vector<16xf32> to vector<16x1xf32>
    %cst_13 = arith.constant 1.280000e+02 : f32
    %17 = vector.broadcast %cst_13 : f32 to vector<16x1xf32>
    %18 = arith.divf %16, %17 : vector<16x1xf32>
    %19 = vector.broadcast %18 : vector<16x1xf32> to vector<16x128xf32>
    %20 = arith.subf %14, %19 : vector<16x128xf32>
    %21 = arith.mulf %20, %20 : vector<16x128xf32>
    %cst_14 = arith.constant dense<0.000000e+00> : vector<16xf32>
    %22 = vector.multi_reduction <add>, %21, %cst_14 [1] : vector<16x128xf32> to vector<16xf32>
    %23 = vector.shape_cast %22 : vector<16xf32> to vector<16x1xf32>
    %cst_15 = arith.constant 1.280000e+02 : f32
    %24 = vector.broadcast %cst_15 : f32 to vector<16x1xf32>
    %25 = arith.divf %23, %24 : vector<16x1xf32>
    %26 = vector.broadcast %18 : vector<16x1xf32> to vector<16x128xf32>
    %27 = arith.subf %14, %26 : vector<16x128xf32>
    %cst_16 = arith.constant 9.99999974E-6 : f32
    %28 = vector.broadcast %cst_16 : f32 to vector<16x1xf32>
    %29 = arith.addf %25, %28 : vector<16x1xf32>
    %30 = math.rsqrt %29 : vector<16x1xf32>
    %31 = vector.broadcast %30 : vector<16x1xf32> to vector<16x128xf32>
    %32 = arith.mulf %27, %31 : vector<16x128xf32>
    %c0_17 = arith.constant 0 : index
    %c0_18 = arith.constant 0 : index
    %33 = vector.load %arg6[%c0_17, %c0_18] : memref<1x128xf32, #tpu.memory_space<vmem>>, vector<1x128xf32>
    %34 = vector.broadcast %33 : vector<1x128xf32> to vector<16x128xf32>
    %35 = arith.mulf %32, %34 : vector<16x128xf32>
    %c0_19 = arith.constant 0 : index
    %c0_20 = arith.constant 0 : index
    %36 = vector.load %arg7[%c0_19, %c0_20] : memref<1x128xf32, #tpu.memory_space<vmem>>, vector<1x128xf32>
    %37 = vector.broadcast %36 : vector<1x128xf32> to vector<16x128xf32>
    %38 = arith.addf %35, %37 : vector<16x128xf32>
    %39 = vector.shape_cast %38 : vector<16x128xf32> to vector<2x8x128xf32>
    %c0_21 = arith.constant 0 : index
    %c0_22 = arith.constant 0 : index
    %c0_23 = arith.constant 0 : index
    %40 = vector.load %arg8[%c0_21, %c0_22, %c0_23] : memref<2x8x128xf32, #tpu.memory_space<vmem>>, vector<2x8x128xf32>
    tpu.vector_store %arg8[%c0_21, %c0_22, %c0_23], %39 {strides = array<i32>} : memref<2x8x128xf32, #tpu.memory_space<vmem>>, vector<2x8x128xf32>,
    return
  }
  func.func @transform_0(%arg0: i32) -> (i32, i32, i32) {
    %c0_i32 = arith.constant 0 : i32
    %c0_i32_0 = arith.constant 0 : i32
    %c0_i32_1 = arith.constant 0 : i32
    return %arg0, %c0_i32, %c0_i32_0 : i32, i32, i32
  }
  func.func @transform_1(%arg0: i32) -> (i32, i32) {
    %c0_i32 = arith.constant 0 : i32
    %c0_i32_0 = arith.constant 0 : i32
    %c0_i32_1 = arith.constant 0 : i32
    return %c0_i32, %c0_i32_0 : i32, i32
  }
  func.func @transform_2(%arg0: i32) -> (i32, i32) {
    %c0_i32 = arith.constant 0 : i32
    %c0_i32_0 = arith.constant 0 : i32
    %c0_i32_1 = arith.constant 0 : i32
    return %c0_i32, %c0_i32_0 : i32, i32
  }
  func.func @transform_3(%arg0: i32) -> (i32, i32) {
    %c0_i32 = arith.constant 0 : i32
    %c0_i32_0 = arith.constant 0 : i32
    %c0_i32_1 = arith.constant 0 : i32
    return %c0_i32, %c0_i32_0 : i32, i32
  }
  func.func @transform_4(%arg0: i32) -> (i32, i32) {
    %c0_i32 = arith.constant 0 : i32
    %c0_i32_0 = arith.constant 0 : i32
    %c0_i32_1 = arith.constant 0 : i32
    return %c0_i32, %c0_i32_0 : i32, i32
  }
  func.func @transform_5(%arg0: i32) -> (i32, i32) {
    %c0_i32 = arith.constant 0 : i32
    %c0_i32_0 = arith.constant 0 : i32
    %c0_i32_1 = arith.constant 0 : i32
    return %c0_i32, %c0_i32_0 : i32, i32
  }
  func.func @transform_6(%arg0: i32) -> (i32, i32) {
    %c0_i32 = arith.constant 0 : i32
    %c0_i32_0 = arith.constant 0 : i32
    %c0_i32_1 = arith.constant 0 : i32
    return %c0_i32, %c0_i32_0 : i32, i32
  }
  func.func @transform_7(%arg0: i32) -> (i32, i32, i32) {
    %c0_i32 = arith.constant 0 : i32
    %c0_i32_0 = arith.constant 0 : i32
    %c0_i32_1 = arith.constant 0 : i32
    return %arg0, %c0_i32, %c0_i32_0 : i32, i32, i32
  }
}

module attributes {stable_mosaic.version = 11 : i64} {
  func.func @_ffn_ln_kernel(%arg0: i32, %arg1: memref<2x8x128xf32, #tpu.memory_space<vmem>>, %arg2: memref<128x256xf32, #tpu.memory_space<vmem>>, %arg3: memref<1x256xf32, #tpu.memory_space<vmem>>, %arg4: memref<256x128xf32, #tpu.memory_space<vmem>>, %arg5: memref<1x128xf32, #tpu.memory_space<vmem>>, %arg6: memref<1x128xf32, #tpu.memory_space<vmem>>, %arg7: memref<1x128xf32, #tpu.memory_space<vmem>>, %arg8: memref<2x8x128xf32, #tpu.memory_space<vmem>>) attributes {dimension_semantics = [#tpu.dimension_semantics<parallel>], iteration_bounds = array<i64: 1>, scalar_prefetch = 0 : i64, scratch_operands = 0 : i64, tpu.core_type = #tpu.core_type<tc>, window_params = [{transform_indices = @transform_0, window_bounds = array<i64: 2, 8, 128>}, {pipeline_mode = #tpu.pipeline_mode<synchronous>, transform_indices = @transform_1, window_bounds = array<i64: 128, 256>}, {pipeline_mode = #tpu.pipeline_mode<synchronous>, transform_indices = @transform_2, window_bounds = array<i64: 1, 256>}, {pipeline_mode = #tpu.pipeline_mode<synchronous>, transform_indices = @transform_3, window_bounds = array<i64: 256, 128>}, {pipeline_mode = #tpu.pipeline_mode<synchronous>, transform_indices = @transform_4, window_bounds = array<i64: 1, 128>}, {pipeline_mode = #tpu.pipeline_mode<synchronous>, transform_indices = @transform_5, window_bounds = array<i64: 1, 128>}, {pipeline_mode = #tpu.pipeline_mode<synchronous>, transform_indices = @transform_6, window_bounds = array<i64: 1, 128>}, {transform_indices = @transform_7, window_bounds = array<i64: 2, 8, 128>}]} {
    %c0 = arith.constant 0 : index
    %c0_0 = arith.constant 0 : index
    %c0_1 = arith.constant 0 : index
    %0 = vector.load %arg1[%c0, %c0_0, %c0_1] : memref<2x8x128xf32, #tpu.memory_space<vmem>>, vector<2x8x128xf32>
    %1 = vector.shape_cast %0 : vector<2x8x128xf32> to vector<16x128xf32>
    %c0_2 = arith.constant 0 : index
    %c0_3 = arith.constant 0 : index
    %2 = vector.load %arg2[%c0_2, %c0_3] : memref<128x256xf32, #tpu.memory_space<vmem>>, vector<128x256xf32>
    %cst = arith.constant dense<0.000000e+00> : vector<16x256xf32>
    %3 = tpu.matmul %1, %2, %cst {dimension_numbers = #tpu.dot_dimension_numbers<[1], [0], [0], [1], [0, 0, 1, 1], [], []>} : vector<16x128xf32>, vector<128x256xf32>, vector<16x256xf32> -> vector<16x256xf32>
    %c0_4 = arith.constant 0 : index
    %c0_5 = arith.constant 0 : index
    %4 = vector.load %arg3[%c0_4, %c0_5] : memref<1x256xf32, #tpu.memory_space<vmem>>, vector<1x256xf32>
    %5 = vector.broadcast %4 : vector<1x256xf32> to vector<16x256xf32>
    %6 = arith.addf %3, %5 : vector<16x256xf32>
    %cst_6 = arith.constant 0.000000e+00 : f32
    %7 = vector.broadcast %cst_6 : f32 to vector<16x256xf32>
    %8 = arith.maximumf %6, %7 : vector<16x256xf32>
    %c0_7 = arith.constant 0 : index
    %c0_8 = arith.constant 0 : index
    %9 = vector.load %arg4[%c0_7, %c0_8] : memref<256x128xf32, #tpu.memory_space<vmem>>, vector<256x128xf32>
    %cst_9 = arith.constant dense<0.000000e+00> : vector<16x128xf32>
    %10 = tpu.matmul %8, %9, %cst_9 {dimension_numbers = #tpu.dot_dimension_numbers<[1], [0], [0], [1], [0, 0, 1, 1], [], []>} : vector<16x256xf32>, vector<256x128xf32>, vector<16x128xf32> -> vector<16x128xf32>
    %c0_10 = arith.constant 0 : index
    %c0_11 = arith.constant 0 : index
    %11 = vector.load %arg5[%c0_10, %c0_11] : memref<1x128xf32, #tpu.memory_space<vmem>>, vector<1x128xf32>
    %12 = vector.broadcast %11 : vector<1x128xf32> to vector<16x128xf32>
    %13 = arith.addf %10, %12 : vector<16x128xf32>
    %14 = arith.addf %13, %1 : vector<16x128xf32>
    %cst_12 = arith.constant dense<0.000000e+00> : vector<16xf32>
    %15 = vector.multi_reduction <add>, %14, %cst_12 [1] : vector<16x128xf32> to vector<16xf32>
    %16 = vector.shape_cast %15 : vector<16xf32> to vector<16x1xf32>
    %cst_13 = arith.constant 1.280000e+02 : f32
    %17 = vector.broadcast %cst_13 : f32 to vector<16x1xf32>
    %18 = arith.divf %16, %17 : vector<16x1xf32>
    %19 = vector.broadcast %18 : vector<16x1xf32> to vector<16x128xf32>
    %20 = arith.subf %14, %19 : vector<16x128xf32>
    %21 = arith.mulf %20, %20 : vector<16x128xf32>
    %cst_14 = arith.constant dense<0.000000e+00> : vector<16xf32>
    %22 = vector.multi_reduction <add>, %21, %cst_14 [1] : vector<16x128xf32> to vector<16xf32>
    %23 = vector.shape_cast %22 : vector<16xf32> to vector<16x1xf32>
    %cst_15 = arith.constant 1.280000e+02 : f32
    %24 = vector.broadcast %cst_15 : f32 to vector<16x1xf32>
    %25 = arith.divf %23, %24 : vector<16x1xf32>
    %26 = vector.broadcast %18 : vector<16x1xf32> to vector<16x128xf32>
    %27 = arith.subf %14, %26 : vector<16x128xf32>
    %cst_16 = arith.constant 9.99999974E-6 : f32
    %28 = vector.broadcast %cst_16 : f32 to vector<16x1xf32>
    %29 = arith.addf %25, %28 : vector<16x1xf32>
    %30 = math.rsqrt %29 : vector<16x1xf32>
    %31 = vector.broadcast %30 : vector<16x1xf32> to vector<16x128xf32>
    %32 = arith.mulf %27, %31 : vector<16x128xf32>
    %c0_17 = arith.constant 0 : index
    %c0_18 = arith.constant 0 : index
    %33 = vector.load %arg6[%c0_17, %c0_18] : memref<1x128xf32, #tpu.memory_space<vmem>>, vector<1x128xf32>
    %34 = vector.broadcast %33 : vector<1x128xf32> to vector<16x128xf32>
    %35 = arith.mulf %32, %34 : vector<16x128xf32>
    %c0_19 = arith.constant 0 : index
    %c0_20 = arith.constant 0 : index
    %36 = vector.load %arg7[%c0_19, %c0_20] : memref<1x128xf32, #tpu.memory_space<vmem>>, vector<1x128xf32>
    %37 = vector.broadcast %36 : vector<1x128xf32> to vector<16x128xf32>
    %38 = arith.addf %35, %37 : vector<16x128xf32>
    %39 = vector.shape_cast %38 : vector<16x128xf32> to vector<2x8x128xf32>
    %c0_21 = arith.constant 0 : index
    %c0_22 = arith.constant 0 : index
    %c0_23 = arith.constant 0 : index
    %40 = vector.load %arg8[%c0_21, %c0_22, %c0_23] : memref<2x8x128xf32, #tpu.memory_space<vmem>>, vector<2x8x128xf32>
    tpu.vector_store %arg8[%c0_21, %c0_22, %c0_23], %39 {strides = array<i32>} : memref<2x8x128xf32, #tpu.memory_space<vmem>>, vector<2x8x128xf32>,
    return
  }
  func.func @transform_0(%arg0: i32) -> (i32, i32, i32) {
    %c0_i32 = arith.constant 0 : i32
    %c0_i32_0 = arith.constant 0 : i32
    %c0_i32_1 = arith.constant 0 : i32
    return %arg0, %c0_i32, %c0_i32_0 : i32, i32, i32
  }
  func.func @transform_1(%arg0: i32) -> (i32, i32) {
    %c0_i32 = arith.constant 0 : i32
    %c0_i32_0 = arith.constant 0 : i32
    %c0_i32_1 = arith.constant 0 : i32
    return %c0_i32, %c0_i32_0 : i32, i32
  }
  func.func @transform_2(%arg0: i32) -> (i32, i32) {
    %c0_i32 = arith.constant 0 : i32
    %c0_i32_0 = arith.constant 0 : i32
    %c0_i32_1 = arith.constant 0 : i32
    return %c0_i32, %c0_i32_0 : i32, i32
  }
  func.func @transform_3(%arg0: i32) -> (i32, i32) {
    %c0_i32 = arith.constant 0 : i32
    %c0_i32_0 = arith.constant 0 : i32
    %c0_i32_1 = arith.constant 0 : i32
    return %c0_i32, %c0_i32_0 : i32, i32
  }
  func.func @transform_4(%arg0: i32) -> (i32, i32) {
    %c0_i32 = arith.constant 0 : i32
    %c0_i32_0 = arith.constant 0 : i32
    %c0_i32_1 = arith.constant 0 : i32
    return %c0_i32, %c0_i32_0 : i32, i32
  }
  func.func @transform_5(%arg0: i32) -> (i32, i32) {
    %c0_i32 = arith.constant 0 : i32
    %c0_i32_0 = arith.constant 0 : i32
    %c0_i32_1 = arith.constant 0 : i32
    return %c0_i32, %c0_i32_0 : i32, i32
  }
  func.func @transform_6(%arg0: i32) -> (i32, i32) {
    %c0_i32 = arith.constant 0 : i32
    %c0_i32_0 = arith.constant 0 : i32
    %c0_i32_1 = arith.constant 0 : i32
    return %c0_i32, %c0_i32_0 : i32, i32
  }
  func.func @transform_7(%arg0: i32) -> (i32, i32, i32) {
    %c0_i32 = arith.constant 0 : i32
    %c0_i32_0 = arith.constant 0 : i32
    %c0_i32_1 = arith.constant 0 : i32
    return %arg0, %c0_i32, %c0_i32_0 : i32, i32, i32
  }
}

</mosaic_0001>

<llo_original>
// kernel: decoder_forward.8
$region0: #{decoder_forward.8}
  #allocation0 [shape = 'u32[]', space=smem, size = 0x4, offset = 0x4, fixed_abs, tag = 'smem constant byte address 0x4 - core index']
  #allocation1 [shape = 'u32[144,128]{1,0:T(1,128)}', space=vmem, size = 0x12000, scoped, tag = 'internal scratch']
  %s0 = inlined_call_operand.vmem [shape: f32[2,8,128], index: 0, kind: input, shape index: {}]
  %s1 = inlined_call_operand.vmem [shape: f32[128,256], index: 1, kind: input, shape index: {}]
  %s2 = inlined_call_operand.vmem [shape: f32[1,256], index: 2, kind: input, shape index: {}]
  %s3 = inlined_call_operand.vmem [shape: f32[256,128], index: 3, kind: input, shape index: {}]
  %s4 = inlined_call_operand.vmem [shape: f32[1,128], index: 4, kind: input, shape index: {}]
  %s5 = inlined_call_operand.vmem [shape: f32[1,128], index: 5, kind: input, shape index: {}]
  %s6 = inlined_call_operand.vmem [shape: f32[1,128], index: 6, kind: input, shape index: {}]
  %s7 = inlined_call_operand.vmem [shape: f32[2,8,128], index: 7, kind: output, shape index: {}]
  %s8 = sld [smem:[#allocation0]]
  $region38: #{decoder_forward.8} parent=0
    _
  %s10 = ssub.s32 1, %s8
  %s11 = scalar_select 0, %s10, %s8
  // Predicated region
  $region2: #{decoder_forward.8} parent=0 // pred_check
    _
  $region3: #{decoder_forward.8} parent=0 // pred_check_branch
    %13 = sbr.rel (0) target = $region5
  $region4: #{decoder_forward.8} parent=0 // pred_region
    _
  $region5: #{decoder_forward.8} parent=0 // pred_fallthru
    _
  // Predicated region
  $region6: #{decoder_forward.8} parent=0 // pred_check
    _
  $region7: #{decoder_forward.8} parent=0 // pred_check_branch
    %15 = sbr.rel (0) target = $region9
  $region8: #{decoder_forward.8} parent=0 // pred_region
    _
  $region9: #{decoder_forward.8} parent=0 // pred_fallthru
    _
  // Predicated region
  $region10: #{decoder_forward.8} parent=0 // pred_check
    _
  $region11: #{decoder_forward.8} parent=0 // pred_check_branch
    %17 = sbr.rel (0) target = $region13
  $region12: #{decoder_forward.8} parent=0 // pred_region
    _
  $region13: #{decoder_forward.8} parent=0 // pred_fallthru
    _
  // Predicated region
  $region14: #{decoder_forward.8} parent=0 // pred_check
    _
  $region15: #{decoder_forward.8} parent=0 // pred_check_branch
    %19 = sbr.rel (0) target = $region17
  $region16: #{decoder_forward.8} parent=0 // pred_region
    _
  $region17: #{decoder_forward.8} parent=0 // pred_fallthru
    _
  // Predicated region
  $region18: #{decoder_forward.8} parent=0 // pred_check
    _
  $region19: #{decoder_forward.8} parent=0 // pred_check_branch
    %21 = sbr.rel (0) target = $region21
  $region20: #{decoder_forward.8} parent=0 // pred_region
    _
  $region21: #{decoder_forward.8} parent=0 // pred_fallthru
    _
  // Predicated region
  $region22: #{decoder_forward.8} parent=0 // pred_check
    _
  $region23: #{decoder_forward.8} parent=0 // pred_check_branch
    %23 = sbr.rel (0) target = $region25
  $region24: #{decoder_forward.8} parent=0 // pred_region
    _
  $region25: #{decoder_forward.8} parent=0 // pred_fallthru
    _
  // Predicated region
  $region26: #{decoder_forward.8} parent=0 // pred_check
    _
  $region27: #{decoder_forward.8} parent=0 // pred_check_branch
    %25 = sbr.rel (0) target = $region29
  $region28: #{decoder_forward.8} parent=0 // pred_region
    _
  $region29: #{decoder_forward.8} parent=0 // pred_fallthru
    _
  %v26 = vld [vmem:[%s0] sm:$0xff]
  %v27 = vld [vmem:[%s0 + $0x8] sm:$0xff]
  %v28 = vld [vmem:[%s1] sm:$0xff]
  %v29 = vld [vmem:[%s1 + $0x8] sm:$0xff]
  %v30 = vld [vmem:[%s1 + $0x10] sm:$0xff]
  %v31 = vld [vmem:[%s1 + $0x18] sm:$0xff]
  %v32 = vld [vmem:[%s1 + $0x20] sm:$0xff]
  %v33 = vld [vmem:[%s1 + $0x28] sm:$0xff]
  %v34 = vld [vmem:[%s1 + $0x30] sm:$0xff]
  %v35 = vld [vmem:[%s1 + $0x38] sm:$0xff]
  %v36 = vld [vmem:[%s1 + $0x40] sm:$0xff]
  %v37 = vld [vmem:[%s1 + $0x48] sm:$0xff]
  %v38 = vld [vmem:[%s1 + $0x50] sm:$0xff]
  %v39 = vld [vmem:[%s1 + $0x58] sm:$0xff]
  %v40 = vld [vmem:[%s1 + $0x60] sm:$0xff]
  %v41 = vld [vmem:[%s1 + $0x68] sm:$0xff]
  %v42 = vld [vmem:[%s1 + $0x70] sm:$0xff]
  %v43 = vld [vmem:[%s1 + $0x78] sm:$0xff]
  %v44 = vld [vmem:[%s1 + $0x80] sm:$0xff]
  %v45 = vld [vmem:[%s1 + $0x88] sm:$0xff]
  %v46 = vld [vmem:[%s1 + $0x90] sm:$0xff]
  %v47 = vld [vmem:[%s1 + $0x98] sm:$0xff]
  %v48 = vld [vmem:[%s1 + $0xa0] sm:$0xff]
  %v49 = vld [vmem:[%s1 + $0xa8] sm:$0xff]
  %v50 = vld [vmem:[%s1 + $0xb0] sm:$0xff]
  %v51 = vld [vmem:[%s1 + $0xb8] sm:$0xff]
  %v52 = vld [vmem:[%s1 + $0xc0] sm:$0xff]
  %v53 = vld [vmem:[%s1 + $0xc8] sm:$0xff]
  %v54 = vld [vmem:[%s1 + $0xd0] sm:$0xff]
  %v55 = vld [vmem:[%s1 + $0xd8] sm:$0xff]
  %v56 = vld [vmem:[%s1 + $0xe0] sm:$0xff]
  %v57 = vld [vmem:[%s1 + $0xe8] sm:$0xff]
  %v58 = vld [vmem:[%s1 + $0xf0] sm:$0xff]
  %v59 = vld [vmem:[%s1 + $0xf8] sm:$0xff]
  %v60 = vld [vmem:[%s2] sm:$0x3]
  %v62 = vlaneseq
  %v63 = vshrl.u32 %v62, 7
  %v64 = vsub.s32 0, %v63
  %v65 = vrot.slane %v60, %v64
  %v66 = vlaneseq
  %v67 = vshrl.u32 %v66, 7
  %v68 = vsub.s32 1, %v67
  %v69 = vrot.slane %v60, %v68
  %72 = vmatprep.subr.mxu0 %v59
  %73 = vmatpush1.msra.mxu0 %v58
  %74 = vmatprep.subr.mxu0 %v57
  %75 = vmatpush1.msra.mxu0 %v56
  %76 = vmatprep.subr.mxu0 %v55
  %77 = vmatpush1.msra.mxu0 %v54
  %78 = vmatprep.subr.mxu0 %v53
  %79 = vmatpush1.msra.mxu0 %v52
  %80 = vmatprep.subr.mxu0 %v51
  %81 = vmatpush1.msra.mxu0 %v50
  %82 = vmatprep.subr.mxu0 %v49
  %83 = vmatpush1.msra.mxu0 %v48
  %84 = vmatprep.subr.mxu0 %v47
  %85 = vmatpush1.msra.mxu0 %v46
  %86 = vmatprep.subr.mxu0 %v45
  %87 = vmatpush1.msra.mxu0 %v44
  %88 = vmatprep.subr.mxu0 %v43
  %89 = vmatpush1.msra.mxu0 %v42
  %90 = vmatprep.subr.mxu0 %v41
  %91 = vmatpush1.msra.mxu0 %v40
  %92 = vmatprep.subr.mxu0 %v39
  %93 = vmatpush1.msra.mxu0 %v38
  %94 = vmatprep.subr.mxu0 %v37
  %95 = vmatpush1.msra.mxu0 %v36
  %96 = vmatprep.subr.mxu0 %v35
  %97 = vmatpush1.msra.mxu0 %v34
  %98 = vmatprep.subr.mxu0 %v33
  %99 = vmatpush1.msra.mxu0 %v32
  %100 = vmatprep.subr.mxu0 %v31
  %101 = vmatpush1.msra.mxu0 %v30
  %102 = vmatprep.subr.mxu0 %v29
  %103 = vmatpush1.msra.mxu0 %v28
  %104 = vmatprep.subr.mxu0 0.0
  %105 = vmatpush2.msra.mxu0 0.0
  %106 = vmatprep.subr.mxu0 0.0
  %107 = vmatpush2.msra.mxu0 0.0
  %108 = vmatprep.subr.mxu0 0.0
  %109 = vmatpush2.msra.mxu0 0.0
  %110 = vmatprep.subr.mxu0 0.0
  %111 = vmatpush2.msra.mxu0 0.0
  %112 = vmatprep.subr.mxu0 0.0
  %113 = vmatpush2.msra.mxu0 0.0
  %114 = vmatprep.subr.mxu0 0.0
  %115 = vmatpush2.msra.mxu0 0.0
  %116 = vmatprep.subr.mxu0 0.0
  %117 = vmatpush2.msra.mxu0 0.0
  %118 = vmatprep.subr.mxu0 0.0
  %119 = vmatpush2.msra.mxu0 0.0
  %120 = vmatprep.subr.mxu0 0.0
  %121 = vmatpush2.msra.mxu0 0.0
  %122 = vmatprep.subr.mxu0 0.0
  %123 = vmatpush2.msra.mxu0 0.0
  %124 = vmatprep.subr.mxu0 0.0
  %125 = vmatpush2.msra.mxu0 0.0
  %126 = vmatprep.subr.mxu0 0.0
  %127 = vmatpush2.msra.mxu0 0.0
  %128 = vmatprep.subr.mxu0 0.0
  %129 = vmatpush2.msra.mxu0 0.0
  %130 = vmatprep.subr.mxu0 0.0
  %131 = vmatpush2.msra.mxu0 0.0
  %132 = vmatprep.subr.mxu0 0.0
  %133 = vmatpush2.msra.mxu0 0.0
  %134 = vmatprep.subr.mxu0 0.0
  %135 = vmatpush2.msra.mxu0 0.0
  %136 = vmatprep.mubr.f32.mxu0 0.0
  %137 = vmatmul.mubr.f32.gmra.mxu0 %v26
  %v138 = vpop.f32.mrf.mxu0
  %v139 = vadd.f32 %v65, %v138
  %v140 = vpop.f32.mrf.mxu0
  %v141 = vadd.f32 %v69, %v140
  %142 = vmatprep.mubr.f32.mxu0 0.0
  %143 = vmatmul.mubr.f32.gmra.mxu0 %v27
  %v144 = vpop.f32.mrf.mxu0
  %v145 = vadd.f32 %v65, %v144
  %v146 = vpop.f32.mrf.mxu0
  %v147 = vadd.f32 %v69, %v146
  %148 = vdwg.mxu0
  %v149 = vmax.f32 %v139, 0.0
  %v150 = vmax.f32 %v141, 0.0
  %v151 = vmax.f32 %v145, 0.0
  %v152 = vmax.f32 %v147, 0.0
  %v153 = vld [vmem:[%s3] sm:$0xff]
  %v154 = vld [vmem:[%s3 + $0x8] sm:$0xff]
  %v155 = vld [vmem:[%s3 + $0x10] sm:$0xff]
  %v156 = vld [vmem:[%s3 + $0x18] sm:$0xff]
  %v157 = vld [vmem:[%s3 + $0x20] sm:$0xff]
  %v158 = vld [vmem:[%s3 + $0x28] sm:$0xff]
  %v159 = vld [vmem:[%s3 + $0x30] sm:$0xff]
  %v160 = vld [vmem:[%s3 + $0x38] sm:$0xff]
  %v161 = vld [vmem:[%s3 + $0x40] sm:$0xff]
  %v162 = vld [vmem:[%s3 + $0x48] sm:$0xff]
  %v163 = vld [vmem:[%s3 + $0x50] sm:$0xff]
  %v164 = vld [vmem:[%s3 + $0x58] sm:$0xff]
  %v165 = vld [vmem:[%s3 + $0x60] sm:$0xff]
  %v166 = vld [vmem:[%s3 + $0x68] sm:$0xff]
  %v167 = vld [vmem:[%s3 + $0x70] sm:$0xff]
  %v168 = vld [vmem:[%s3 + $0x78] sm:$0xff]
  %v169 = vld [vmem:[%s3 + $0x80] sm:$0xff]
  %v170 = vld [vmem:[%s3 + $0x88] sm:$0xff]
  %v171 = vld [vmem:[%s3 + $0x90] sm:$0xff]
  %v172 = vld [vmem:[%s3 + $0x98] sm:$0xff]
  %v173 = vld [vmem:[%s3 + $0xa0] sm:$0xff]
  %v174 = vld [vmem:[%s3 + $0xa8] sm:$0xff]
  %v175 = vld [vmem:[%s3 + $0xb0] sm:$0xff]
  %v176 = vld [vmem:[%s3 + $0xb8] sm:$0xff]
  %v177 = vld [vmem:[%s3 + $0xc0] sm:$0xff]
  %v178 = vld [vmem:[%s3 + $0xc8] sm:$0xff]
  %v179 = vld [vmem:[%s3 + $0xd0] sm:$0xff]
  %v180 = vld [vmem:[%s3 + $0xd8] sm:$0xff]
  %v181 = vld [vmem:[%s3 + $0xe0] sm:$0xff]
  %v182 = vld [vmem:[%s3 + $0xe8] sm:$0xff]
  %v183 = vld [vmem:[%s3 + $0xf0] sm:$0xff]
  %v184 = vld [vmem:[%s3 + $0xf8] sm:$0xff]
  %v185 = vld [vmem:[%s4] sm:$0x1]
  %v187 = vlaneseq
  %v188 = vshrl.u32 %v187, 7
  %v189 = vsub.s32 0, %v188
  %v190 = vrot.slane %v185, %v189
  %192 = vmatprep.subr.mxu0 0.0
  %193 = vmatpush1.msra.mxu0 %v168
  %194 = vmatprep.subr.mxu0 0.0
  %195 = vmatpush1.msra.mxu0 %v167
  %196 = vmatprep.subr.mxu0 0.0
  %197 = vmatpush1.msra.mxu0 %v166
  %198 = vmatprep.subr.mxu0 0.0
  %199 = vmatpush1.msra.mxu0 %v165
  %200 = vmatprep.subr.mxu0 0.0
  %201 = vmatpush1.msra.mxu0 %v164
  %202 = vmatprep.subr.mxu0 0.0
  %203 = vmatpush1.msra.mxu0 %v163
  %204 = vmatprep.subr.mxu0 0.0
  %205 = vmatpush1.msra.mxu0 %v162
  %206 = vmatprep.subr.mxu0 0.0
  %207 = vmatpush1.msra.mxu0 %v161
  %208 = vmatprep.subr.mxu0 0.0
  %209 = vmatpush1.msra.mxu0 %v160
  %210 = vmatprep.subr.mxu0 0.0
  %211 = vmatpush1.msra.mxu0 %v159
  %212 = vmatprep.subr.mxu0 0.0
  %213 = vmatpush1.msra.mxu0 %v158
  %214 = vmatprep.subr.mxu0 0.0
  %215 = vmatpush1.msra.mxu0 %v157
  %216 = vmatprep.subr.mxu0 0.0
  %217 = vmatpush1.msra.mxu0 %v156
  %218 = vmatprep.subr.mxu0 0.0
  %219 = vmatpush1.msra.mxu0 %v155
  %220 = vmatprep.subr.mxu0 0.0
  %221 = vmatpush1.msra.mxu0 %v154
  %222 = vmatprep.subr.mxu0 0.0
  %223 = vmatpush1.msra.mxu0 %v153
  %224 = vmatprep.subr.mxu0 0.0
  %225 = vmatpush2.msra.mxu0 %v184
  %226 = vmatprep.subr.mxu0 0.0
  %227 = vmatpush2.msra.mxu0 %v183
  %228 = vmatprep.subr.mxu0 0.0
  %229 = vmatpush2.msra.mxu0 %v182
  %230 = vmatprep.subr.mxu0 0.0
  %231 = vmatpush2.msra.mxu0 %v181
  %232 = vmatprep.subr.mxu0 0.0
  %233 = vmatpush2.msra.mxu0 %v180
  %234 = vmatprep.subr.mxu0 0.0
  %235 = vmatpush2.msra.mxu0 %v179
  %236 = vmatprep.subr.mxu0 0.0
  %237 = vmatpush2.msra.mxu0 %v178
  %238 = vmatprep.subr.mxu0 0.0
  %239 = vmatpush2.msra.mxu0 %v177
  %240 = vmatprep.subr.mxu0 0.0
  %241 = vmatpush2.msra.mxu0 %v176
  %242 = vmatprep.subr.mxu0 0.0
  %243 = vmatpush2.msra.mxu0 %v175
  %244 = vmatprep.subr.mxu0 0.0
  %245 = vmatpush2.msra.mxu0 %v174
  %246 = vmatprep.subr.mxu0 0.0
  %247 = vmatpush2.msra.mxu0 %v173
  %248 = vmatprep.subr.mxu0 0.0
  %249 = vmatpush2.msra.mxu0 %v172
  %250 = vmatprep.subr.mxu0 0.0
  %251 = vmatpush2.msra.mxu0 %v171
  %252 = vmatprep.subr.mxu0 0.0
  %253 = vmatpush2.msra.mxu0 %v170
  %254 = vmatprep.subr.mxu0 0.0
  %255 = vmatpush2.msra.mxu0 %v169
  %256 = vmatprep.mubr.f32.mxu0 %v150
  %257 = vmatmul.mubr.f32.gmra.mxu0 %v149
  %v258 = vpop.f32.mrf.mxu0
  %v259 = vadd.f32 %v190, %v258
  %v260 = vpop.f32.mrf.mxu0
  %261 = vmatprep.mubr.f32.mxu0 %v152
  %262 = vmatmul.mubr.f32.gmra.mxu0 %v151
  %v263 = vpop.f32.mrf.mxu0
  %v264 = vadd.f32 %v190, %v263
  %v265 = vpop.f32.mrf.mxu0
  %266 = vdwg.mxu0
  %v267 = vadd.f32 %v259, %v26
  %v268 = vadd.f32 %v264, %v27
  %269 = vadd.xlane.f32.xlu0 %v267
  %v270 = vpop.xlane.xlu0 %269
  %271 = vadd.xlane.f32.xlu0 %v268
  %v272 = vpop.xlane.xlu0 %271
  %v273 = vrcp.pop 128.0
  %v274 = vmul.f32 %v270, %v273
  %v275 = vmul.f32 %v272, %v273
  %v276 = vsub.f32 %v267, %v274
  %v277 = vsub.f32 %v268, %v275
  %v278 = vmul.f32 %v276, %v276
  %v279 = vmul.f32 %v277, %v277
  %280 = vadd.xlane.f32.xlu0 %v278
  %v281 = vpop.xlane.xlu0 %280
  %282 = vadd.xlane.f32.xlu0 %v279
  %v283 = vpop.xlane.xlu0 %282
  %v284 = vmul.f32 %v281, %v273
  %v285 = vmul.f32 %v283, %v273
  %v286 = vadd.f32 %v284, 1e-05
  %v287 = vadd.f32 %v285, 1e-05
  %v288 = vrsqrt.pop %v286
  %v289 = vrsqrt.pop %v287
  %v290 = vmul.f32 %v276, %v288
  %v291 = vmul.f32 %v277, %v289
  %v292 = vld [vmem:[%s5] sm:$0x1]
  %v294 = vlaneseq
  %v295 = vshrl.u32 %v294, 7
  %v296 = vsub.s32 0, %v295
  %v297 = vrot.slane %v292, %v296
  %v299 = vmul.f32 %v290, %v297
  %v300 = vmul.f32 %v291, %v297
  %v301 = vld [vmem:[%s6] sm:$0x1]
  %v303 = vlaneseq
  %v304 = vshrl.u32 %v303, 7
  %v305 = vsub.s32 0, %v304
  %v306 = vrot.slane %v301, %v305
  %v308 = vadd.f32 %v299, %v306
  %v309 = vadd.f32 %v300, %v306
  %310 = vst [vmem:[%s7] sm:$0xff] %v308
  %311 = vst [vmem:[%s7 + $0x8] sm:$0xff] %v309
  // Predicated region
  $region30: #{decoder_forward.8} parent=0 // pred_check
    _
  $region31: #{decoder_forward.8} parent=0 // pred_check_branch
    %313 = sbr.rel (0) target = $region33
  $region32: #{decoder_forward.8} parent=0 // pred_region
    _
  $region33: #{decoder_forward.8} parent=0 // pred_fallthru
    _
  // Predicated region
  $region34: #{decoder_forward.8} parent=0 // pred_check
    _
  $region35: #{decoder_forward.8} parent=0 // pred_check_branch
    %315 = sbr.rel (0) target = $region37
  $region36: #{decoder_forward.8} parent=0 // pred_region
    _
  $region37: #{decoder_forward.8} parent=0 // pred_fallthru
    _

// kernel: decoder_forward.11
$region0: #{decoder_forward.11}
  #allocation0 [shape = 'u32[]', space=smem, size = 0x4, offset = 0x4, fixed_abs, tag = 'smem constant byte address 0x4 - core index']
  #allocation1 [shape = 'u32[144,128]{1,0:T(1,128)}', space=vmem, size = 0x12000, scoped, tag = 'internal scratch']
  %s0 = inlined_call_operand.vmem [shape: f32[2,8,128], index: 0, kind: input, shape index: {}]
  %s1 = inlined_call_operand.vmem [shape: f32[128,256], index: 1, kind: input, shape index: {}]
  %s2 = inlined_call_operand.vmem [shape: f32[1,256], index: 2, kind: input, shape index: {}]
  %s3 = inlined_call_operand.vmem [shape: f32[256,128], index: 3, kind: input, shape index: {}]
  %s4 = inlined_call_operand.vmem [shape: f32[1,128], index: 4, kind: input, shape index: {}]
  %s5 = inlined_call_operand.vmem [shape: f32[1,128], index: 5, kind: input, shape index: {}]
  %s6 = inlined_call_operand.vmem [shape: f32[1,128], index: 6, kind: input, shape index: {}]
  %s7 = inlined_call_operand.hbm [shape: f32[2,8,128], index: 7, kind: output, shape index: {}]
  %s8 = sld [smem:[#allocation0]]
  $region38: #{decoder_forward.11} parent=0
    _
  %s10 = ssub.s32 1, %s8
  %s11 = scalar_select 0, %s10, %s8
  $region1: #{decoder_forward.11} parent=0
    #allocation2 [shape = 'u8[8192]{0}', space=vmem, size = 0x2000, scoped, tag = 'output window, operand 0, single buffered']
    #allocation3 [shape = 's32[1]{0}', space=sflag, size = 0x4, scoped, tag = 'scoped memory for decoder_forward.11']
    %12 = vsyncpa [#allocation3], 0
    // Predicated region
    $region2: #{decoder_forward.11} parent=1 // pred_check
      _
    $region3: #{decoder_forward.11} parent=1 // pred_check_branch
      %14 = sbr.rel (0) target = $region5
    $region4: #{decoder_forward.11} parent=1 // pred_region
      _
    $region5: #{decoder_forward.11} parent=1 // pred_fallthru
      _
    // Predicated region
    $region6: #{decoder_forward.11} parent=1 // pred_check
      _
    $region7: #{decoder_forward.11} parent=1 // pred_check_branch
      %16 = sbr.rel (0) target = $region9
    $region8: #{decoder_forward.11} parent=1 // pred_region
      _
    $region9: #{decoder_forward.11} parent=1 // pred_fallthru
      _
    // Predicated region
    $region10: #{decoder_forward.11} parent=1 // pred_check
      _
    $region11: #{decoder_forward.11} parent=1 // pred_check_branch
      %18 = sbr.rel (0) target = $region13
    $region12: #{decoder_forward.11} parent=1 // pred_region
      _
    $region13: #{decoder_forward.11} parent=1 // pred_fallthru
      _
    // Predicated region
    $region14: #{decoder_forward.11} parent=1 // pred_check
      _
    $region15: #{decoder_forward.11} parent=1 // pred_check_branch
      %20 = sbr.rel (0) target = $region17
    $region16: #{decoder_forward.11} parent=1 // pred_region
      _
    $region17: #{decoder_forward.11} parent=1 // pred_fallthru
      _
    // Predicated region
    $region18: #{decoder_forward.11} parent=1 // pred_check
      _
    $region19: #{decoder_forward.11} parent=1 // pred_check_branch
      %22 = sbr.rel (0) target = $region21
    $region20: #{decoder_forward.11} parent=1 // pred_region
      _
    $region21: #{decoder_forward.11} parent=1 // pred_fallthru
      _
    // Predicated region
    $region22: #{decoder_forward.11} parent=1 // pred_check
      _
    $region23: #{decoder_forward.11} parent=1 // pred_check_branch
      %24 = sbr.rel (0) target = $region25
    $region24: #{decoder_forward.11} parent=1 // pred_region
      _
    $region25: #{decoder_forward.11} parent=1 // pred_fallthru
      _
    // Predicated region
    $region26: #{decoder_forward.11} parent=1 // pred_check
      _
    $region27: #{decoder_forward.11} parent=1 // pred_check_branch
      %26 = sbr.rel (0) target = $region29
    $region28: #{decoder_forward.11} parent=1 // pred_region
      _
    $region29: #{decoder_forward.11} parent=1 // pred_fallthru
      _
    %v27 = vld [vmem:[%s0] sm:$0xff]
    %v28 = vld [vmem:[%s0 + $0x8] sm:$0xff]
    %v29 = vld [vmem:[%s1] sm:$0xff]
    %v30 = vld [vmem:[%s1 + $0x8] sm:$0xff]
    %v31 = vld [vmem:[%s1 + $0x10] sm:$0xff]
    %v32 = vld [vmem:[%s1 + $0x18] sm:$0xff]
    %v33 = vld [vmem:[%s1 + $0x20] sm:$0xff]
    %v34 = vld [vmem:[%s1 + $0x28] sm:$0xff]
    %v35 = vld [vmem:[%s1 + $0x30] sm:$0xff]
    %v36 = vld [vmem:[%s1 + $0x38] sm:$0xff]
    %v37 = vld [vmem:[%s1 + $0x40] sm:$0xff]
    %v38 = vld [vmem:[%s1 + $0x48] sm:$0xff]
    %v39 = vld [vmem:[%s1 + $0x50] sm:$0xff]
    %v40 = vld [vmem:[%s1 + $0x58] sm:$0xff]
    %v41 = vld [vmem:[%s1 + $0x60] sm:$0xff]
    %v42 = vld [vmem:[%s1 + $0x68] sm:$0xff]
    %v43 = vld [vmem:[%s1 + $0x70] sm:$0xff]
    %v44 = vld [vmem:[%s1 + $0x78] sm:$0xff]
    %v45 = vld [vmem:[%s1 + $0x80] sm:$0xff]
    %v46 = vld [vmem:[%s1 + $0x88] sm:$0xff]
    %v47 = vld [vmem:[%s1 + $0x90] sm:$0xff]
    %v48 = vld [vmem:[%s1 + $0x98] sm:$0xff]
    %v49 = vld [vmem:[%s1 + $0xa0] sm:$0xff]
    %v50 = vld [vmem:[%s1 + $0xa8] sm:$0xff]
    %v51 = vld [vmem:[%s1 + $0xb0] sm:$0xff]
    %v52 = vld [vmem:[%s1 + $0xb8] sm:$0xff]
    %v53 = vld [vmem:[%s1 + $0xc0] sm:$0xff]
    %v54 = vld [vmem:[%s1 + $0xc8] sm:$0xff]
    %v55 = vld [vmem:[%s1 + $0xd0] sm:$0xff]
    %v56 = vld [vmem:[%s1 + $0xd8] sm:$0xff]
    %v57 = vld [vmem:[%s1 + $0xe0] sm:$0xff]
    %v58 = vld [vmem:[%s1 + $0xe8] sm:$0xff]
    %v59 = vld [vmem:[%s1 + $0xf0] sm:$0xff]
    %v60 = vld [vmem:[%s1 + $0xf8] sm:$0xff]
    %v61 = vld [vmem:[%s2] sm:$0x3]
    %v63 = vlaneseq
    %v64 = vshrl.u32 %v63, 7
    %v65 = vsub.s32 0, %v64
    %v66 = vrot.slane %v61, %v65
    %v67 = vlaneseq
    %v68 = vshrl.u32 %v67, 7
    %v69 = vsub.s32 1, %v68
    %v70 = vrot.slane %v61, %v69
    %73 = vmatprep.subr.mxu0 %v60
    %74 = vmatpush1.msra.mxu0 %v59
    %75 = vmatprep.subr.mxu0 %v58
    %76 = vmatpush1.msra.mxu0 %v57
    %77 = vmatprep.subr.mxu0 %v56
    %78 = vmatpush1.msra.mxu0 %v55
    %79 = vmatprep.subr.mxu0 %v54
    %80 = vmatpush1.msra.mxu0 %v53
    %81 = vmatprep.subr.mxu0 %v52
    %82 = vmatpush1.msra.mxu0 %v51
    %83 = vmatprep.subr.mxu0 %v50
    %84 = vmatpush1.msra.mxu0 %v49
    %85 = vmatprep.subr.mxu0 %v48
    %86 = vmatpush1.msra.mxu0 %v47
    %87 = vmatprep.subr.mxu0 %v46
    %88 = vmatpush1.msra.mxu0 %v45
    %89 = vmatprep.subr.mxu0 %v44
    %90 = vmatpush1.msra.mxu0 %v43
    %91 = vmatprep.subr.mxu0 %v42
    %92 = vmatpush1.msra.mxu0 %v41
    %93 = vmatprep.subr.mxu0 %v40
    %94 = vmatpush1.msra.mxu0 %v39
    %95 = vmatprep.subr.mxu0 %v38
    %96 = vmatpush1.msra.mxu0 %v37
    %97 = vmatprep.subr.mxu0 %v36
    %98 = vmatpush1.msra.mxu0 %v35
    %99 = vmatprep.subr.mxu0 %v34
    %100 = vmatpush1.msra.mxu0 %v33
    %101 = vmatprep.subr.mxu0 %v32
    %102 = vmatpush1.msra.mxu0 %v31
    %103 = vmatprep.subr.mxu0 %v30
    %104 = vmatpush1.msra.mxu0 %v29
    %105 = vmatprep.subr.mxu0 0.0
    %106 = vmatpush2.msra.mxu0 0.0
    %107 = vmatprep.subr.mxu0 0.0
    %108 = vmatpush2.msra.mxu0 0.0
    %109 = vmatprep.subr.mxu0 0.0
    %110 = vmatpush2.msra.mxu0 0.0
    %111 = vmatprep.subr.mxu0 0.0
    %112 = vmatpush2.msra.mxu0 0.0
    %113 = vmatprep.subr.mxu0 0.0
    %114 = vmatpush2.msra.mxu0 0.0
    %115 = vmatprep.subr.mxu0 0.0
    %116 = vmatpush2.msra.mxu0 0.0
    %117 = vmatprep.subr.mxu0 0.0
    %118 = vmatpush2.msra.mxu0 0.0
    %119 = vmatprep.subr.mxu0 0.0
    %120 = vmatpush2.msra.mxu0 0.0
    %121 = vmatprep.subr.mxu0 0.0
    %122 = vmatpush2.msra.mxu0 0.0
    %123 = vmatprep.subr.mxu0 0.0
    %124 = vmatpush2.msra.mxu0 0.0
    %125 = vmatprep.subr.mxu0 0.0
    %126 = vmatpush2.msra.mxu0 0.0
    %127 = vmatprep.subr.mxu0 0.0
    %128 = vmatpush2.msra.mxu0 0.0
    %129 = vmatprep.subr.mxu0 0.0
    %130 = vmatpush2.msra.mxu0 0.0
    %131 = vmatprep.subr.mxu0 0.0
    %132 = vmatpush2.msra.mxu0 0.0
    %133 = vmatprep.subr.mxu0 0.0
    %134 = vmatpush2.msra.mxu0 0.0
    %135 = vmatprep.subr.mxu0 0.0
    %136 = vmatpush2.msra.mxu0 0.0
    %137 = vmatprep.mubr.f32.mxu0 0.0
    %138 = vmatmul.mubr.f32.gmra.mxu0 %v27
    %v139 = vpop.f32.mrf.mxu0
    %v140 = vadd.f32 %v66, %v139
    %v141 = vpop.f32.mrf.mxu0
    %v142 = vadd.f32 %v70, %v141
    %143 = vmatprep.mubr.f32.mxu0 0.0
    %144 = vmatmul.mubr.f32.gmra.mxu0 %v28
    %v145 = vpop.f32.mrf.mxu0
    %v146 = vadd.f32 %v66, %v145
    %v147 = vpop.f32.mrf.mxu0
    %v148 = vadd.f32 %v70, %v147
    %149 = vdwg.mxu0
    %v150 = vmax.f32 %v140, 0.0
    %v151 = vmax.f32 %v142, 0.0
    %v152 = vmax.f32 %v146, 0.0
    %v153 = vmax.f32 %v148, 0.0
    %v154 = vld [vmem:[%s3] sm:$0xff]
    %v155 = vld [vmem:[%s3 + $0x8] sm:$0xff]
    %v156 = vld [vmem:[%s3 + $0x10] sm:$0xff]
    %v157 = vld [vmem:[%s3 + $0x18] sm:$0xff]
    %v158 = vld [vmem:[%s3 + $0x20] sm:$0xff]
    %v159 = vld [vmem:[%s3 + $0x28] sm:$0xff]
    %v160 = vld [vmem:[%s3 + $0x30] sm:$0xff]
    %v161 = vld [vmem:[%s3 + $0x38] sm:$0xff]
    %v162 = vld [vmem:[%s3 + $0x40] sm:$0xff]
    %v163 = vld [vmem:[%s3 + $0x48] sm:$0xff]
    %v164 = vld [vmem:[%s3 + $0x50] sm:$0xff]
    %v165 = vld [vmem:[%s3 + $0x58] sm:$0xff]
    %v166 = vld [vmem:[%s3 + $0x60] sm:$0xff]
    %v167 = vld [vmem:[%s3 + $0x68] sm:$0xff]
    %v168 = vld [vmem:[%s3 + $0x70] sm:$0xff]
    %v169 = vld [vmem:[%s3 + $0x78] sm:$0xff]
    %v170 = vld [vmem:[%s3 + $0x80] sm:$0xff]
    %v171 = vld [vmem:[%s3 + $0x88] sm:$0xff]
    %v172 = vld [vmem:[%s3 + $0x90] sm:$0xff]
    %v173 = vld [vmem:[%s3 + $0x98] sm:$0xff]
    %v174 = vld [vmem:[%s3 + $0xa0] sm:$0xff]
    %v175 = vld [vmem:[%s3 + $0xa8] sm:$0xff]
    %v176 = vld [vmem:[%s3 + $0xb0] sm:$0xff]
    %v177 = vld [vmem:[%s3 + $0xb8] sm:$0xff]
    %v178 = vld [vmem:[%s3 + $0xc0] sm:$0xff]
    %v179 = vld [vmem:[%s3 + $0xc8] sm:$0xff]
    %v180 = vld [vmem:[%s3 + $0xd0] sm:$0xff]
    %v181 = vld [vmem:[%s3 + $0xd8] sm:$0xff]
    %v182 = vld [vmem:[%s3 + $0xe0] sm:$0xff]
    %v183 = vld [vmem:[%s3 + $0xe8] sm:$0xff]
    %v184 = vld [vmem:[%s3 + $0xf0] sm:$0xff]
    %v185 = vld [vmem:[%s3 + $0xf8] sm:$0xff]
    %v186 = vld [vmem:[%s4] sm:$0x1]
    %v188 = vlaneseq
    %v189 = vshrl.u32 %v188, 7
    %v190 = vsub.s32 0, %v189
    %v191 = vrot.slane %v186, %v190
    %193 = vmatprep.subr.mxu0 0.0
    %194 = vmatpush1.msra.mxu0 %v169
    %195 = vmatprep.subr.mxu0 0.0
    %196 = vmatpush1.msra.mxu0 %v168
    %197 = vmatprep.subr.mxu0 0.0
    %198 = vmatpush1.msra.mxu0 %v167
    %199 = vmatprep.subr.mxu0 0.0
    %200 = vmatpush1.msra.mxu0 %v166
    %201 = vmatprep.subr.mxu0 0.0
    %202 = vmatpush1.msra.mxu0 %v165
    %203 = vmatprep.subr.mxu0 0.0
    %204 = vmatpush1.msra.mxu0 %v164
    %205 = vmatprep.subr.mxu0 0.0
    %206 = vmatpush1.msra.mxu0 %v163
    %207 = vmatprep.subr.mxu0 0.0
    %208 = vmatpush1.msra.mxu0 %v162
    %209 = vmatprep.subr.mxu0 0.0
    %210 = vmatpush1.msra.mxu0 %v161
    %211 = vmatprep.subr.mxu0 0.0
    %212 = vmatpush1.msra.mxu0 %v160
    %213 = vmatprep.subr.mxu0 0.0
    %214 = vmatpush1.msra.mxu0 %v159
    %215 = vmatprep.subr.mxu0 0.0
    %216 = vmatpush1.msra.mxu0 %v158
    %217 = vmatprep.subr.mxu0 0.0
    %218 = vmatpush1.msra.mxu0 %v157
    %219 = vmatprep.subr.mxu0 0.0
    %220 = vmatpush1.msra.mxu0 %v156
    %221 = vmatprep.subr.mxu0 0.0
    %222 = vmatpush1.msra.mxu0 %v155
    %223 = vmatprep.subr.mxu0 0.0
    %224 = vmatpush1.msra.mxu0 %v154
    %225 = vmatprep.subr.mxu0 0.0
    %226 = vmatpush2.msra.mxu0 %v185
    %227 = vmatprep.subr.mxu0 0.0
    %228 = vmatpush2.msra.mxu0 %v184
    %229 = vmatprep.subr.mxu0 0.0
    %230 = vmatpush2.msra.mxu0 %v183
    %231 = vmatprep.subr.mxu0 0.0
    %232 = vmatpush2.msra.mxu0 %v182
    %233 = vmatprep.subr.mxu0 0.0
    %234 = vmatpush2.msra.mxu0 %v181
    %235 = vmatprep.subr.mxu0 0.0
    %236 = vmatpush2.msra.mxu0 %v180
    %237 = vmatprep.subr.mxu0 0.0
    %238 = vmatpush2.msra.mxu0 %v179
    %239 = vmatprep.subr.mxu0 0.0
    %240 = vmatpush2.msra.mxu0 %v178
    %241 = vmatprep.subr.mxu0 0.0
    %242 = vmatpush2.msra.mxu0 %v177
    %243 = vmatprep.subr.mxu0 0.0
    %244 = vmatpush2.msra.mxu0 %v176
    %245 = vmatprep.subr.mxu0 0.0
    %246 = vmatpush2.msra.mxu0 %v175
    %247 = vmatprep.subr.mxu0 0.0
    %248 = vmatpush2.msra.mxu0 %v174
    %249 = vmatprep.subr.mxu0 0.0
    %250 = vmatpush2.msra.mxu0 %v173
    %251 = vmatprep.subr.mxu0 0.0
    %252 = vmatpush2.msra.mxu0 %v172
    %253 = vmatprep.subr.mxu0 0.0
    %254 = vmatpush2.msra.mxu0 %v171
    %255 = vmatprep.subr.mxu0 0.0
    %256 = vmatpush2.msra.mxu0 %v170
    %257 = vmatprep.mubr.f32.mxu0 %v151
    %258 = vmatmul.mubr.f32.gmra.mxu0 %v150
    %v259 = vpop.f32.mrf.mxu0
    %v260 = vadd.f32 %v191, %v259
    %v261 = vpop.f32.mrf.mxu0
    %262 = vmatprep.mubr.f32.mxu0 %v153
    %263 = vmatmul.mubr.f32.gmra.mxu0 %v152
    %v264 = vpop.f32.mrf.mxu0
    %v265 = vadd.f32 %v191, %v264
    %v266 = vpop.f32.mrf.mxu0
    %267 = vdwg.mxu0
    %v268 = vadd.f32 %v260, %v27
    %v269 = vadd.f32 %v265, %v28
    %270 = vadd.xlane.f32.xlu0 %v268
    %v271 = vpop.xlane.xlu0 %270
    %272 = vadd.xlane.f32.xlu0 %v269
    %v273 = vpop.xlane.xlu0 %272
    %v274 = vrcp.pop 128.0
    %v275 = vmul.f32 %v271, %v274
    %v276 = vmul.f32 %v273, %v274
    %v277 = vsub.f32 %v268, %v275
    %v278 = vsub.f32 %v269, %v276
    %v279 = vmul.f32 %v277, %v277
    %v280 = vmul.f32 %v278, %v278
    %281 = vadd.xlane.f32.xlu0 %v279
    %v282 = vpop.xlane.xlu0 %281
    %283 = vadd.xlane.f32.xlu0 %v280
    %v284 = vpop.xlane.xlu0 %283
    %v285 = vmul.f32 %v282, %v274
    %v286 = vmul.f32 %v284, %v274
    %v287 = vadd.f32 %v285, 1e-05
    %v288 = vadd.f32 %v286, 1e-05
    %v289 = vrsqrt.pop %v287
    %v290 = vrsqrt.pop %v288
    %v291 = vmul.f32 %v277, %v289
    %v292 = vmul.f32 %v278, %v290
    %v293 = vld [vmem:[%s5] sm:$0x1]
    %v295 = vlaneseq
    %v296 = vshrl.u32 %v295, 7
    %v297 = vsub.s32 0, %v296
    %v298 = vrot.slane %v293, %v297
    %v300 = vmul.f32 %v291, %v298
    %v301 = vmul.f32 %v292, %v298
    %v302 = vld [vmem:[%s6] sm:$0x1]
    %v304 = vlaneseq
    %v305 = vshrl.u32 %v304, 7
    %v306 = vsub.s32 0, %v305
    %v307 = vrot.slane %v302, %v306
    %v309 = vadd.f32 %v300, %v307
    %v310 = vadd.f32 %v301, %v307
    %311 = vst [vmem:[#allocation2] sm:$0xff] %v309
    %312 = vst [vmem:[#allocation2 + $0x8] sm:$0xff] %v310
    // Predicated region
    $region30: #{decoder_forward.11} parent=1 // pred_check
      _
    $region31: #{decoder_forward.11} parent=1 // pred_check_branch
      %314 = sbr.rel (0) target = $region33
    $region32: #{decoder_forward.11} parent=1 // pred_region
      %s316 = ssub.s32 256, 256
      %317 = vsyncadd [#allocation3], %s316
      %s318 = sshll.u32 [#allocation2], 4
      %s319 = int_to_ptr.vmem [resolvable:$true] %s318
      %324 = dma.vmem_to_hbm [thread:$0]  %s319, 256, %s7, [#allocation3], 128, 128, 8
    $region33: #{decoder_forward.11} parent=1 // pred_fallthru
      _
    // Predicated region
    $region34: #{decoder_forward.11} parent=1 // pred_check
      _
    $region35: #{decoder_forward.11} parent=1 // pred_check_branch
      %326 = sbr.rel (0) target = $region37
    $region36: #{decoder_forward.11} parent=1 // pred_region
      %327 = dma.done [#allocation3], 256
    $region37: #{decoder_forward.11} parent=1 // pred_fallthru
      _
    %328 = vsyncpa [#allocation3], 1

// kernel: decoder_forward.7
$region0: #{decoder_forward.7}
  #allocation0 [shape = 'u32[]', space=smem, size = 0x4, offset = 0x4, fixed_abs, tag = 'smem constant byte address 0x4 - core index']
  #allocation1 [shape = 'u32[144,128]{1,0:T(1,128)}', space=vmem, size = 0x12000, scoped, tag = 'internal scratch']
  %s0 = inlined_call_operand.vmem [shape: f32[2,8,128], index: 0, kind: input, shape index: {}]
  %s1 = inlined_call_operand.vmem [shape: f32[2,16,128], index: 1, kind: input, shape index: {}]
  %s2 = inlined_call_operand.vmem [shape: f32[2,8,16], index: 2, kind: input, shape index: {}]
  %s3 = inlined_call_operand.vmem [shape: f32[128,128], index: 3, kind: input, shape index: {}]
  %s4 = inlined_call_operand.vmem [shape: f32[1,128], index: 4, kind: input, shape index: {}]
  %s5 = inlined_call_operand.vmem [shape: f32[128,128], index: 5, kind: input, shape index: {}]
  %s6 = inlined_call_operand.vmem [shape: f32[1,128], index: 6, kind: input, shape index: {}]
  %s7 = inlined_call_operand.vmem [shape: f32[128,128], index: 7, kind: input, shape index: {}]
  %s8 = inlined_call_operand.vmem [shape: f32[1,128], index: 8, kind: input, shape index: {}]
  %s9 = inlined_call_operand.vmem [shape: f32[128,128], index: 9, kind: input, shape index: {}]
  %s10 = inlined_call_operand.vmem [shape: f32[1,128], index: 10, kind: input, shape index: {}]
  %s11 = inlined_call_operand.vmem [shape: f32[1,128], index: 11, kind: input, shape index: {}]
  %s12 = inlined_call_operand.vmem [shape: f32[1,128], index: 12, kind: input, shape index: {}]
  %s13 = inlined_call_operand.vmem [shape: f32[2,8,128], index: 13, kind: output, shape index: {}]
  %s14 = sld [smem:[#allocation0]]
  $region62: #{decoder_forward.7} parent=0
    _
  %s16 = ssub.s32 1, %s14
  %s17 = scalar_select 0, %s16, %s14
  // Predicated region
  $region2: #{decoder_forward.7} parent=0 // pred_check
    _
  $region3: #{decoder_forward.7} parent=0 // pred_check_branch
    %19 = sbr.rel (0) target = $region5
  $region4: #{decoder_forward.7} parent=0 // pred_region
    _
  $region5: #{decoder_forward.7} parent=0 // pred_fallthru
    _
  // Predicated region
  $region6: #{decoder_forward.7} parent=0 // pred_check
    _
  $region7: #{decoder_forward.7} parent=0 // pred_check_branch
    %21 = sbr.rel (0) target = $region9
  $region8: #{decoder_forward.7} parent=0 // pred_region
    _
  $region9: #{decoder_forward.7} parent=0 // pred_fallthru
    _
  // Predicated region
  $region10: #{decoder_forward.7} parent=0 // pred_check
    _
  $region11: #{decoder_forward.7} parent=0 // pred_check_branch
    %23 = sbr.rel (0) target = $region13
  $region12: #{decoder_forward.7} parent=0 // pred_region
    _
  $region13: #{decoder_forward.7} parent=0 // pred_fallthru
    _
  // Predicated region
  $region14: #{decoder_forward.7} parent=0 // pred_check
    _
  $region15: #{decoder_forward.7} parent=0 // pred_check_branch
    %25 = sbr.rel (0) target = $region17
  $region16: #{decoder_forward.7} parent=0 // pred_region
    _
  $region17: #{decoder_forward.7} parent=0 // pred_fallthru
    _
  // Predicated region
  $region18: #{decoder_forward.7} parent=0 // pred_check
    _
  $region19: #{decoder_forward.7} parent=0 // pred_check_branch
    %27 = sbr.rel (0) target = $region21
  $region20: #{decoder_forward.7} parent=0 // pred_region
    _
  $region21: #{decoder_forward.7} parent=0 // pred_fallthru
    _
  // Predicated region
  $region22: #{decoder_forward.7} parent=0 // pred_check
    _
  $region23: #{decoder_forward.7} parent=0 // pred_check_branch
    %29 = sbr.rel (0) target = $region25
  $region24: #{decoder_forward.7} parent=0 // pred_region
    _
  $region25: #{decoder_forward.7} parent=0 // pred_fallthru
    _
  // Predicated region
  $region26: #{decoder_forward.7} parent=0 // pred_check
    _
  $region27: #{decoder_forward.7} parent=0 // pred_check_branch
    %31 = sbr.rel (0) target = $region29
  $region28: #{decoder_forward.7} parent=0 // pred_region
    _
  $region29: #{decoder_forward.7} parent=0 // pred_fallthru
    _
  // Predicated region
  $region30: #{decoder_forward.7} parent=0 // pred_check
    _
  $region31: #{decoder_forward.7} parent=0 // pred_check_branch
    %33 = sbr.rel (0) target = $region33
  $region32: #{decoder_forward.7} parent=0 // pred_region
    _
  $region33: #{decoder_forward.7} parent=0 // pred_fallthru
    _
  // Predicated region
  $region34: #{decoder_forward.7} parent=0 // pred_check
    _
  $region35: #{decoder_forward.7} parent=0 // pred_check_branch
    %35 = sbr.rel (0) target = $region37
  $region36: #{decoder_forward.7} parent=0 // pred_region
    _
  $region37: #{decoder_forward.7} parent=0 // pred_fallthru
    _
  // Predicated region
  $region38: #{decoder_forward.7} parent=0 // pred_check
    _
  $region39: #{decoder_forward.7} parent=0 // pred_check_branch
    %37 = sbr.rel (0) target = $region41
  $region40: #{decoder_forward.7} parent=0 // pred_region
    _
  $region41: #{decoder_forward.7} parent=0 // pred_fallthru
    _
  // Predicated region
  $region42: #{decoder_forward.7} parent=0 // pred_check
    _
  $region43: #{decoder_forward.7} parent=0 // pred_check_branch
    %39 = sbr.rel (0) target = $region45
  $region44: #{decoder_forward.7} parent=0 // pred_region
    _
  $region45: #{decoder_forward.7} parent=0 // pred_fallthru
    _
  // Predicated region
  $region46: #{decoder_forward.7} parent=0 // pred_check
    _
  $region47: #{decoder_forward.7} parent=0 // pred_check_branch
    %41 = sbr.rel (0) target = $region49
  $region48: #{decoder_forward.7} parent=0 // pred_region
    _
  $region49: #{decoder_forward.7} parent=0 // pred_fallthru
    _
  // Predicated region
  $region50: #{decoder_forward.7} parent=0 // pred_check
    _
  $region51: #{decoder_forward.7} parent=0 // pred_check_branch
    %43 = sbr.rel (0) target = $region53
  $region52: #{decoder_forward.7} parent=0 // pred_region
    _
  $region53: #{decoder_forward.7} parent=0 // pred_fallthru
    _
  %v44 = vld [vmem:[%s0] sm:$0xff]
  %v45 = vld [vmem:[%s0 + $0x8] sm:$0xff]
  %v46 = vld [vmem:[%s1] sm:$0xff]
  %v47 = vld [vmem:[%s1 + $0x8] sm:$0xff]
  %v48 = vld [vmem:[%s1 + $0x10] sm:$0xff]
  %v49 = vld [vmem:[%s1 + $0x18] sm:$0xff]
  %v50 = vld [vmem:[%s3] sm:$0xff]
  %v51 = vld [vmem:[%s3 + $0x8] sm:$0xff]
  %v52 = vld [vmem:[%s3 + $0x10] sm:$0xff]
  %v53 = vld [vmem:[%s3 + $0x18] sm:$0xff]
  %v54 = vld [vmem:[%s3 + $0x20] sm:$0xff]
  %v55 = vld [vmem:[%s3 + $0x28] sm:$0xff]
  %v56 = vld [vmem:[%s3 + $0x30] sm:$0xff]
  %v57 = vld [vmem:[%s3 + $0x38] sm:$0xff]
  %v58 = vld [vmem:[%s3 + $0x40] sm:$0xff]
  %v59 = vld [vmem:[%s3 + $0x48] sm:$0xff]
  %v60 = vld [vmem:[%s3 + $0x50] sm:$0xff]
  %v61 = vld [vmem:[%s3 + $0x58] sm:$0xff]
  %v62 = vld [vmem:[%s3 + $0x60] sm:$0xff]
  %v63 = vld [vmem:[%s3 + $0x68] sm:$0xff]
  %v64 = vld [vmem:[%s3 + $0x70] sm:$0xff]
  %v65 = vld [vmem:[%s3 + $0x78] sm:$0xff]
  %v66 = vld [vmem:[%s4] sm:$0x1]
  %v68 = vlaneseq
  %v69 = vshrl.u32 %v68, 7
  %v70 = vsub.s32 0, %v69
  %v71 = vrot.slane %v66, %v70
  %73 = vmatprep.subr.mxu0 0.0
  %74 = vmatpush1.msra.mxu0 %v65
  %75 = vmatprep.subr.mxu0 0.0
  %76 = vmatpush1.msra.mxu0 %v64
  %77 = vmatprep.subr.mxu0 0.0
  %78 = vmatpush1.msra.mxu0 %v63
  %79 = vmatprep.subr.mxu0 0.0
  %80 = vmatpush1.msra.mxu0 %v62
  %81 = vmatprep.subr.mxu0 0.0
  %82 = vmatpush1.msra.mxu0 %v61
  %83 = vmatprep.subr.mxu0 0.0
  %84 = vmatpush1.msra.mxu0 %v60
  %85 = vmatprep.subr.mxu0 0.0
  %86 = vmatpush1.msra.mxu0 %v59
  %87 = vmatprep.subr.mxu0 0.0
  %88 = vmatpush1.msra.mxu0 %v58
  %89 = vmatprep.subr.mxu0 0.0
  %90 = vmatpush1.msra.mxu0 %v57
  %91 = vmatprep.subr.mxu0 0.0
  %92 = vmatpush1.msra.mxu0 %v56
  %93 = vmatprep.subr.mxu0 0.0
  %94 = vmatpush1.msra.mxu0 %v55
  %95 = vmatprep.subr.mxu0 0.0
  %96 = vmatpush1.msra.mxu0 %v54
  %97 = vmatprep.subr.mxu0 0.0
  %98 = vmatpush1.msra.mxu0 %v53
  %99 = vmatprep.subr.mxu0 0.0
  %100 = vmatpush1.msra.mxu0 %v52
  %101 = vmatprep.subr.mxu0 0.0
  %102 = vmatpush1.msra.mxu0 %v51
  %103 = vmatprep.subr.mxu0 0.0
  %104 = vmatpush1.msra.mxu0 %v50
  %105 = vmatprep.subr.mxu0 0.0
  %106 = vmatpush2.msra.mxu0 0.0
  %107 = vmatprep.subr.mxu0 0.0
  %108 = vmatpush2.msra.mxu0 0.0
  %109 = vmatprep.subr.mxu0 0.0
  %110 = vmatpush2.msra.mxu0 0.0
  %111 = vmatprep.subr.mxu0 0.0
  %112 = vmatpush2.msra.mxu0 0.0
  %113 = vmatprep.subr.mxu0 0.0
  %114 = vmatpush2.msra.mxu0 0.0
  %115 = vmatprep.subr.mxu0 0.0
  %116 = vmatpush2.msra.mxu0 0.0
  %117 = vmatprep.subr.mxu0 0.0
  %118 = vmatpush2.msra.mxu0 0.0
  %119 = vmatprep.subr.mxu0 0.0
  %120 = vmatpush2.msra.mxu0 0.0
  %121 = vmatprep.subr.mxu0 0.0
  %122 = vmatpush2.msra.mxu0 0.0
  %123 = vmatprep.subr.mxu0 0.0
  %124 = vmatpush2.msra.mxu0 0.0
  %125 = vmatprep.subr.mxu0 0.0
  %126 = vmatpush2.msra.mxu0 0.0
  %127 = vmatprep.subr.mxu0 0.0
  %128 = vmatpush2.msra.mxu0 0.0
  %129 = vmatprep.subr.mxu0 0.0
  %130 = vmatpush2.msra.mxu0 0.0
  %131 = vmatprep.subr.mxu0 0.0
  %132 = vmatpush2.msra.mxu0 0.0
  %133 = vmatprep.subr.mxu0 0.0
  %134 = vmatpush2.msra.mxu0 0.0
  %135 = vmatprep.subr.mxu0 0.0
  %136 = vmatpush2.msra.mxu0 0.0
  %137 = vmatprep.mubr.f32.mxu0 0.0
  %138 = vmatmul.mubr.f32.gmra.mxu0 %v44
  %v139 = vpop.f32.mrf.mxu0
  %v140 = vadd.f32 %v71, %v139
  %v141 = vpop.f32.mrf.mxu0
  %142 = vmatprep.mubr.f32.mxu0 0.0
  %143 = vmatmul.mubr.f32.gmra.mxu0 %v45
  %v144 = vpop.f32.mrf.mxu0
  %v145 = vadd.f32 %v71, %v144
  %v146 = vpop.f32.mrf.mxu0
  %147 = vdwg.mxu0
  %v148 = vld [vmem:[%s5] sm:$0xff]
  %v149 = vld [vmem:[%s5 + $0x8] sm:$0xff]
  %v150 = vld [vmem:[%s5 + $0x10] sm:$0xff]
  %v151 = vld [vmem:[%s5 + $0x18] sm:$0xff]
  %v152 = vld [vmem:[%s5 + $0x20] sm:$0xff]
  %v153 = vld [vmem:[%s5 + $0x28] sm:$0xff]
  %v154 = vld [vmem:[%s5 + $0x30] sm:$0xff]
  %v155 = vld [vmem:[%s5 + $0x38] sm:$0xff]
  %v156 = vld [vmem:[%s5 + $0x40] sm:$0xff]
  %v157 = vld [vmem:[%s5 + $0x48] sm:$0xff]
  %v158 = vld [vmem:[%s5 + $0x50] sm:$0xff]
  %v159 = vld [vmem:[%s5 + $0x58] sm:$0xff]
  %v160 = vld [vmem:[%s5 + $0x60] sm:$0xff]
  %v161 = vld [vmem:[%s5 + $0x68] sm:$0xff]
  %v162 = vld [vmem:[%s5 + $0x70] sm:$0xff]
  %v163 = vld [vmem:[%s5 + $0x78] sm:$0xff]
  %v164 = vld [vmem:[%s6] sm:$0x1]
  %v166 = vlaneseq
  %v167 = vshrl.u32 %v166, 7
  %v168 = vsub.s32 0, %v167
  %v169 = vrot.slane %v164, %v168
  %171 = vmatprep.subr.mxu0 0.0
  %172 = vmatpush1.msra.mxu0 %v163
  %173 = vmatprep.subr.mxu0 0.0
  %174 = vmatpush1.msra.mxu0 %v162
  %175 = vmatprep.subr.mxu0 0.0
  %176 = vmatpush1.msra.mxu0 %v161
  %177 = vmatprep.subr.mxu0 0.0
  %178 = vmatpush1.msra.mxu0 %v160
  %179 = vmatprep.subr.mxu0 0.0
  %180 = vmatpush1.msra.mxu0 %v159
  %181 = vmatprep.subr.mxu0 0.0
  %182 = vmatpush1.msra.mxu0 %v158
  %183 = vmatprep.subr.mxu0 0.0
  %184 = vmatpush1.msra.mxu0 %v157
  %185 = vmatprep.subr.mxu0 0.0
  %186 = vmatpush1.msra.mxu0 %v156
  %187 = vmatprep.subr.mxu0 0.0
  %188 = vmatpush1.msra.mxu0 %v155
  %189 = vmatprep.subr.mxu0 0.0
  %190 = vmatpush1.msra.mxu0 %v154
  %191 = vmatprep.subr.mxu0 0.0
  %192 = vmatpush1.msra.mxu0 %v153
  %193 = vmatprep.subr.mxu0 0.0
  %194 = vmatpush1.msra.mxu0 %v152
  %195 = vmatprep.subr.mxu0 0.0
  %196 = vmatpush1.msra.mxu0 %v151
  %197 = vmatprep.subr.mxu0 0.0
  %198 = vmatpush1.msra.mxu0 %v150
  %199 = vmatprep.subr.mxu0 0.0
  %200 = vmatpush1.msra.mxu0 %v149
  %201 = vmatprep.subr.mxu0 0.0
  %202 = vmatpush1.msra.mxu0 %v148
  %203 = vmatprep.subr.mxu0 0.0
  %204 = vmatpush2.msra.mxu0 0.0
  %205 = vmatprep.subr.mxu0 0.0
  %206 = vmatpush2.msra.mxu0 0.0
  %207 = vmatprep.subr.mxu0 0.0
  %208 = vmatpush2.msra.mxu0 0.0
  %209 = vmatprep.subr.mxu0 0.0
  %210 = vmatpush2.msra.mxu0 0.0
  %211 = vmatprep.subr.mxu0 0.0
  %212 = vmatpush2.msra.mxu0 0.0
  %213 = vmatprep.subr.mxu0 0.0
  %214 = vmatpush2.msra.mxu0 0.0
  %215 = vmatprep.subr.mxu0 0.0
  %216 = vmatpush2.msra.mxu0 0.0
  %217 = vmatprep.subr.mxu0 0.0
  %218 = vmatpush2.msra.mxu0 0.0
  %219 = vmatprep.subr.mxu0 0.0
  %220 = vmatpush2.msra.mxu0 0.0
  %221 = vmatprep.subr.mxu0 0.0
  %222 = vmatpush2.msra.mxu0 0.0
  %223 = vmatprep.subr.mxu0 0.0
  %224 = vmatpush2.msra.mxu0 0.0
  %225 = vmatprep.subr.mxu0 0.0
  %226 = vmatpush2.msra.mxu0 0.0
  %227 = vmatprep.subr.mxu0 0.0
  %228 = vmatpush2.msra.mxu0 0.0
  %229 = vmatprep.subr.mxu0 0.0
  %230 = vmatpush2.msra.mxu0 0.0
  %231 = vmatprep.subr.mxu0 0.0
  %232 = vmatpush2.msra.mxu0 0.0
  %233 = vmatprep.subr.mxu0 0.0
  %234 = vmatpush2.msra.mxu0 0.0
  %235 = vmatprep.mubr.f32.mxu0 0.0
  %236 = vmatmul.mubr.f32.gmra.mxu0 %v46
  %v237 = vpop.f32.mrf.mxu0
  %v238 = vadd.f32 %v169, %v237
  %v239 = vpop.f32.mrf.mxu0
  %240 = vmatprep.mubr.f32.mxu0 0.0
  %241 = vmatmul.mubr.f32.gmra.mxu0 %v47
  %v242 = vpop.f32.mrf.mxu0
  %v243 = vadd.f32 %v169, %v242
  %v244 = vpop.f32.mrf.mxu0
  %245 = vmatprep.mubr.f32.mxu0 0.0
  %246 = vmatmul.mubr.f32.gmra.mxu0 %v48
  %v247 = vpop.f32.mrf.mxu0
  %v248 = vadd.f32 %v169, %v247
  %v249 = vpop.f32.mrf.mxu0
  %250 = vmatprep.mubr.f32.mxu0 0.0
  %251 = vmatmul.mubr.f32.gmra.mxu0 %v49
  %v252 = vpop.f32.mrf.mxu0
  %v253 = vadd.f32 %v169, %v252
  %v254 = vpop.f32.mrf.mxu0
  %255 = vdwg.mxu0
  %v256 = vld [vmem:[%s7] sm:$0xff]
  %v257 = vld [vmem:[%s7 + $0x8] sm:$0xff]
  %v258 = vld [vmem:[%s7 + $0x10] sm:$0xff]
  %v259 = vld [vmem:[%s7 + $0x18] sm:$0xff]
  %v260 = vld [vmem:[%s7 + $0x20] sm:$0xff]
  %v261 = vld [vmem:[%s7 + $0x28] sm:$0xff]
  %v262 = vld [vmem:[%s7 + $0x30] sm:$0xff]
  %v263 = vld [vmem:[%s7 + $0x38] sm:$0xff]
  %v264 = vld [vmem:[%s7 + $0x40] sm:$0xff]
  %v265 = vld [vmem:[%s7 + $0x48] sm:$0xff]
  %v266 = vld [vmem:[%s7 + $0x50] sm:$0xff]
  %v267 = vld [vmem:[%s7 + $0x58] sm:$0xff]
  %v268 = vld [vmem:[%s7 + $0x60] sm:$0xff]
  %v269 = vld [vmem:[%s7 + $0x68] sm:$0xff]
  %v270 = vld [vmem:[%s7 + $0x70] sm:$0xff]
  %v271 = vld [vmem:[%s7 + $0x78] sm:$0xff]
  %v272 = vld [vmem:[%s8] sm:$0x1]
  %v274 = vlaneseq
  %v275 = vshrl.u32 %v274, 7
  %v276 = vsub.s32 0, %v275
  %v277 = vrot.slane %v272, %v276
  %279 = vmatprep.subr.mxu0 0.0
  %280 = vmatpush1.msra.mxu0 %v271
  %281 = vmatprep.subr.mxu0 0.0
  %282 = vmatpush1.msra.mxu0 %v270
  %283 = vmatprep.subr.mxu0 0.0
  %284 = vmatpush1.msra.mxu0 %v269
  %285 = vmatprep.subr.mxu0 0.0
  %286 = vmatpush1.msra.mxu0 %v268
  %287 = vmatprep.subr.mxu0 0.0
  %288 = vmatpush1.msra.mxu0 %v267
  %289 = vmatprep.subr.mxu0 0.0
  %290 = vmatpush1.msra.mxu0 %v266
  %291 = vmatprep.subr.mxu0 0.0
  %292 = vmatpush1.msra.mxu0 %v265
  %293 = vmatprep.subr.mxu0 0.0
  %294 = vmatpush1.msra.mxu0 %v264
  %295 = vmatprep.subr.mxu0 0.0
  %296 = vmatpush1.msra.mxu0 %v263
  %297 = vmatprep.subr.mxu0 0.0
  %298 = vmatpush1.msra.mxu0 %v262
  %299 = vmatprep.subr.mxu0 0.0
  %300 = vmatpush1.msra.mxu0 %v261
  %301 = vmatprep.subr.mxu0 0.0
  %302 = vmatpush1.msra.mxu0 %v260
  %303 = vmatprep.subr.mxu0 0.0
  %304 = vmatpush1.msra.mxu0 %v259
  %305 = vmatprep.subr.mxu0 0.0
  %306 = vmatpush1.msra.mxu0 %v258
  %307 = vmatprep.subr.mxu0 0.0
  %308 = vmatpush1.msra.mxu0 %v257
  %309 = vmatprep.subr.mxu0 0.0
  %310 = vmatpush1.msra.mxu0 %v256
  %311 = vmatprep.subr.mxu0 0.0
  %312 = vmatpush2.msra.mxu0 0.0
  %313 = vmatprep.subr.mxu0 0.0
  %314 = vmatpush2.msra.mxu0 0.0
  %315 = vmatprep.subr.mxu0 0.0
  %316 = vmatpush2.msra.mxu0 0.0
  %317 = vmatprep.subr.mxu0 0.0
  %318 = vmatpush2.msra.mxu0 0.0
  %319 = vmatprep.subr.mxu0 0.0
  %320 = vmatpush2.msra.mxu0 0.0
  %321 = vmatprep.subr.mxu0 0.0
  %322 = vmatpush2.msra.mxu0 0.0
  %323 = vmatprep.subr.mxu0 0.0
  %324 = vmatpush2.msra.mxu0 0.0
  %325 = vmatprep.subr.mxu0 0.0
  %326 = vmatpush2.msra.mxu0 0.0
  %327 = vmatprep.subr.mxu0 0.0
  %328 = vmatpush2.msra.mxu0 0.0
  %329 = vmatprep.subr.mxu0 0.0
  %330 = vmatpush2.msra.mxu0 0.0
  %331 = vmatprep.subr.mxu0 0.0
  %332 = vmatpush2.msra.mxu0 0.0
  %333 = vmatprep.subr.mxu0 0.0
  %334 = vmatpush2.msra.mxu0 0.0
  %335 = vmatprep.subr.mxu0 0.0
  %336 = vmatpush2.msra.mxu0 0.0
  %337 = vmatprep.subr.mxu0 0.0
  %338 = vmatpush2.msra.mxu0 0.0
  %339 = vmatprep.subr.mxu0 0.0
  %340 = vmatpush2.msra.mxu0 0.0
  %341 = vmatprep.subr.mxu0 0.0
  %342 = vmatpush2.msra.mxu0 0.0
  %343 = vmatprep.mubr.f32.mxu0 0.0
  %344 = vmatmul.mubr.f32.gmra.mxu0 %v46
  %v345 = vpop.f32.mrf.mxu0
  %v346 = vadd.f32 %v277, %v345
  %v347 = vpop.f32.mrf.mxu0
  %348 = vmatprep.mubr.f32.mxu0 0.0
  %349 = vmatmul.mubr.f32.gmra.mxu0 %v47
  %v350 = vpop.f32.mrf.mxu0
  %v351 = vadd.f32 %v277, %v350
  %v352 = vpop.f32.mrf.mxu0
  %353 = vmatprep.mubr.f32.mxu0 0.0
  %354 = vmatmul.mubr.f32.gmra.mxu0 %v48
  %v355 = vpop.f32.mrf.mxu0
  %v356 = vadd.f32 %v277, %v355
  %v357 = vpop.f32.mrf.mxu0
  %358 = vmatprep.mubr.f32.mxu0 0.0
  %359 = vmatmul.mubr.f32.gmra.mxu0 %v49
  %v360 = vpop.f32.mrf.mxu0
  %v361 = vadd.f32 %v277, %v360
  %v362 = vpop.f32.mrf.mxu0
  %363 = vdwg.mxu0
  %v364 = vld [vmem:[%s2] sm:$0xff]
  %v365 = vld [vmem:[%s2 + $0x8] sm:$0xff]
  %v366 = vld [vmem:[%s9] sm:$0xff]
  %v367 = vld [vmem:[%s9 + $0x8] sm:$0xff]
  %v368 = vld [vmem:[%s9 + $0x10] sm:$0xff]
  %v369 = vld [vmem:[%s9 + $0x18] sm:$0xff]
  %v370 = vld [vmem:[%s9 + $0x20] sm:$0xff]
  %v371 = vld [vmem:[%s9 + $0x28] sm:$0xff]
  %v372 = vld [vmem:[%s9 + $0x30] sm:$0xff]
  %v373 = vld [vmem:[%s9 + $0x38] sm:$0xff]
  %v374 = vld [vmem:[%s9 + $0x40] sm:$0xff]
  %v375 = vld [vmem:[%s9 + $0x48] sm:$0xff]
  %v376 = vld [vmem:[%s9 + $0x50] sm:$0xff]
  %v377 = vld [vmem:[%s9 + $0x58] sm:$0xff]
  %v378 = vld [vmem:[%s9 + $0x60] sm:$0xff]
  %v379 = vld [vmem:[%s9 + $0x68] sm:$0xff]
  %v380 = vld [vmem:[%s9 + $0x70] sm:$0xff]
  %v381 = vld [vmem:[%s9 + $0x78] sm:$0xff]
  %vm382 = vcmask 261120
  %v384 = vsel %vm382, %v140, 0
  %v387 = vsel %vm382, %v238, 0
  %v390 = vsel %vm382, %v243, 0
  %392 = vmatprep.subr.mxu0 0.0
  %393 = vmatpush1.xpose.msra.mxu0 0.0
  %394 = vmatprep.subr.mxu0 0.0
  %395 = vmatpush1.xpose.msra.mxu0 0.0
  %396 = vmatprep.subr.mxu0 0.0
  %397 = vmatpush1.xpose.msra.mxu0 0.0
  %398 = vmatprep.subr.mxu0 0.0
  %399 = vmatpush1.xpose.msra.mxu0 0.0
  %400 = vmatprep.subr.mxu0 0.0
  %401 = vmatpush1.xpose.msra.mxu0 0.0
  %402 = vmatprep.subr.mxu0 0.0
  %403 = vmatpush1.xpose.msra.mxu0 0.0
  %404 = vmatprep.subr.mxu0 0.0
  %405 = vmatpush1.xpose.msra.mxu0 0.0
  %406 = vmatprep.subr.mxu0 0.0
  %407 = vmatpush1.xpose.msra.mxu0 0.0
  %408 = vmatprep.subr.mxu0 0.0
  %409 = vmatpush1.xpose.msra.mxu0 0.0
  %410 = vmatprep.subr.mxu0 0.0
  %411 = vmatpush1.xpose.msra.mxu0 0.0
  %412 = vmatprep.subr.mxu0 0.0
  %413 = vmatpush1.xpose.msra.mxu0 0.0
  %414 = vmatprep.subr.mxu0 0.0
  %415 = vmatpush1.xpose.msra.mxu0 0.0
  %416 = vmatprep.subr.mxu0 0.0
  %417 = vmatpush1.xpose.msra.mxu0 0.0
  %418 = vmatprep.subr.mxu0 0.0
  %419 = vmatpush1.xpose.msra.mxu0 0.0
  %420 = vmatprep.subr.mxu0 0.0
  %421 = vmatpush1.xpose.msra.mxu0 %v390
  %422 = vmatprep.subr.mxu0 0.0
  %423 = vmatpush1.xpose.msra.mxu0 %v387
  %424 = vmatprep.subr.mxu0 0.0
  %425 = vmatpush2.xpose.msra.mxu0 0.0
  %426 = vmatprep.subr.mxu0 0.0
  %427 = vmatpush2.xpose.msra.mxu0 0.0
  %428 = vmatprep.subr.mxu0 0.0
  %429 = vmatpush2.xpose.msra.mxu0 0.0
  %430 = vmatprep.subr.mxu0 0.0
  %431 = vmatpush2.xpose.msra.mxu0 0.0
  %432 = vmatprep.subr.mxu0 0.0
  %433 = vmatpush2.xpose.msra.mxu0 0.0
  %434 = vmatprep.subr.mxu0 0.0
  %435 = vmatpush2.xpose.msra.mxu0 0.0
  %436 = vmatprep.subr.mxu0 0.0
  %437 = vmatpush2.xpose.msra.mxu0 0.0
  %438 = vmatprep.subr.mxu0 0.0
  %439 = vmatpush2.xpose.msra.mxu0 0.0
  %440 = vmatprep.subr.mxu0 0.0
  %441 = vmatpush2.xpose.msra.mxu0 0.0
  %442 = vmatprep.subr.mxu0 0.0
  %443 = vmatpush2.xpose.msra.mxu0 0.0
  %444 = vmatprep.subr.mxu0 0.0
  %445 = vmatpush2.xpose.msra.mxu0 0.0
  %446 = vmatprep.subr.mxu0 0.0
  %447 = vmatpush2.xpose.msra.mxu0 0.0
  %448 = vmatprep.subr.mxu0 0.0
  %449 = vmatpush2.xpose.msra.mxu0 0.0
  %450 = vmatprep.subr.mxu0 0.0
  %451 = vmatpush2.xpose.msra.mxu0 0.0
  %452 = vmatprep.subr.mxu0 0.0
  %453 = vmatpush2.xpose.msra.mxu0 0.0
  %454 = vmatprep.subr.mxu0 0.0
  %455 = vmatpush2.xpose.msra.mxu0 0.0
  %456 = vmatprep.mubr.f32.mxu0 0.0
  %457 = vmatmul.mubr.f32.gmra.mxu0 %v384
  %v458 = vpop.f32.mrf.mxu0
  %v459 = vadd.f32 %v364, %v458
  %v460 = vpop.f32.mrf.mxu0
  %461 = vdwg.mxu0
  %v463 = vsel %vm382, %v145, 0
  %v466 = vsel %vm382, %v248, 0
  %v469 = vsel %vm382, %v253, 0
  %471 = vmatprep.subr.mxu0 0.0
  %472 = vmatpush1.xpose.msra.mxu0 0.0
  %473 = vmatprep.subr.mxu0 0.0
  %474 = vmatpush1.xpose.msra.mxu0 0.0
  %475 = vmatprep.subr.mxu0 0.0
  %476 = vmatpush1.xpose.msra.mxu0 0.0
  %477 = vmatprep.subr.mxu0 0.0
  %478 = vmatpush1.xpose.msra.mxu0 0.0
  %479 = vmatprep.subr.mxu0 0.0
  %480 = vmatpush1.xpose.msra.mxu0 0.0
  %481 = vmatprep.subr.mxu0 0.0
  %482 = vmatpush1.xpose.msra.mxu0 0.0
  %483 = vmatprep.subr.mxu0 0.0
  %484 = vmatpush1.xpose.msra.mxu0 0.0
  %485 = vmatprep.subr.mxu0 0.0
  %486 = vmatpush1.xpose.msra.mxu0 0.0
  %487 = vmatprep.subr.mxu0 0.0
  %488 = vmatpush1.xpose.msra.mxu0 0.0
  %489 = vmatprep.subr.mxu0 0.0
  %490 = vmatpush1.xpose.msra.mxu0 0.0
  %491 = vmatprep.subr.mxu0 0.0
  %492 = vmatpush1.xpose.msra.mxu0 0.0
  %493 = vmatprep.subr.mxu0 0.0
  %494 = vmatpush1.xpose.msra.mxu0 0.0
  %495 = vmatprep.subr.mxu0 0.0
  %496 = vmatpush1.xpose.msra.mxu0 0.0
  %497 = vmatprep.subr.mxu0 0.0
  %498 = vmatpush1.xpose.msra.mxu0 0.0
  %499 = vmatprep.subr.mxu0 0.0
  %500 = vmatpush1.xpose.msra.mxu0 %v469
  %501 = vmatprep.subr.mxu0 0.0
  %502 = vmatpush1.xpose.msra.mxu0 %v466
  %503 = vmatprep.subr.mxu0 0.0
  %504 = vmatpush2.xpose.msra.mxu0 0.0
  %505 = vmatprep.subr.mxu0 0.0
  %506 = vmatpush2.xpose.msra.mxu0 0.0
  %507 = vmatprep.subr.mxu0 0.0
  %508 = vmatpush2.xpose.msra.mxu0 0.0
  %509 = vmatprep.subr.mxu0 0.0
  %510 = vmatpush2.xpose.msra.mxu0 0.0
  %511 = vmatprep.subr.mxu0 0.0
  %512 = vmatpush2.xpose.msra.mxu0 0.0
  %513 = vmatprep.subr.mxu0 0.0
  %514 = vmatpush2.xpose.msra.mxu0 0.0
  %515 = vmatprep.subr.mxu0 0.0
  %516 = vmatpush2.xpose.msra.mxu0 0.0
  %517 = vmatprep.subr.mxu0 0.0
  %518 = vmatpush2.xpose.msra.mxu0 0.0
  %519 = vmatprep.subr.mxu0 0.0
  %520 = vmatpush2.xpose.msra.mxu0 0.0
  %521 = vmatprep.subr.mxu0 0.0
  %522 = vmatpush2.xpose.msra.mxu0 0.0
  %523 = vmatprep.subr.mxu0 0.0
  %524 = vmatpush2.xpose.msra.mxu0 0.0
  %525 = vmatprep.subr.mxu0 0.0
  %526 = vmatpush2.xpose.msra.mxu0 0.0
  %527 = vmatprep.subr.mxu0 0.0
  %528 = vmatpush2.xpose.msra.mxu0 0.0
  %529 = vmatprep.subr.mxu0 0.0
  %530 = vmatpush2.xpose.msra.mxu0 0.0
  %531 = vmatprep.subr.mxu0 0.0
  %532 = vmatpush2.xpose.msra.mxu0 0.0
  %533 = vmatprep.subr.mxu0 0.0
  %534 = vmatpush2.xpose.msra.mxu0 0.0
  %535 = vmatprep.mubr.f32.mxu0 0.0
  %536 = vmatmul.mubr.f32.gmra.mxu0 %v463
  %v537 = vpop.f32.mrf.mxu0
  %v538 = vadd.f32 %v365, %v537
  %v539 = vpop.f32.mrf.mxu0
  %540 = vdwg.mxu0
  %vm541 = vcmask 130048
  %v542 = vsel %vm541, %v459, -inf
  %543 = vmax.xlane.f32.xlu0 %v542
  %v544 = vpop.xlane.xlu0 %543
  %v545 = vsel %vm541, %v538, -inf
  %546 = vmax.xlane.f32.xlu0 %v545
  %v547 = vpop.xlane.xlu0 %546
  %v548 = vsub.f32 %v459, %v544
  %v549 = vsub.f32 %v538, %v547
  %v550 = vmul.f32 %v548, 1.442695
  %v551 = vpow.pop %v550
  %v552 = vmul.f32 %v549, 1.442695
  %v553 = vpow.pop %v552
  %v554 = vsel %vm541, %v551, 0.0
  %555 = vadd.xlane.f32.xlu0 %v554
  %v556 = vpop.xlane.xlu0 %555
  %v557 = vsel %vm541, %v553, 0.0
  %558 = vadd.xlane.f32.xlu0 %v557
  %v559 = vpop.xlane.xlu0 %558
  %v560 = vrcp.pop %v556
  %v561 = vmul.f32 1.0, %v560
  %v562 = vrcp.pop %v559
  %v563 = vmul.f32 1.0, %v562
  %v565 = vsel %vm541, %v551, 0
  %567 = vmatprep.subr.mxu0 0.0
  %568 = vmatpush1.msra.mxu0 0.0
  %569 = vmatprep.subr.mxu0 0.0
  %570 = vmatpush1.msra.mxu0 0.0
  %571 = vmatprep.subr.mxu0 0.0
  %572 = vmatpush1.msra.mxu0 0.0
  %573 = vmatprep.subr.mxu0 0.0
  %574 = vmatpush1.msra.mxu0 0.0
  %575 = vmatprep.subr.mxu0 0.0
  %576 = vmatpush1.msra.mxu0 0.0
  %577 = vmatprep.subr.mxu0 0.0
  %578 = vmatpush1.msra.mxu0 0.0
  %579 = vmatprep.subr.mxu0 0.0
  %580 = vmatpush1.msra.mxu0 0.0
  %581 = vmatprep.subr.mxu0 0.0
  %582 = vmatpush1.msra.mxu0 0.0
  %583 = vmatprep.subr.mxu0 0.0
  %584 = vmatpush1.msra.mxu0 0.0
  %585 = vmatprep.subr.mxu0 0.0
  %586 = vmatpush1.msra.mxu0 0.0
  %587 = vmatprep.subr.mxu0 0.0
  %588 = vmatpush1.msra.mxu0 0.0
  %589 = vmatprep.subr.mxu0 0.0
  %590 = vmatpush1.msra.mxu0 0.0
  %591 = vmatprep.subr.mxu0 0.0
  %592 = vmatpush1.msra.mxu0 0.0
  %593 = vmatprep.subr.mxu0 0.0
  %594 = vmatpush1.msra.mxu0 0.0
  %595 = vmatprep.subr.mxu0 0.0
  %596 = vmatpush1.msra.mxu0 %v351
  %597 = vmatprep.subr.mxu0 0.0
  %598 = vmatpush1.msra.mxu0 %v346
  %599 = vmatprep.subr.mxu0 0.0
  %600 = vmatpush2.msra.mxu0 0.0
  %601 = vmatprep.subr.mxu0 0.0
  %602 = vmatpush2.msra.mxu0 0.0
  %603 = vmatprep.subr.mxu0 0.0
  %604 = vmatpush2.msra.mxu0 0.0
  %605 = vmatprep.subr.mxu0 0.0
  %606 = vmatpush2.msra.mxu0 0.0
  %607 = vmatprep.subr.mxu0 0.0
  %608 = vmatpush2.msra.mxu0 0.0
  %609 = vmatprep.subr.mxu0 0.0
  %610 = vmatpush2.msra.mxu0 0.0
  %611 = vmatprep.subr.mxu0 0.0
  %612 = vmatpush2.msra.mxu0 0.0
  %613 = vmatprep.subr.mxu0 0.0
  %614 = vmatpush2.msra.mxu0 0.0
  %615 = vmatprep.subr.mxu0 0.0
  %616 = vmatpush2.msra.mxu0 0.0
  %617 = vmatprep.subr.mxu0 0.0
  %618 = vmatpush2.msra.mxu0 0.0
  %619 = vmatprep.subr.mxu0 0.0
  %620 = vmatpush2.msra.mxu0 0.0
  %621 = vmatprep.subr.mxu0 0.0
  %622 = vmatpush2.msra.mxu0 0.0
  %623 = vmatprep.subr.mxu0 0.0
  %624 = vmatpush2.msra.mxu0 0.0
  %625 = vmatprep.subr.mxu0 0.0
  %626 = vmatpush2.msra.mxu0 0.0
  %627 = vmatprep.subr.mxu0 0.0
  %628 = vmatpush2.msra.mxu0 0.0
  %629 = vmatprep.subr.mxu0 0.0
  %630 = vmatpush2.msra.mxu0 0.0
  %631 = vmatprep.mubr.f32.mxu0 0.0
  %632 = vmatmul.mubr.f32.gmra.mxu0 %v565
  %v633 = vpop.f32.mrf.mxu0
  %v634 = vadd.f32 0.0, %v633
  %v635 = vpop.f32.mrf.mxu0
  %636 = vdwg.mxu0
  %v638 = vsel %vm541, %v553, 0
  %640 = vmatprep.subr.mxu0 0.0
  %641 = vmatpush1.msra.mxu0 0.0
  %642 = vmatprep.subr.mxu0 0.0
  %643 = vmatpush1.msra.mxu0 0.0
  %644 = vmatprep.subr.mxu0 0.0
  %645 = vmatpush1.msra.mxu0 0.0
  %646 = vmatprep.subr.mxu0 0.0
  %647 = vmatpush1.msra.mxu0 0.0
  %648 = vmatprep.subr.mxu0 0.0
  %649 = vmatpush1.msra.mxu0 0.0
  %650 = vmatprep.subr.mxu0 0.0
  %651 = vmatpush1.msra.mxu0 0.0
  %652 = vmatprep.subr.mxu0 0.0
  %653 = vmatpush1.msra.mxu0 0.0
  %654 = vmatprep.subr.mxu0 0.0
  %655 = vmatpush1.msra.mxu0 0.0
  %656 = vmatprep.subr.mxu0 0.0
  %657 = vmatpush1.msra.mxu0 0.0
  %658 = vmatprep.subr.mxu0 0.0
  %659 = vmatpush1.msra.mxu0 0.0
  %660 = vmatprep.subr.mxu0 0.0
  %661 = vmatpush1.msra.mxu0 0.0
  %662 = vmatprep.subr.mxu0 0.0
  %663 = vmatpush1.msra.mxu0 0.0
  %664 = vmatprep.subr.mxu0 0.0
  %665 = vmatpush1.msra.mxu0 0.0
  %666 = vmatprep.subr.mxu0 0.0
  %667 = vmatpush1.msra.mxu0 0.0
  %668 = vmatprep.subr.mxu0 0.0
  %669 = vmatpush1.msra.mxu0 %v361
  %670 = vmatprep.subr.mxu0 0.0
  %671 = vmatpush1.msra.mxu0 %v356
  %672 = vmatprep.subr.mxu0 0.0
  %673 = vmatpush2.msra.mxu0 0.0
  %674 = vmatprep.subr.mxu0 0.0
  %675 = vmatpush2.msra.mxu0 0.0
  %676 = vmatprep.subr.mxu0 0.0
  %677 = vmatpush2.msra.mxu0 0.0
  %678 = vmatprep.subr.mxu0 0.0
  %679 = vmatpush2.msra.mxu0 0.0
  %680 = vmatprep.subr.mxu0 0.0
  %681 = vmatpush2.msra.mxu0 0.0
  %682 = vmatprep.subr.mxu0 0.0
  %683 = vmatpush2.msra.mxu0 0.0
  %684 = vmatprep.subr.mxu0 0.0
  %685 = vmatpush2.msra.mxu0 0.0
  %686 = vmatprep.subr.mxu0 0.0
  %687 = vmatpush2.msra.mxu0 0.0
  %688 = vmatprep.subr.mxu0 0.0
  %689 = vmatpush2.msra.mxu0 0.0
  %690 = vmatprep.subr.mxu0 0.0
  %691 = vmatpush2.msra.mxu0 0.0
  %692 = vmatprep.subr.mxu0 0.0
  %693 = vmatpush2.msra.mxu0 0.0
  %694 = vmatprep.subr.mxu0 0.0
  %695 = vmatpush2.msra.mxu0 0.0
  %696 = vmatprep.subr.mxu0 0.0
  %697 = vmatpush2.msra.mxu0 0.0
  %698 = vmatprep.subr.mxu0 0.0
  %699 = vmatpush2.msra.mxu0 0.0
  %700 = vmatprep.subr.mxu0 0.0
  %701 = vmatpush2.msra.mxu0 0.0
  %702 = vmatprep.subr.mxu0 0.0
  %703 = vmatpush2.msra.mxu0 0.0
  %704 = vmatprep.mubr.f32.mxu0 0.0
  %705 = vmatmul.mubr.f32.gmra.mxu0 %v638
  %v706 = vpop.f32.mrf.mxu0
  %v707 = vadd.f32 0.0, %v706
  %v708 = vpop.f32.mrf.mxu0
  %709 = vdwg.mxu0
  %v710 = vmul.f32 %v634, %v561
  %v711 = vmul.f32 %v707, %v563
  %712 = vrot.lane.b32.xlu0 %v140, 96
  %v713 = vpop.permute.xlu0 %712
  %714 = vrot.lane.b32.xlu0 %v238, 96
  %v715 = vpop.permute.xlu0 %714
  %716 = vrot.lane.b32.xlu0 %v243, 96
  %v717 = vpop.permute.xlu0 %716
  %v718 = vsel %vm382, %v713, 0
  %v720 = vsel %vm382, %v715, 0
  %v722 = vsel %vm382, %v717, 0
  %724 = vmatprep.subr.mxu0 0.0
  %725 = vmatpush1.xpose.msra.mxu0 0.0
  %726 = vmatprep.subr.mxu0 0.0
  %727 = vmatpush1.xpose.msra.mxu0 0.0
  %728 = vmatprep.subr.mxu0 0.0
  %729 = vmatpush1.xpose.msra.mxu0 0.0
  %730 = vmatprep.subr.mxu0 0.0
  %731 = vmatpush1.xpose.msra.mxu0 0.0
  %732 = vmatprep.subr.mxu0 0.0
  %733 = vmatpush1.xpose.msra.mxu0 0.0
  %734 = vmatprep.subr.mxu0 0.0
  %735 = vmatpush1.xpose.msra.mxu0 0.0
  %736 = vmatprep.subr.mxu0 0.0
  %737 = vmatpush1.xpose.msra.mxu0 0.0
  %738 = vmatprep.subr.mxu0 0.0
  %739 = vmatpush1.xpose.msra.mxu0 0.0
  %740 = vmatprep.subr.mxu0 0.0
  %741 = vmatpush1.xpose.msra.mxu0 0.0
  %742 = vmatprep.subr.mxu0 0.0
  %743 = vmatpush1.xpose.msra.mxu0 0.0
  %744 = vmatprep.subr.mxu0 0.0
  %745 = vmatpush1.xpose.msra.mxu0 0.0
  %746 = vmatprep.subr.mxu0 0.0
  %747 = vmatpush1.xpose.msra.mxu0 0.0
  %748 = vmatprep.subr.mxu0 0.0
  %749 = vmatpush1.xpose.msra.mxu0 0.0
  %750 = vmatprep.subr.mxu0 0.0
  %751 = vmatpush1.xpose.msra.mxu0 0.0
  %752 = vmatprep.subr.mxu0 0.0
  %753 = vmatpush1.xpose.msra.mxu0 %v722
  %754 = vmatprep.subr.mxu0 0.0
  %755 = vmatpush1.xpose.msra.mxu0 %v720
  %756 = vmatprep.subr.mxu0 0.0
  %757 = vmatpush2.xpose.msra.mxu0 0.0
  %758 = vmatprep.subr.mxu0 0.0
  %759 = vmatpush2.xpose.msra.mxu0 0.0
  %760 = vmatprep.subr.mxu0 0.0
  %761 = vmatpush2.xpose.msra.mxu0 0.0
  %762 = vmatprep.subr.mxu0 0.0
  %763 = vmatpush2.xpose.msra.mxu0 0.0
  %764 = vmatprep.subr.mxu0 0.0
  %765 = vmatpush2.xpose.msra.mxu0 0.0
  %766 = vmatprep.subr.mxu0 0.0
  %767 = vmatpush2.xpose.msra.mxu0 0.0
  %768 = vmatprep.subr.mxu0 0.0
  %769 = vmatpush2.xpose.msra.mxu0 0.0
  %770 = vmatprep.subr.mxu0 0.0
  %771 = vmatpush2.xpose.msra.mxu0 0.0
  %772 = vmatprep.subr.mxu0 0.0
  %773 = vmatpush2.xpose.msra.mxu0 0.0
  %774 = vmatprep.subr.mxu0 0.0
  %775 = vmatpush2.xpose.msra.mxu0 0.0
  %776 = vmatprep.subr.mxu0 0.0
  %777 = vmatpush2.xpose.msra.mxu0 0.0
  %778 = vmatprep.subr.mxu0 0.0
  %779 = vmatpush2.xpose.msra.mxu0 0.0
  %780 = vmatprep.subr.mxu0 0.0
  %781 = vmatpush2.xpose.msra.mxu0 0.0
  %782 = vmatprep.subr.mxu0 0.0
  %783 = vmatpush2.xpose.msra.mxu0 0.0
  %784 = vmatprep.subr.mxu0 0.0
  %785 = vmatpush2.xpose.msra.mxu0 0.0
  %786 = vmatprep.subr.mxu0 0.0
  %787 = vmatpush2.xpose.msra.mxu0 0.0
  %788 = vmatprep.mubr.f32.mxu0 0.0
  %789 = vmatmul.mubr.f32.gmra.mxu0 %v718
  %v790 = vpop.f32.mrf.mxu0
  %v791 = vadd.f32 %v364, %v790
  %v792 = vpop.f32.mrf.mxu0
  %793 = vdwg.mxu0
  %794 = vrot.lane.b32.xlu0 %v145, 96
  %v795 = vpop.permute.xlu0 %794
  %796 = vrot.lane.b32.xlu0 %v248, 96
  %v797 = vpop.permute.xlu0 %796
  %798 = vrot.lane.b32.xlu0 %v253, 96
  %v799 = vpop.permute.xlu0 %798
  %v800 = vsel %vm382, %v795, 0
  %v802 = vsel %vm382, %v797, 0
  %v804 = vsel %vm382, %v799, 0
  %806 = vmatprep.subr.mxu0 0.0
  %807 = vmatpush1.xpose.msra.mxu0 0.0
  %808 = vmatprep.subr.mxu0 0.0
  %809 = vmatpush1.xpose.msra.mxu0 0.0
  %810 = vmatprep.subr.mxu0 0.0
  %811 = vmatpush1.xpose.msra.mxu0 0.0
  %812 = vmatprep.subr.mxu0 0.0
  %813 = vmatpush1.xpose.msra.mxu0 0.0
  %814 = vmatprep.subr.mxu0 0.0
  %815 = vmatpush1.xpose.msra.mxu0 0.0
  %816 = vmatprep.subr.mxu0 0.0
  %817 = vmatpush1.xpose.msra.mxu0 0.0
  %818 = vmatprep.subr.mxu0 0.0
  %819 = vmatpush1.xpose.msra.mxu0 0.0
  %820 = vmatprep.subr.mxu0 0.0
  %821 = vmatpush1.xpose.msra.mxu0 0.0
  %822 = vmatprep.subr.mxu0 0.0
  %823 = vmatpush1.xpose.msra.mxu0 0.0
  %824 = vmatprep.subr.mxu0 0.0
  %825 = vmatpush1.xpose.msra.mxu0 0.0
  %826 = vmatprep.subr.mxu0 0.0
  %827 = vmatpush1.xpose.msra.mxu0 0.0
  %828 = vmatprep.subr.mxu0 0.0
  %829 = vmatpush1.xpose.msra.mxu0 0.0
  %830 = vmatprep.subr.mxu0 0.0
  %831 = vmatpush1.xpose.msra.mxu0 0.0
  %832 = vmatprep.subr.mxu0 0.0
  %833 = vmatpush1.xpose.msra.mxu0 0.0
  %834 = vmatprep.subr.mxu0 0.0
  %835 = vmatpush1.xpose.msra.mxu0 %v804
  %836 = vmatprep.subr.mxu0 0.0
  %837 = vmatpush1.xpose.msra.mxu0 %v802
  %838 = vmatprep.subr.mxu0 0.0
  %839 = vmatpush2.xpose.msra.mxu0 0.0
  %840 = vmatprep.subr.mxu0 0.0
  %841 = vmatpush2.xpose.msra.mxu0 0.0
  %842 = vmatprep.subr.mxu0 0.0
  %843 = vmatpush2.xpose.msra.mxu0 0.0
  %844 = vmatprep.subr.mxu0 0.0
  %845 = vmatpush2.xpose.msra.mxu0 0.0
  %846 = vmatprep.subr.mxu0 0.0
  %847 = vmatpush2.xpose.msra.mxu0 0.0
  %848 = vmatprep.subr.mxu0 0.0
  %849 = vmatpush2.xpose.msra.mxu0 0.0
  %850 = vmatprep.subr.mxu0 0.0
  %851 = vmatpush2.xpose.msra.mxu0 0.0
  %852 = vmatprep.subr.mxu0 0.0
  %853 = vmatpush2.xpose.msra.mxu0 0.0
  %854 = vmatprep.subr.mxu0 0.0
  %855 = vmatpush2.xpose.msra.mxu0 0.0
  %856 = vmatprep.subr.mxu0 0.0
  %857 = vmatpush2.xpose.msra.mxu0 0.0
  %858 = vmatprep.subr.mxu0 0.0
  %859 = vmatpush2.xpose.msra.mxu0 0.0
  %860 = vmatprep.subr.mxu0 0.0
  %861 = vmatpush2.xpose.msra.mxu0 0.0
  %862 = vmatprep.subr.mxu0 0.0
  %863 = vmatpush2.xpose.msra.mxu0 0.0
  %864 = vmatprep.subr.mxu0 0.0
  %865 = vmatpush2.xpose.msra.mxu0 0.0
  %866 = vmatprep.subr.mxu0 0.0
  %867 = vmatpush2.xpose.msra.mxu0 0.0
  %868 = vmatprep.subr.mxu0 0.0
  %869 = vmatpush2.xpose.msra.mxu0 0.0
  %870 = vmatprep.mubr.f32.mxu0 0.0
  %871 = vmatmul.mubr.f32.gmra.mxu0 %v800
  %v872 = vpop.f32.mrf.mxu0
  %v873 = vadd.f32 %v365, %v872
  %v874 = vpop.f32.mrf.mxu0
  %875 = vdwg.mxu0
  %v876 = vsel %vm541, %v791, -inf
  %877 = vmax.xlane.f32.xlu0 %v876
  %v878 = vpop.xlane.xlu0 %877
  %v879 = vsel %vm541, %v873, -inf
  %880 = vmax.xlane.f32.xlu0 %v879
  %v881 = vpop.xlane.xlu0 %880
  %v882 = vsub.f32 %v791, %v878
  %v883 = vsub.f32 %v873, %v881
  %v884 = vmul.f32 %v882, 1.442695
  %v885 = vpow.pop %v884
  %v886 = vmul.f32 %v883, 1.442695
  %v887 = vpow.pop %v886
  %v888 = vsel %vm541, %v885, 0.0
  %889 = vadd.xlane.f32.xlu0 %v888
  %v890 = vpop.xlane.xlu0 %889
  %v891 = vsel %vm541, %v887, 0.0
  %892 = vadd.xlane.f32.xlu0 %v891
  %v893 = vpop.xlane.xlu0 %892
  %v894 = vrcp.pop %v890
  %v895 = vmul.f32 1.0, %v894
  %v896 = vrcp.pop %v893
  %v897 = vmul.f32 1.0, %v896
  %900 = vrot.lane.b32.xlu0 %v346, 96
  %v901 = vpop.permute.xlu0 %900
  %902 = vrot.lane.b32.xlu0 %v351, 96
  %v903 = vpop.permute.xlu0 %902
  %v907 = vsel %vm541, %v885, 0
  %909 = vmatprep.subr.mxu0 0.0
  %910 = vmatpush1.msra.mxu0 0.0
  %911 = vmatprep.subr.mxu0 0.0
  %912 = vmatpush1.msra.mxu0 0.0
  %913 = vmatprep.subr.mxu0 0.0
  %914 = vmatpush1.msra.mxu0 0.0
  %915 = vmatprep.subr.mxu0 0.0
  %916 = vmatpush1.msra.mxu0 0.0
  %917 = vmatprep.subr.mxu0 0.0
  %918 = vmatpush1.msra.mxu0 0.0
  %919 = vmatprep.subr.mxu0 0.0
  %920 = vmatpush1.msra.mxu0 0.0
  %921 = vmatprep.subr.mxu0 0.0
  %922 = vmatpush1.msra.mxu0 0.0
  %923 = vmatprep.subr.mxu0 0.0
  %924 = vmatpush1.msra.mxu0 0.0
  %925 = vmatprep.subr.mxu0 0.0
  %926 = vmatpush1.msra.mxu0 0.0
  %927 = vmatprep.subr.mxu0 0.0
  %928 = vmatpush1.msra.mxu0 0.0
  %929 = vmatprep.subr.mxu0 0.0
  %930 = vmatpush1.msra.mxu0 0.0
  %931 = vmatprep.subr.mxu0 0.0
  %932 = vmatpush1.msra.mxu0 0.0
  %933 = vmatprep.subr.mxu0 0.0
  %934 = vmatpush1.msra.mxu0 0.0
  %935 = vmatprep.subr.mxu0 0.0
  %936 = vmatpush1.msra.mxu0 0.0
  %937 = vmatprep.subr.mxu0 0.0
  %938 = vmatpush1.msra.mxu0 %v903
  %939 = vmatprep.subr.mxu0 0.0
  %940 = vmatpush1.msra.mxu0 %v901
  %941 = vmatprep.subr.mxu0 0.0
  %942 = vmatpush2.msra.mxu0 0.0
  %943 = vmatprep.subr.mxu0 0.0
  %944 = vmatpush2.msra.mxu0 0.0
  %945 = vmatprep.subr.mxu0 0.0
  %946 = vmatpush2.msra.mxu0 0.0
  %947 = vmatprep.subr.mxu0 0.0
  %948 = vmatpush2.msra.mxu0 0.0
  %949 = vmatprep.subr.mxu0 0.0
  %950 = vmatpush2.msra.mxu0 0.0
  %951 = vmatprep.subr.mxu0 0.0
  %952 = vmatpush2.msra.mxu0 0.0
  %953 = vmatprep.subr.mxu0 0.0
  %954 = vmatpush2.msra.mxu0 0.0
  %955 = vmatprep.subr.mxu0 0.0
  %956 = vmatpush2.msra.mxu0 0.0
  %957 = vmatprep.subr.mxu0 0.0
  %958 = vmatpush2.msra.mxu0 0.0
  %959 = vmatprep.subr.mxu0 0.0
  %960 = vmatpush2.msra.mxu0 0.0
  %961 = vmatprep.subr.mxu0 0.0
  %962 = vmatpush2.msra.mxu0 0.0
  %963 = vmatprep.subr.mxu0 0.0
  %964 = vmatpush2.msra.mxu0 0.0
  %965 = vmatprep.subr.mxu0 0.0
  %966 = vmatpush2.msra.mxu0 0.0
  %967 = vmatprep.subr.mxu0 0.0
  %968 = vmatpush2.msra.mxu0 0.0
  %969 = vmatprep.subr.mxu0 0.0
  %970 = vmatpush2.msra.mxu0 0.0
  %971 = vmatprep.subr.mxu0 0.0
  %972 = vmatpush2.msra.mxu0 0.0
  %973 = vmatprep.mubr.f32.mxu0 0.0
  %974 = vmatmul.mubr.f32.gmra.mxu0 %v907
  %v975 = vpop.f32.mrf.mxu0
  %v976 = vadd.f32 0.0, %v975
  %v977 = vpop.f32.mrf.mxu0
  %978 = vdwg.mxu0
  %981 = vrot.lane.b32.xlu0 %v356, 96
  %v982 = vpop.permute.xlu0 %981
  %983 = vrot.lane.b32.xlu0 %v361, 96
  %v984 = vpop.permute.xlu0 %983
  %v988 = vsel %vm541, %v887, 0
  %990 = vmatprep.subr.mxu0 0.0
  %991 = vmatpush1.msra.mxu0 0.0
  %992 = vmatprep.subr.mxu0 0.0
  %993 = vmatpush1.msra.mxu0 0.0
  %994 = vmatprep.subr.mxu0 0.0
  %995 = vmatpush1.msra.mxu0 0.0
  %996 = vmatprep.subr.mxu0 0.0
  %997 = vmatpush1.msra.mxu0 0.0
  %998 = vmatprep.subr.mxu0 0.0
  %999 = vmatpush1.msra.mxu0 0.0
  %1000 = vmatprep.subr.mxu0 0.0
  %1001 = vmatpush1.msra.mxu0 0.0
  %1002 = vmatprep.subr.mxu0 0.0
  %1003 = vmatpush1.msra.mxu0 0.0
  %1004 = vmatprep.subr.mxu0 0.0
  %1005 = vmatpush1.msra.mxu0 0.0
  %1006 = vmatprep.subr.mxu0 0.0
  %1007 = vmatpush1.msra.mxu0 0.0
  %1008 = vmatprep.subr.mxu0 0.0
  %1009 = vmatpush1.msra.mxu0 0.0
  %1010 = vmatprep.subr.mxu0 0.0
  %1011 = vmatpush1.msra.mxu0 0.0
  %1012 = vmatprep.subr.mxu0 0.0
  %1013 = vmatpush1.msra.mxu0 0.0
  %1014 = vmatprep.subr.mxu0 0.0
  %1015 = vmatpush1.msra.mxu0 0.0
  %1016 = vmatprep.subr.mxu0 0.0
  %1017 = vmatpush1.msra.mxu0 0.0
  %1018 = vmatprep.subr.mxu0 0.0
  %1019 = vmatpush1.msra.mxu0 %v984
  %1020 = vmatprep.subr.mxu0 0.0
  %1021 = vmatpush1.msra.mxu0 %v982
  %1022 = vmatprep.subr.mxu0 0.0
  %1023 = vmatpush2.msra.mxu0 0.0
  %1024 = vmatprep.subr.mxu0 0.0
  %1025 = vmatpush2.msra.mxu0 0.0
  %1026 = vmatprep.subr.mxu0 0.0
  %1027 = vmatpush2.msra.mxu0 0.0
  %1028 = vmatprep.subr.mxu0 0.0
  %1029 = vmatpush2.msra.mxu0 0.0
  %1030 = vmatprep.subr.mxu0 0.0
  %1031 = vmatpush2.msra.mxu0 0.0
  %1032 = vmatprep.subr.mxu0 0.0
  %1033 = vmatpush2.msra.mxu0 0.0
  %1034 = vmatprep.subr.mxu0 0.0
  %1035 = vmatpush2.msra.mxu0 0.0
  %1036 = vmatprep.subr.mxu0 0.0
  %1037 = vmatpush2.msra.mxu0 0.0
  %1038 = vmatprep.subr.mxu0 0.0
  %1039 = vmatpush2.msra.mxu0 0.0
  %1040 = vmatprep.subr.mxu0 0.0
  %1041 = vmatpush2.msra.mxu0 0.0
  %1042 = vmatprep.subr.mxu0 0.0
  %1043 = vmatpush2.msra.mxu0 0.0
  %1044 = vmatprep.subr.mxu0 0.0
  %1045 = vmatpush2.msra.mxu0 0.0
  %1046 = vmatprep.subr.mxu0 0.0
  %1047 = vmatpush2.msra.mxu0 0.0
  %1048 = vmatprep.subr.mxu0 0.0
  %1049 = vmatpush2.msra.mxu0 0.0
  %1050 = vmatprep.subr.mxu0 0.0
  %1051 = vmatpush2.msra.mxu0 0.0
  %1052 = vmatprep.subr.mxu0 0.0
  %1053 = vmatpush2.msra.mxu0 0.0
  %1054 = vmatprep.mubr.f32.mxu0 0.0
  %1055 = vmatmul.mubr.f32.gmra.mxu0 %v988
  %v1056 = vpop.f32.mrf.mxu0
  %v1057 = vadd.f32 0.0, %v1056
  %v1058 = vpop.f32.mrf.mxu0
  %1059 = vdwg.mxu0
  %v1060 = vmul.f32 %v976, %v895
  %v1061 = vmul.f32 %v1057, %v897
  %v1063 = vsel %vm382, %v1060, 0
  %v1066 = vsel %vm382, %v1061, 0
  %1068 = vmatprep.subr.mxu0 0.0
  %1069 = vmatpush1.msra.mxu0 0.0
  %1070 = vmatprep.subr.mxu0 0.0
  %1071 = vmatpush1.msra.mxu0 0.0
  %1072 = vmatprep.subr.mxu0 0.0
  %1073 = vmatpush1.msra.mxu0 0.0
  %1074 = vmatprep.subr.mxu0 0.0
  %1075 = vmatpush1.msra.mxu0 0.0
  %1076 = vmatprep.subr.mxu0 0.0
  %1077 = vmatpush1.msra.mxu0 0.0
  %1078 = vmatprep.subr.mxu0 0.0
  %1079 = vmatpush1.msra.mxu0 0.0
  %1080 = vmatprep.subr.mxu0 0.0
  %1081 = vmatpush1.msra.mxu0 0.0
  %1082 = vmatprep.subr.mxu0 0.0
  %1083 = vmatpush1.msra.mxu0 0.0
  %1084 = vmatprep.subr.mxu0 0.0
  %1085 = vmatpush1.msra.mxu0 0.0
  %1086 = vmatprep.subr.mxu0 0.0
  %1087 = vmatpush1.msra.mxu0 0.0
  %1088 = vmatprep.subr.mxu0 0.0
  %1089 = vmatpush1.msra.mxu0 0.0
  %1090 = vmatprep.subr.mxu0 0.0
  %1091 = vmatpush1.msra.mxu0 0.0
  %1092 = vmatprep.subr.mxu0 0.0
  %1093 = vmatpush1.msra.mxu0 %v373
  %1094 = vmatprep.subr.mxu0 0.0
  %1095 = vmatpush1.msra.mxu0 %v372
  %1096 = vmatprep.subr.mxu0 0.0
  %1097 = vmatpush1.msra.mxu0 %v371
  %1098 = vmatprep.subr.mxu0 0.0
  %1099 = vmatpush1.msra.mxu0 %v370
  %1100 = vmatprep.subr.mxu0 0.0
  %1101 = vmatpush2.msra.mxu0 0.0
  %1102 = vmatprep.subr.mxu0 0.0
  %1103 = vmatpush2.msra.mxu0 0.0
  %1104 = vmatprep.subr.mxu0 0.0
  %1105 = vmatpush2.msra.mxu0 0.0
  %1106 = vmatprep.subr.mxu0 0.0
  %1107 = vmatpush2.msra.mxu0 0.0
  %1108 = vmatprep.subr.mxu0 0.0
  %1109 = vmatpush2.msra.mxu0 0.0
  %1110 = vmatprep.subr.mxu0 0.0
  %1111 = vmatpush2.msra.mxu0 0.0
  %1112 = vmatprep.subr.mxu0 0.0
  %1113 = vmatpush2.msra.mxu0 0.0
  %1114 = vmatprep.subr.mxu0 0.0
  %1115 = vmatpush2.msra.mxu0 0.0
  %1116 = vmatprep.subr.mxu0 0.0
  %1117 = vmatpush2.msra.mxu0 0.0
  %1118 = vmatprep.subr.mxu0 0.0
  %1119 = vmatpush2.msra.mxu0 0.0
  %1120 = vmatprep.subr.mxu0 0.0
  %1121 = vmatpush2.msra.mxu0 0.0
  %1122 = vmatprep.subr.mxu0 0.0
  %1123 = vmatpush2.msra.mxu0 0.0
  %1124 = vmatprep.subr.mxu0 0.0
  %1125 = vmatpush2.msra.mxu0 0.0
  %1126 = vmatprep.subr.mxu0 0.0
  %1127 = vmatpush2.msra.mxu0 0.0
  %1128 = vmatprep.subr.mxu0 0.0
  %1129 = vmatpush2.msra.mxu0 0.0
  %1130 = vmatprep.subr.mxu0 0.0
  %1131 = vmatpush2.msra.mxu0 0.0
  %1132 = vmatprep.mubr.f32.mxu0 0.0
  %1133 = vmatmul.mubr.f32.gmra.mxu0 %v1063
  %v1134 = vpop.f32.mrf.mxu0
  %v1135 = vadd.f32 0.0, %v1134
  %v1136 = vpop.f32.mrf.mxu0
  %1137 = vmatprep.mubr.f32.mxu0 0.0
  %1138 = vmatmul.mubr.f32.gmra.mxu0 %v1066
  %v1139 = vpop.f32.mrf.mxu0
  %v1140 = vadd.f32 0.0, %v1139
  %v1141 = vpop.f32.mrf.mxu0
  %1142 = vdwg.mxu0
  %v1144 = vsel %vm382, %v710, 0
  %v1147 = vsel %vm382, %v711, 0
  %1149 = vmatprep.subr.mxu0 0.0
  %1150 = vmatpush1.msra.mxu0 0.0
  %1151 = vmatprep.subr.mxu0 0.0
  %1152 = vmatpush1.msra.mxu0 0.0
  %1153 = vmatprep.subr.mxu0 0.0
  %1154 = vmatpush1.msra.mxu0 0.0
  %1155 = vmatprep.subr.mxu0 0.0
  %1156 = vmatpush1.msra.mxu0 0.0
  %1157 = vmatprep.subr.mxu0 0.0
  %1158 = vmatpush1.msra.mxu0 0.0
  %1159 = vmatprep.subr.mxu0 0.0
  %1160 = vmatpush1.msra.mxu0 0.0
  %1161 = vmatprep.subr.mxu0 0.0
  %1162 = vmatpush1.msra.mxu0 0.0
  %1163 = vmatprep.subr.mxu0 0.0
  %1164 = vmatpush1.msra.mxu0 0.0
  %1165 = vmatprep.subr.mxu0 0.0
  %1166 = vmatpush1.msra.mxu0 0.0
  %1167 = vmatprep.subr.mxu0 0.0
  %1168 = vmatpush1.msra.mxu0 0.0
  %1169 = vmatprep.subr.mxu0 0.0
  %1170 = vmatpush1.msra.mxu0 0.0
  %1171 = vmatprep.subr.mxu0 0.0
  %1172 = vmatpush1.msra.mxu0 0.0
  %1173 = vmatprep.subr.mxu0 0.0
  %1174 = vmatpush1.msra.mxu0 %v369
  %1175 = vmatprep.subr.mxu0 0.0
  %1176 = vmatpush1.msra.mxu0 %v368
  %1177 = vmatprep.subr.mxu0 0.0
  %1178 = vmatpush1.msra.mxu0 %v367
  %1179 = vmatprep.subr.mxu0 0.0
  %1180 = vmatpush1.msra.mxu0 %v366
  %1181 = vmatprep.subr.mxu0 0.0
  %1182 = vmatpush2.msra.mxu0 0.0
  %1183 = vmatprep.subr.mxu0 0.0
  %1184 = vmatpush2.msra.mxu0 0.0
  %1185 = vmatprep.subr.mxu0 0.0
  %1186 = vmatpush2.msra.mxu0 0.0
  %1187 = vmatprep.subr.mxu0 0.0
  %1188 = vmatpush2.msra.mxu0 0.0
  %1189 = vmatprep.subr.mxu0 0.0
  %1190 = vmatpush2.msra.mxu0 0.0
  %1191 = vmatprep.subr.mxu0 0.0
  %1192 = vmatpush2.msra.mxu0 0.0
  %1193 = vmatprep.subr.mxu0 0.0
  %1194 = vmatpush2.msra.mxu0 0.0
  %1195 = vmatprep.subr.mxu0 0.0
  %1196 = vmatpush2.msra.mxu0 0.0
  %1197 = vmatprep.subr.mxu0 0.0
  %1198 = vmatpush2.msra.mxu0 0.0
  %1199 = vmatprep.subr.mxu0 0.0
  %1200 = vmatpush2.msra.mxu0 0.0
  %1201 = vmatprep.subr.mxu0 0.0
  %1202 = vmatpush2.msra.mxu0 0.0
  %1203 = vmatprep.subr.mxu0 0.0
  %1204 = vmatpush2.msra.mxu0 0.0
  %1205 = vmatprep.subr.mxu0 0.0
  %1206 = vmatpush2.msra.mxu0 0.0
  %1207 = vmatprep.subr.mxu0 0.0
  %1208 = vmatpush2.msra.mxu0 0.0
  %1209 = vmatprep.subr.mxu0 0.0
  %1210 = vmatpush2.msra.mxu0 0.0
  %1211 = vmatprep.subr.mxu0 0.0
  %1212 = vmatpush2.msra.mxu0 0.0
  %1213 = vmatprep.mubr.f32.mxu0 0.0
  %1214 = vmatmul.mubr.f32.gmra.mxu0 %v1144
  %v1215 = vpop.f32.mrf.mxu0
  %v1216 = vadd.f32 %v1135, %v1215
  %v1217 = vpop.f32.mrf.mxu0
  %1218 = vmatprep.mubr.f32.mxu0 0.0
  %1219 = vmatmul.mubr.f32.gmra.mxu0 %v1147
  %v1220 = vpop.f32.mrf.mxu0
  %v1221 = vadd.f32 %v1140, %v1220
  %v1222 = vpop.f32.mrf.mxu0
  %1223 = vdwg.mxu0
  %1224 = vrot.lane.b32.xlu0 %v140, 64
  %v1225 = vpop.permute.xlu0 %1224
  %1226 = vrot.lane.b32.xlu0 %v238, 64
  %v1227 = vpop.permute.xlu0 %1226
  %1228 = vrot.lane.b32.xlu0 %v243, 64
  %v1229 = vpop.permute.xlu0 %1228
  %v1230 = vsel %vm382, %v1225, 0
  %v1232 = vsel %vm382, %v1227, 0
  %v1234 = vsel %vm382, %v1229, 0
  %1236 = vmatprep.subr.mxu0 0.0
  %1237 = vmatpush1.xpose.msra.mxu0 0.0
  %1238 = vmatprep.subr.mxu0 0.0
  %1239 = vmatpush1.xpose.msra.mxu0 0.0
  %1240 = vmatprep.subr.mxu0 0.0
  %1241 = vmatpush1.xpose.msra.mxu0 0.0
  %1242 = vmatprep.subr.mxu0 0.0
  %1243 = vmatpush1.xpose.msra.mxu0 0.0
  %1244 = vmatprep.subr.mxu0 0.0
  %1245 = vmatpush1.xpose.msra.mxu0 0.0
  %1246 = vmatprep.subr.mxu0 0.0
  %1247 = vmatpush1.xpose.msra.mxu0 0.0
  %1248 = vmatprep.subr.mxu0 0.0
  %1249 = vmatpush1.xpose.msra.mxu0 0.0
  %1250 = vmatprep.subr.mxu0 0.0
  %1251 = vmatpush1.xpose.msra.mxu0 0.0
  %1252 = vmatprep.subr.mxu0 0.0
  %1253 = vmatpush1.xpose.msra.mxu0 0.0
  %1254 = vmatprep.subr.mxu0 0.0
  %1255 = vmatpush1.xpose.msra.mxu0 0.0
  %1256 = vmatprep.subr.mxu0 0.0
  %1257 = vmatpush1.xpose.msra.mxu0 0.0
  %1258 = vmatprep.subr.mxu0 0.0
  %1259 = vmatpush1.xpose.msra.mxu0 0.0
  %1260 = vmatprep.subr.mxu0 0.0
  %1261 = vmatpush1.xpose.msra.mxu0 0.0
  %1262 = vmatprep.subr.mxu0 0.0
  %1263 = vmatpush1.xpose.msra.mxu0 0.0
  %1264 = vmatprep.subr.mxu0 0.0
  %1265 = vmatpush1.xpose.msra.mxu0 %v1234
  %1266 = vmatprep.subr.mxu0 0.0
  %1267 = vmatpush1.xpose.msra.mxu0 %v1232
  %1268 = vmatprep.subr.mxu0 0.0
  %1269 = vmatpush2.xpose.msra.mxu0 0.0
  %1270 = vmatprep.subr.mxu0 0.0
  %1271 = vmatpush2.xpose.msra.mxu0 0.0
  %1272 = vmatprep.subr.mxu0 0.0
  %1273 = vmatpush2.xpose.msra.mxu0 0.0
  %1274 = vmatprep.subr.mxu0 0.0
  %1275 = vmatpush2.xpose.msra.mxu0 0.0
  %1276 = vmatprep.subr.mxu0 0.0
  %1277 = vmatpush2.xpose.msra.mxu0 0.0
  %1278 = vmatprep.subr.mxu0 0.0
  %1279 = vmatpush2.xpose.msra.mxu0 0.0
  %1280 = vmatprep.subr.mxu0 0.0
  %1281 = vmatpush2.xpose.msra.mxu0 0.0
  %1282 = vmatprep.subr.mxu0 0.0
  %1283 = vmatpush2.xpose.msra.mxu0 0.0
  %1284 = vmatprep.subr.mxu0 0.0
  %1285 = vmatpush2.xpose.msra.mxu0 0.0
  %1286 = vmatprep.subr.mxu0 0.0
  %1287 = vmatpush2.xpose.msra.mxu0 0.0
  %1288 = vmatprep.subr.mxu0 0.0
  %1289 = vmatpush2.xpose.msra.mxu0 0.0
  %1290 = vmatprep.subr.mxu0 0.0
  %1291 = vmatpush2.xpose.msra.mxu0 0.0
  %1292 = vmatprep.subr.mxu0 0.0
  %1293 = vmatpush2.xpose.msra.mxu0 0.0
  %1294 = vmatprep.subr.mxu0 0.0
  %1295 = vmatpush2.xpose.msra.mxu0 0.0
  %1296 = vmatprep.subr.mxu0 0.0
  %1297 = vmatpush2.xpose.msra.mxu0 0.0
  %1298 = vmatprep.subr.mxu0 0.0
  %1299 = vmatpush2.xpose.msra.mxu0 0.0
  %1300 = vmatprep.mubr.f32.mxu0 0.0
  %1301 = vmatmul.mubr.f32.gmra.mxu0 %v1230
  %v1302 = vpop.f32.mrf.mxu0
  %v1303 = vadd.f32 %v364, %v1302
  %v1304 = vpop.f32.mrf.mxu0
  %1305 = vdwg.mxu0
  %1306 = vrot.lane.b32.xlu0 %v145, 64
  %v1307 = vpop.permute.xlu0 %1306
  %1308 = vrot.lane.b32.xlu0 %v248, 64
  %v1309 = vpop.permute.xlu0 %1308
  %1310 = vrot.lane.b32.xlu0 %v253, 64
  %v1311 = vpop.permute.xlu0 %1310
  %v1312 = vsel %vm382, %v1307, 0
  %v1314 = vsel %vm382, %v1309, 0
  %v1316 = vsel %vm382, %v1311, 0
  %1318 = vmatprep.subr.mxu0 0.0
  %1319 = vmatpush1.xpose.msra.mxu0 0.0
  %1320 = vmatprep.subr.mxu0 0.0
  %1321 = vmatpush1.xpose.msra.mxu0 0.0
  %1322 = vmatprep.subr.mxu0 0.0
  %1323 = vmatpush1.xpose.msra.mxu0 0.0
  %1324 = vmatprep.subr.mxu0 0.0
  %1325 = vmatpush1.xpose.msra.mxu0 0.0
  %1326 = vmatprep.subr.mxu0 0.0
  %1327 = vmatpush1.xpose.msra.mxu0 0.0
  %1328 = vmatprep.subr.mxu0 0.0
  %1329 = vmatpush1.xpose.msra.mxu0 0.0
  %1330 = vmatprep.subr.mxu0 0.0
  %1331 = vmatpush1.xpose.msra.mxu0 0.0
  %1332 = vmatprep.subr.mxu0 0.0
  %1333 = vmatpush1.xpose.msra.mxu0 0.0
  %1334 = vmatprep.subr.mxu0 0.0
  %1335 = vmatpush1.xpose.msra.mxu0 0.0
  %1336 = vmatprep.subr.mxu0 0.0
  %1337 = vmatpush1.xpose.msra.mxu0 0.0
  %1338 = vmatprep.subr.mxu0 0.0
  %1339 = vmatpush1.xpose.msra.mxu0 0.0
  %1340 = vmatprep.subr.mxu0 0.0
  %1341 = vmatpush1.xpose.msra.mxu0 0.0
  %1342 = vmatprep.subr.mxu0 0.0
  %1343 = vmatpush1.xpose.msra.mxu0 0.0
  %1344 = vmatprep.subr.mxu0 0.0
  %1345 = vmatpush1.xpose.msra.mxu0 0.0
  %1346 = vmatprep.subr.mxu0 0.0
  %1347 = vmatpush1.xpose.msra.mxu0 %v1316
  %1348 = vmatprep.subr.mxu0 0.0
  %1349 = vmatpush1.xpose.msra.mxu0 %v1314
  %1350 = vmatprep.subr.mxu0 0.0
  %1351 = vmatpush2.xpose.msra.mxu0 0.0
  %1352 = vmatprep.subr.mxu0 0.0
  %1353 = vmatpush2.xpose.msra.mxu0 0.0
  %1354 = vmatprep.subr.mxu0 0.0
  %1355 = vmatpush2.xpose.msra.mxu0 0.0
  %1356 = vmatprep.subr.mxu0 0.0
  %1357 = vmatpush2.xpose.msra.mxu0 0.0
  %1358 = vmatprep.subr.mxu0 0.0
  %1359 = vmatpush2.xpose.msra.mxu0 0.0
  %1360 = vmatprep.subr.mxu0 0.0
  %1361 = vmatpush2.xpose.msra.mxu0 0.0
  %1362 = vmatprep.subr.mxu0 0.0
  %1363 = vmatpush2.xpose.msra.mxu0 0.0
  %1364 = vmatprep.subr.mxu0 0.0
  %1365 = vmatpush2.xpose.msra.mxu0 0.0
  %1366 = vmatprep.subr.mxu0 0.0
  %1367 = vmatpush2.xpose.msra.mxu0 0.0
  %1368 = vmatprep.subr.mxu0 0.0
  %1369 = vmatpush2.xpose.msra.mxu0 0.0
  %1370 = vmatprep.subr.mxu0 0.0
  %1371 = vmatpush2.xpose.msra.mxu0 0.0
  %1372 = vmatprep.subr.mxu0 0.0
  %1373 = vmatpush2.xpose.msra.mxu0 0.0
  %1374 = vmatprep.subr.mxu0 0.0
  %1375 = vmatpush2.xpose.msra.mxu0 0.0
  %1376 = vmatprep.subr.mxu0 0.0
  %1377 = vmatpush2.xpose.msra.mxu0 0.0
  %1378 = vmatprep.subr.mxu0 0.0
  %1379 = vmatpush2.xpose.msra.mxu0 0.0
  %1380 = vmatprep.subr.mxu0 0.0
  %1381 = vmatpush2.xpose.msra.mxu0 0.0
  %1382 = vmatprep.mubr.f32.mxu0 0.0
  %1383 = vmatmul.mubr.f32.gmra.mxu0 %v1312
  %v1384 = vpop.f32.mrf.mxu0
  %v1385 = vadd.f32 %v365, %v1384
  %v1386 = vpop.f32.mrf.mxu0
  %1387 = vdwg.mxu0
  %v1388 = vsel %vm541, %v1303, -inf
  %1389 = vmax.xlane.f32.xlu0 %v1388
  %v1390 = vpop.xlane.xlu0 %1389
  %v1391 = vsel %vm541, %v1385, -inf
  %1392 = vmax.xlane.f32.xlu0 %v1391
  %v1393 = vpop.xlane.xlu0 %1392
  %v1394 = vsub.f32 %v1303, %v1390
  %v1395 = vsub.f32 %v1385, %v1393
  %v1396 = vmul.f32 %v1394, 1.442695
  %v1397 = vpow.pop %v1396
  %v1398 = vmul.f32 %v1395, 1.442695
  %v1399 = vpow.pop %v1398
  %v1400 = vsel %vm541, %v1397, 0.0
  %1401 = vadd.xlane.f32.xlu0 %v1400
  %v1402 = vpop.xlane.xlu0 %1401
  %v1403 = vsel %vm541, %v1399, 0.0
  %1404 = vadd.xlane.f32.xlu0 %v1403
  %v1405 = vpop.xlane.xlu0 %1404
  %v1406 = vrcp.pop %v1402
  %v1407 = vmul.f32 1.0, %v1406
  %v1408 = vrcp.pop %v1405
  %v1409 = vmul.f32 1.0, %v1408
  %1410 = vrot.lane.b32.xlu0 %v346, 64
  %v1411 = vpop.permute.xlu0 %1410
  %1412 = vrot.lane.b32.xlu0 %v351, 64
  %v1413 = vpop.permute.xlu0 %1412
  %v1417 = vsel %vm541, %v1397, 0
  %1419 = vmatprep.subr.mxu0 0.0
  %1420 = vmatpush1.msra.mxu0 0.0
  %1421 = vmatprep.subr.mxu0 0.0
  %1422 = vmatpush1.msra.mxu0 0.0
  %1423 = vmatprep.subr.mxu0 0.0
  %1424 = vmatpush1.msra.mxu0 0.0
  %1425 = vmatprep.subr.mxu0 0.0
  %1426 = vmatpush1.msra.mxu0 0.0
  %1427 = vmatprep.subr.mxu0 0.0
  %1428 = vmatpush1.msra.mxu0 0.0
  %1429 = vmatprep.subr.mxu0 0.0
  %1430 = vmatpush1.msra.mxu0 0.0
  %1431 = vmatprep.subr.mxu0 0.0
  %1432 = vmatpush1.msra.mxu0 0.0
  %1433 = vmatprep.subr.mxu0 0.0
  %1434 = vmatpush1.msra.mxu0 0.0
  %1435 = vmatprep.subr.mxu0 0.0
  %1436 = vmatpush1.msra.mxu0 0.0
  %1437 = vmatprep.subr.mxu0 0.0
  %1438 = vmatpush1.msra.mxu0 0.0
  %1439 = vmatprep.subr.mxu0 0.0
  %1440 = vmatpush1.msra.mxu0 0.0
  %1441 = vmatprep.subr.mxu0 0.0
  %1442 = vmatpush1.msra.mxu0 0.0
  %1443 = vmatprep.subr.mxu0 0.0
  %1444 = vmatpush1.msra.mxu0 0.0
  %1445 = vmatprep.subr.mxu0 0.0
  %1446 = vmatpush1.msra.mxu0 0.0
  %1447 = vmatprep.subr.mxu0 0.0
  %1448 = vmatpush1.msra.mxu0 %v1413
  %1449 = vmatprep.subr.mxu0 0.0
  %1450 = vmatpush1.msra.mxu0 %v1411
  %1451 = vmatprep.subr.mxu0 0.0
  %1452 = vmatpush2.msra.mxu0 0.0
  %1453 = vmatprep.subr.mxu0 0.0
  %1454 = vmatpush2.msra.mxu0 0.0
  %1455 = vmatprep.subr.mxu0 0.0
  %1456 = vmatpush2.msra.mxu0 0.0
  %1457 = vmatprep.subr.mxu0 0.0
  %1458 = vmatpush2.msra.mxu0 0.0
  %1459 = vmatprep.subr.mxu0 0.0
  %1460 = vmatpush2.msra.mxu0 0.0
  %1461 = vmatprep.subr.mxu0 0.0
  %1462 = vmatpush2.msra.mxu0 0.0
  %1463 = vmatprep.subr.mxu0 0.0
  %1464 = vmatpush2.msra.mxu0 0.0
  %1465 = vmatprep.subr.mxu0 0.0
  %1466 = vmatpush2.msra.mxu0 0.0
  %1467 = vmatprep.subr.mxu0 0.0
  %1468 = vmatpush2.msra.mxu0 0.0
  %1469 = vmatprep.subr.mxu0 0.0
  %1470 = vmatpush2.msra.mxu0 0.0
  %1471 = vmatprep.subr.mxu0 0.0
  %1472 = vmatpush2.msra.mxu0 0.0
  %1473 = vmatprep.subr.mxu0 0.0
  %1474 = vmatpush2.msra.mxu0 0.0
  %1475 = vmatprep.subr.mxu0 0.0
  %1476 = vmatpush2.msra.mxu0 0.0
  %1477 = vmatprep.subr.mxu0 0.0
  %1478 = vmatpush2.msra.mxu0 0.0
  %1479 = vmatprep.subr.mxu0 0.0
  %1480 = vmatpush2.msra.mxu0 0.0
  %1481 = vmatprep.subr.mxu0 0.0
  %1482 = vmatpush2.msra.mxu0 0.0
  %1483 = vmatprep.mubr.f32.mxu0 0.0
  %1484 = vmatmul.mubr.f32.gmra.mxu0 %v1417
  %v1485 = vpop.f32.mrf.mxu0
  %v1486 = vadd.f32 0.0, %v1485
  %v1487 = vpop.f32.mrf.mxu0
  %1488 = vdwg.mxu0
  %1489 = vrot.lane.b32.xlu0 %v356, 64
  %v1490 = vpop.permute.xlu0 %1489
  %1491 = vrot.lane.b32.xlu0 %v361, 64
  %v1492 = vpop.permute.xlu0 %1491
  %v1496 = vsel %vm541, %v1399, 0
  %1498 = vmatprep.subr.mxu0 0.0
  %1499 = vmatpush1.msra.mxu0 0.0
  %1500 = vmatprep.subr.mxu0 0.0
  %1501 = vmatpush1.msra.mxu0 0.0
  %1502 = vmatprep.subr.mxu0 0.0
  %1503 = vmatpush1.msra.mxu0 0.0
  %1504 = vmatprep.subr.mxu0 0.0
  %1505 = vmatpush1.msra.mxu0 0.0
  %1506 = vmatprep.subr.mxu0 0.0
  %1507 = vmatpush1.msra.mxu0 0.0
  %1508 = vmatprep.subr.mxu0 0.0
  %1509 = vmatpush1.msra.mxu0 0.0
  %1510 = vmatprep.subr.mxu0 0.0
  %1511 = vmatpush1.msra.mxu0 0.0
  %1512 = vmatprep.subr.mxu0 0.0
  %1513 = vmatpush1.msra.mxu0 0.0
  %1514 = vmatprep.subr.mxu0 0.0
  %1515 = vmatpush1.msra.mxu0 0.0
  %1516 = vmatprep.subr.mxu0 0.0
  %1517 = vmatpush1.msra.mxu0 0.0
  %1518 = vmatprep.subr.mxu0 0.0
  %1519 = vmatpush1.msra.mxu0 0.0
  %1520 = vmatprep.subr.mxu0 0.0
  %1521 = vmatpush1.msra.mxu0 0.0
  %1522 = vmatprep.subr.mxu0 0.0
  %1523 = vmatpush1.msra.mxu0 0.0
  %1524 = vmatprep.subr.mxu0 0.0
  %1525 = vmatpush1.msra.mxu0 0.0
  %1526 = vmatprep.subr.mxu0 0.0
  %1527 = vmatpush1.msra.mxu0 %v1492
  %1528 = vmatprep.subr.mxu0 0.0
  %1529 = vmatpush1.msra.mxu0 %v1490
  %1530 = vmatprep.subr.mxu0 0.0
  %1531 = vmatpush2.msra.mxu0 0.0
  %1532 = vmatprep.subr.mxu0 0.0
  %1533 = vmatpush2.msra.mxu0 0.0
  %1534 = vmatprep.subr.mxu0 0.0
  %1535 = vmatpush2.msra.mxu0 0.0
  %1536 = vmatprep.subr.mxu0 0.0
  %1537 = vmatpush2.msra.mxu0 0.0
  %1538 = vmatprep.subr.mxu0 0.0
  %1539 = vmatpush2.msra.mxu0 0.0
  %1540 = vmatprep.subr.mxu0 0.0
  %1541 = vmatpush2.msra.mxu0 0.0
  %1542 = vmatprep.subr.mxu0 0.0
  %1543 = vmatpush2.msra.mxu0 0.0
  %1544 = vmatprep.subr.mxu0 0.0
  %1545 = vmatpush2.msra.mxu0 0.0
  %1546 = vmatprep.subr.mxu0 0.0
  %1547 = vmatpush2.msra.mxu0 0.0
  %1548 = vmatprep.subr.mxu0 0.0
  %1549 = vmatpush2.msra.mxu0 0.0
  %1550 = vmatprep.subr.mxu0 0.0
  %1551 = vmatpush2.msra.mxu0 0.0
  %1552 = vmatprep.subr.mxu0 0.0
  %1553 = vmatpush2.msra.mxu0 0.0
  %1554 = vmatprep.subr.mxu0 0.0
  %1555 = vmatpush2.msra.mxu0 0.0
  %1556 = vmatprep.subr.mxu0 0.0
  %1557 = vmatpush2.msra.mxu0 0.0
  %1558 = vmatprep.subr.mxu0 0.0
  %1559 = vmatpush2.msra.mxu0 0.0
  %1560 = vmatprep.subr.mxu0 0.0
  %1561 = vmatpush2.msra.mxu0 0.0
  %1562 = vmatprep.mubr.f32.mxu0 0.0
  %1563 = vmatmul.mubr.f32.gmra.mxu0 %v1496
  %v1564 = vpop.f32.mrf.mxu0
  %v1565 = vadd.f32 0.0, %v1564
  %v1566 = vpop.f32.mrf.mxu0
  %1567 = vdwg.mxu0
  %v1568 = vmul.f32 %v1486, %v1407
  %v1569 = vmul.f32 %v1565, %v1409
  %v1571 = vsel %vm382, %v1568, 0
  %v1574 = vsel %vm382, %v1569, 0
  %1576 = vmatprep.subr.mxu0 0.0
  %1577 = vmatpush1.msra.mxu0 0.0
  %1578 = vmatprep.subr.mxu0 0.0
  %1579 = vmatpush1.msra.mxu0 0.0
  %1580 = vmatprep.subr.mxu0 0.0
  %1581 = vmatpush1.msra.mxu0 0.0
  %1582 = vmatprep.subr.mxu0 0.0
  %1583 = vmatpush1.msra.mxu0 0.0
  %1584 = vmatprep.subr.mxu0 0.0
  %1585 = vmatpush1.msra.mxu0 0.0
  %1586 = vmatprep.subr.mxu0 0.0
  %1587 = vmatpush1.msra.mxu0 0.0
  %1588 = vmatprep.subr.mxu0 0.0
  %1589 = vmatpush1.msra.mxu0 0.0
  %1590 = vmatprep.subr.mxu0 0.0
  %1591 = vmatpush1.msra.mxu0 0.0
  %1592 = vmatprep.subr.mxu0 0.0
  %1593 = vmatpush1.msra.mxu0 0.0
  %1594 = vmatprep.subr.mxu0 0.0
  %1595 = vmatpush1.msra.mxu0 0.0
  %1596 = vmatprep.subr.mxu0 0.0
  %1597 = vmatpush1.msra.mxu0 0.0
  %1598 = vmatprep.subr.mxu0 0.0
  %1599 = vmatpush1.msra.mxu0 0.0
  %1600 = vmatprep.subr.mxu0 0.0
  %1601 = vmatpush1.msra.mxu0 %v377
  %1602 = vmatprep.subr.mxu0 0.0
  %1603 = vmatpush1.msra.mxu0 %v376
  %1604 = vmatprep.subr.mxu0 0.0
  %1605 = vmatpush1.msra.mxu0 %v375
  %1606 = vmatprep.subr.mxu0 0.0
  %1607 = vmatpush1.msra.mxu0 %v374
  %1608 = vmatprep.subr.mxu0 0.0
  %1609 = vmatpush2.msra.mxu0 0.0
  %1610 = vmatprep.subr.mxu0 0.0
  %1611 = vmatpush2.msra.mxu0 0.0
  %1612 = vmatprep.subr.mxu0 0.0
  %1613 = vmatpush2.msra.mxu0 0.0
  %1614 = vmatprep.subr.mxu0 0.0
  %1615 = vmatpush2.msra.mxu0 0.0
  %1616 = vmatprep.subr.mxu0 0.0
  %1617 = vmatpush2.msra.mxu0 0.0
  %1618 = vmatprep.subr.mxu0 0.0
  %1619 = vmatpush2.msra.mxu0 0.0
  %1620 = vmatprep.subr.mxu0 0.0
  %1621 = vmatpush2.msra.mxu0 0.0
  %1622 = vmatprep.subr.mxu0 0.0
  %1623 = vmatpush2.msra.mxu0 0.0
  %1624 = vmatprep.subr.mxu0 0.0
  %1625 = vmatpush2.msra.mxu0 0.0
  %1626 = vmatprep.subr.mxu0 0.0
  %1627 = vmatpush2.msra.mxu0 0.0
  %1628 = vmatprep.subr.mxu0 0.0
  %1629 = vmatpush2.msra.mxu0 0.0
  %1630 = vmatprep.subr.mxu0 0.0
  %1631 = vmatpush2.msra.mxu0 0.0
  %1632 = vmatprep.subr.mxu0 0.0
  %1633 = vmatpush2.msra.mxu0 0.0
  %1634 = vmatprep.subr.mxu0 0.0
  %1635 = vmatpush2.msra.mxu0 0.0
  %1636 = vmatprep.subr.mxu0 0.0
  %1637 = vmatpush2.msra.mxu0 0.0
  %1638 = vmatprep.subr.mxu0 0.0
  %1639 = vmatpush2.msra.mxu0 0.0
  %1640 = vmatprep.mubr.f32.mxu0 0.0
  %1641 = vmatmul.mubr.f32.gmra.mxu0 %v1571
  %v1642 = vpop.f32.mrf.mxu0
  %v1643 = vadd.f32 0.0, %v1642
  %v1644 = vpop.f32.mrf.mxu0
  %1645 = vmatprep.mubr.f32.mxu0 0.0
  %1646 = vmatmul.mubr.f32.gmra.mxu0 %v1574
  %v1647 = vpop.f32.mrf.mxu0
  %v1648 = vadd.f32 0.0, %v1647
  %v1649 = vpop.f32.mrf.mxu0
  %1650 = vdwg.mxu0
  %v1651 = vadd.f32 %v1216, %v1643
  %v1652 = vadd.f32 %v1221, %v1648
  %1653 = vrot.lane.b32.xlu0 %v140, 32
  %v1654 = vpop.permute.xlu0 %1653
  %1655 = vrot.lane.b32.xlu0 %v238, 32
  %v1656 = vpop.permute.xlu0 %1655
  %1657 = vrot.lane.b32.xlu0 %v243, 32
  %v1658 = vpop.permute.xlu0 %1657
  %v1659 = vsel %vm382, %v1654, 0
  %v1661 = vsel %vm382, %v1656, 0
  %v1663 = vsel %vm382, %v1658, 0
  %1665 = vmatprep.subr.mxu0 0.0
  %1666 = vmatpush1.xpose.msra.mxu0 0.0
  %1667 = vmatprep.subr.mxu0 0.0
  %1668 = vmatpush1.xpose.msra.mxu0 0.0
  %1669 = vmatprep.subr.mxu0 0.0
  %1670 = vmatpush1.xpose.msra.mxu0 0.0
  %1671 = vmatprep.subr.mxu0 0.0
  %1672 = vmatpush1.xpose.msra.mxu0 0.0
  %1673 = vmatprep.subr.mxu0 0.0
  %1674 = vmatpush1.xpose.msra.mxu0 0.0
  %1675 = vmatprep.subr.mxu0 0.0
  %1676 = vmatpush1.xpose.msra.mxu0 0.0
  %1677 = vmatprep.subr.mxu0 0.0
  %1678 = vmatpush1.xpose.msra.mxu0 0.0
  %1679 = vmatprep.subr.mxu0 0.0
  %1680 = vmatpush1.xpose.msra.mxu0 0.0
  %1681 = vmatprep.subr.mxu0 0.0
  %1682 = vmatpush1.xpose.msra.mxu0 0.0
  %1683 = vmatprep.subr.mxu0 0.0
  %1684 = vmatpush1.xpose.msra.mxu0 0.0
  %1685 = vmatprep.subr.mxu0 0.0
  %1686 = vmatpush1.xpose.msra.mxu0 0.0
  %1687 = vmatprep.subr.mxu0 0.0
  %1688 = vmatpush1.xpose.msra.mxu0 0.0
  %1689 = vmatprep.subr.mxu0 0.0
  %1690 = vmatpush1.xpose.msra.mxu0 0.0
  %1691 = vmatprep.subr.mxu0 0.0
  %1692 = vmatpush1.xpose.msra.mxu0 0.0
  %1693 = vmatprep.subr.mxu0 0.0
  %1694 = vmatpush1.xpose.msra.mxu0 %v1663
  %1695 = vmatprep.subr.mxu0 0.0
  %1696 = vmatpush1.xpose.msra.mxu0 %v1661
  %1697 = vmatprep.subr.mxu0 0.0
  %1698 = vmatpush2.xpose.msra.mxu0 0.0
  %1699 = vmatprep.subr.mxu0 0.0
  %1700 = vmatpush2.xpose.msra.mxu0 0.0
  %1701 = vmatprep.subr.mxu0 0.0
  %1702 = vmatpush2.xpose.msra.mxu0 0.0
  %1703 = vmatprep.subr.mxu0 0.0
  %1704 = vmatpush2.xpose.msra.mxu0 0.0
  %1705 = vmatprep.subr.mxu0 0.0
  %1706 = vmatpush2.xpose.msra.mxu0 0.0
  %1707 = vmatprep.subr.mxu0 0.0
  %1708 = vmatpush2.xpose.msra.mxu0 0.0
  %1709 = vmatprep.subr.mxu0 0.0
  %1710 = vmatpush2.xpose.msra.mxu0 0.0
  %1711 = vmatprep.subr.mxu0 0.0
  %1712 = vmatpush2.xpose.msra.mxu0 0.0
  %1713 = vmatprep.subr.mxu0 0.0
  %1714 = vmatpush2.xpose.msra.mxu0 0.0
  %1715 = vmatprep.subr.mxu0 0.0
  %1716 = vmatpush2.xpose.msra.mxu0 0.0
  %1717 = vmatprep.subr.mxu0 0.0
  %1718 = vmatpush2.xpose.msra.mxu0 0.0
  %1719 = vmatprep.subr.mxu0 0.0
  %1720 = vmatpush2.xpose.msra.mxu0 0.0
  %1721 = vmatprep.subr.mxu0 0.0
  %1722 = vmatpush2.xpose.msra.mxu0 0.0
  %1723 = vmatprep.subr.mxu0 0.0
  %1724 = vmatpush2.xpose.msra.mxu0 0.0
  %1725 = vmatprep.subr.mxu0 0.0
  %1726 = vmatpush2.xpose.msra.mxu0 0.0
  %1727 = vmatprep.subr.mxu0 0.0
  %1728 = vmatpush2.xpose.msra.mxu0 0.0
  %1729 = vmatprep.mubr.f32.mxu0 0.0
  %1730 = vmatmul.mubr.f32.gmra.mxu0 %v1659
  %v1731 = vpop.f32.mrf.mxu0
  %v1732 = vadd.f32 %v364, %v1731
  %v1733 = vpop.f32.mrf.mxu0
  %1734 = vdwg.mxu0
  %1735 = vrot.lane.b32.xlu0 %v145, 32
  %v1736 = vpop.permute.xlu0 %1735
  %1737 = vrot.lane.b32.xlu0 %v248, 32
  %v1738 = vpop.permute.xlu0 %1737
  %1739 = vrot.lane.b32.xlu0 %v253, 32
  %v1740 = vpop.permute.xlu0 %1739
  %v1741 = vsel %vm382, %v1736, 0
  %v1743 = vsel %vm382, %v1738, 0
  %v1745 = vsel %vm382, %v1740, 0
  %1747 = vmatprep.subr.mxu0 0.0
  %1748 = vmatpush1.xpose.msra.mxu0 0.0
  %1749 = vmatprep.subr.mxu0 0.0
  %1750 = vmatpush1.xpose.msra.mxu0 0.0
  %1751 = vmatprep.subr.mxu0 0.0
  %1752 = vmatpush1.xpose.msra.mxu0 0.0
  %1753 = vmatprep.subr.mxu0 0.0
  %1754 = vmatpush1.xpose.msra.mxu0 0.0
  %1755 = vmatprep.subr.mxu0 0.0
  %1756 = vmatpush1.xpose.msra.mxu0 0.0
  %1757 = vmatprep.subr.mxu0 0.0
  %1758 = vmatpush1.xpose.msra.mxu0 0.0
  %1759 = vmatprep.subr.mxu0 0.0
  %1760 = vmatpush1.xpose.msra.mxu0 0.0
  %1761 = vmatprep.subr.mxu0 0.0
  %1762 = vmatpush1.xpose.msra.mxu0 0.0
  %1763 = vmatprep.subr.mxu0 0.0
  %1764 = vmatpush1.xpose.msra.mxu0 0.0
  %1765 = vmatprep.subr.mxu0 0.0
  %1766 = vmatpush1.xpose.msra.mxu0 0.0
  %1767 = vmatprep.subr.mxu0 0.0
  %1768 = vmatpush1.xpose.msra.mxu0 0.0
  %1769 = vmatprep.subr.mxu0 0.0
  %1770 = vmatpush1.xpose.msra.mxu0 0.0
  %1771 = vmatprep.subr.mxu0 0.0
  %1772 = vmatpush1.xpose.msra.mxu0 0.0
  %1773 = vmatprep.subr.mxu0 0.0
  %1774 = vmatpush1.xpose.msra.mxu0 0.0
  %1775 = vmatprep.subr.mxu0 0.0
  %1776 = vmatpush1.xpose.msra.mxu0 %v1745
  %1777 = vmatprep.subr.mxu0 0.0
  %1778 = vmatpush1.xpose.msra.mxu0 %v1743
  %1779 = vmatprep.subr.mxu0 0.0
  %1780 = vmatpush2.xpose.msra.mxu0 0.0
  %1781 = vmatprep.subr.mxu0 0.0
  %1782 = vmatpush2.xpose.msra.mxu0 0.0
  %1783 = vmatprep.subr.mxu0 0.0
  %1784 = vmatpush2.xpose.msra.mxu0 0.0
  %1785 = vmatprep.subr.mxu0 0.0
  %1786 = vmatpush2.xpose.msra.mxu0 0.0
  %1787 = vmatprep.subr.mxu0 0.0
  %1788 = vmatpush2.xpose.msra.mxu0 0.0
  %1789 = vmatprep.subr.mxu0 0.0
  %1790 = vmatpush2.xpose.msra.mxu0 0.0
  %1791 = vmatprep.subr.mxu0 0.0
  %1792 = vmatpush2.xpose.msra.mxu0 0.0
  %1793 = vmatprep.subr.mxu0 0.0
  %1794 = vmatpush2.xpose.msra.mxu0 0.0
  %1795 = vmatprep.subr.mxu0 0.0
  %1796 = vmatpush2.xpose.msra.mxu0 0.0
  %1797 = vmatprep.subr.mxu0 0.0
  %1798 = vmatpush2.xpose.msra.mxu0 0.0
  %1799 = vmatprep.subr.mxu0 0.0
  %1800 = vmatpush2.xpose.msra.mxu0 0.0
  %1801 = vmatprep.subr.mxu0 0.0
  %1802 = vmatpush2.xpose.msra.mxu0 0.0
  %1803 = vmatprep.subr.mxu0 0.0
  %1804 = vmatpush2.xpose.msra.mxu0 0.0
  %1805 = vmatprep.subr.mxu0 0.0
  %1806 = vmatpush2.xpose.msra.mxu0 0.0
  %1807 = vmatprep.subr.mxu0 0.0
  %1808 = vmatpush2.xpose.msra.mxu0 0.0
  %1809 = vmatprep.subr.mxu0 0.0
  %1810 = vmatpush2.xpose.msra.mxu0 0.0
  %1811 = vmatprep.mubr.f32.mxu0 0.0
  %1812 = vmatmul.mubr.f32.gmra.mxu0 %v1741
  %v1813 = vpop.f32.mrf.mxu0
  %v1814 = vadd.f32 %v365, %v1813
  %v1815 = vpop.f32.mrf.mxu0
  %1816 = vdwg.mxu0
  %v1817 = vsel %vm541, %v1732, -inf
  %1818 = vmax.xlane.f32.xlu0 %v1817
  %v1819 = vpop.xlane.xlu0 %1818
  %v1820 = vsel %vm541, %v1814, -inf
  %1821 = vmax.xlane.f32.xlu0 %v1820
  %v1822 = vpop.xlane.xlu0 %1821
  %v1823 = vsub.f32 %v1732, %v1819
  %v1824 = vsub.f32 %v1814, %v1822
  %v1825 = vmul.f32 %v1823, 1.442695
  %v1826 = vpow.pop %v1825
  %v1827 = vmul.f32 %v1824, 1.442695
  %v1828 = vpow.pop %v1827
  %v1829 = vsel %vm541, %v1826, 0.0
  %1830 = vadd.xlane.f32.xlu0 %v1829
  %v1831 = vpop.xlane.xlu0 %1830
  %v1832 = vsel %vm541, %v1828, 0.0
  %1833 = vadd.xlane.f32.xlu0 %v1832
  %v1834 = vpop.xlane.xlu0 %1833
  %v1835 = vrcp.pop %v1831
  %v1836 = vmul.f32 1.0, %v1835
  %v1837 = vrcp.pop %v1834
  %v1838 = vmul.f32 1.0, %v1837
  %1839 = vrot.lane.b32.xlu0 %v346, 32
  %v1840 = vpop.permute.xlu0 %1839
  %1841 = vrot.lane.b32.xlu0 %v351, 32
  %v1842 = vpop.permute.xlu0 %1841
  %v1846 = vsel %vm541, %v1826, 0
  %1848 = vmatprep.subr.mxu0 0.0
  %1849 = vmatpush1.msra.mxu0 0.0
  %1850 = vmatprep.subr.mxu0 0.0
  %1851 = vmatpush1.msra.mxu0 0.0
  %1852 = vmatprep.subr.mxu0 0.0
  %1853 = vmatpush1.msra.mxu0 0.0
  %1854 = vmatprep.subr.mxu0 0.0
  %1855 = vmatpush1.msra.mxu0 0.0
  %1856 = vmatprep.subr.mxu0 0.0
  %1857 = vmatpush1.msra.mxu0 0.0
  %1858 = vmatprep.subr.mxu0 0.0
  %1859 = vmatpush1.msra.mxu0 0.0
  %1860 = vmatprep.subr.mxu0 0.0
  %1861 = vmatpush1.msra.mxu0 0.0
  %1862 = vmatprep.subr.mxu0 0.0
  %1863 = vmatpush1.msra.mxu0 0.0
  %1864 = vmatprep.subr.mxu0 0.0
  %1865 = vmatpush1.msra.mxu0 0.0
  %1866 = vmatprep.subr.mxu0 0.0
  %1867 = vmatpush1.msra.mxu0 0.0
  %1868 = vmatprep.subr.mxu0 0.0
  %1869 = vmatpush1.msra.mxu0 0.0
  %1870 = vmatprep.subr.mxu0 0.0
  %1871 = vmatpush1.msra.mxu0 0.0
  %1872 = vmatprep.subr.mxu0 0.0
  %1873 = vmatpush1.msra.mxu0 0.0
  %1874 = vmatprep.subr.mxu0 0.0
  %1875 = vmatpush1.msra.mxu0 0.0
  %1876 = vmatprep.subr.mxu0 0.0
  %1877 = vmatpush1.msra.mxu0 %v1842
  %1878 = vmatprep.subr.mxu0 0.0
  %1879 = vmatpush1.msra.mxu0 %v1840
  %1880 = vmatprep.subr.mxu0 0.0
  %1881 = vmatpush2.msra.mxu0 0.0
  %1882 = vmatprep.subr.mxu0 0.0
  %1883 = vmatpush2.msra.mxu0 0.0
  %1884 = vmatprep.subr.mxu0 0.0
  %1885 = vmatpush2.msra.mxu0 0.0
  %1886 = vmatprep.subr.mxu0 0.0
  %1887 = vmatpush2.msra.mxu0 0.0
  %1888 = vmatprep.subr.mxu0 0.0
  %1889 = vmatpush2.msra.mxu0 0.0
  %1890 = vmatprep.subr.mxu0 0.0
  %1891 = vmatpush2.msra.mxu0 0.0
  %1892 = vmatprep.subr.mxu0 0.0
  %1893 = vmatpush2.msra.mxu0 0.0
  %1894 = vmatprep.subr.mxu0 0.0
  %1895 = vmatpush2.msra.mxu0 0.0
  %1896 = vmatprep.subr.mxu0 0.0
  %1897 = vmatpush2.msra.mxu0 0.0
  %1898 = vmatprep.subr.mxu0 0.0
  %1899 = vmatpush2.msra.mxu0 0.0
  %1900 = vmatprep.subr.mxu0 0.0
  %1901 = vmatpush2.msra.mxu0 0.0
  %1902 = vmatprep.subr.mxu0 0.0
  %1903 = vmatpush2.msra.mxu0 0.0
  %1904 = vmatprep.subr.mxu0 0.0
  %1905 = vmatpush2.msra.mxu0 0.0
  %1906 = vmatprep.subr.mxu0 0.0
  %1907 = vmatpush2.msra.mxu0 0.0
  %1908 = vmatprep.subr.mxu0 0.0
  %1909 = vmatpush2.msra.mxu0 0.0
  %1910 = vmatprep.subr.mxu0 0.0
  %1911 = vmatpush2.msra.mxu0 0.0
  %1912 = vmatprep.mubr.f32.mxu0 0.0
  %1913 = vmatmul.mubr.f32.gmra.mxu0 %v1846
  %v1914 = vpop.f32.mrf.mxu0
  %v1915 = vadd.f32 0.0, %v1914
  %v1916 = vpop.f32.mrf.mxu0
  %1917 = vdwg.mxu0
  %1918 = vrot.lane.b32.xlu0 %v356, 32
  %v1919 = vpop.permute.xlu0 %1918
  %1920 = vrot.lane.b32.xlu0 %v361, 32
  %v1921 = vpop.permute.xlu0 %1920
  %v1925 = vsel %vm541, %v1828, 0
  %1927 = vmatprep.subr.mxu0 0.0
  %1928 = vmatpush1.msra.mxu0 0.0
  %1929 = vmatprep.subr.mxu0 0.0
  %1930 = vmatpush1.msra.mxu0 0.0
  %1931 = vmatprep.subr.mxu0 0.0
  %1932 = vmatpush1.msra.mxu0 0.0
  %1933 = vmatprep.subr.mxu0 0.0
  %1934 = vmatpush1.msra.mxu0 0.0
  %1935 = vmatprep.subr.mxu0 0.0
  %1936 = vmatpush1.msra.mxu0 0.0
  %1937 = vmatprep.subr.mxu0 0.0
  %1938 = vmatpush1.msra.mxu0 0.0
  %1939 = vmatprep.subr.mxu0 0.0
  %1940 = vmatpush1.msra.mxu0 0.0
  %1941 = vmatprep.subr.mxu0 0.0
  %1942 = vmatpush1.msra.mxu0 0.0
  %1943 = vmatprep.subr.mxu0 0.0
  %1944 = vmatpush1.msra.mxu0 0.0
  %1945 = vmatprep.subr.mxu0 0.0
  %1946 = vmatpush1.msra.mxu0 0.0
  %1947 = vmatprep.subr.mxu0 0.0
  %1948 = vmatpush1.msra.mxu0 0.0
  %1949 = vmatprep.subr.mxu0 0.0
  %1950 = vmatpush1.msra.mxu0 0.0
  %1951 = vmatprep.subr.mxu0 0.0
  %1952 = vmatpush1.msra.mxu0 0.0
  %1953 = vmatprep.subr.mxu0 0.0
  %1954 = vmatpush1.msra.mxu0 0.0
  %1955 = vmatprep.subr.mxu0 0.0
  %1956 = vmatpush1.msra.mxu0 %v1921
  %1957 = vmatprep.subr.mxu0 0.0
  %1958 = vmatpush1.msra.mxu0 %v1919
  %1959 = vmatprep.subr.mxu0 0.0
  %1960 = vmatpush2.msra.mxu0 0.0
  %1961 = vmatprep.subr.mxu0 0.0
  %1962 = vmatpush2.msra.mxu0 0.0
  %1963 = vmatprep.subr.mxu0 0.0
  %1964 = vmatpush2.msra.mxu0 0.0
  %1965 = vmatprep.subr.mxu0 0.0
  %1966 = vmatpush2.msra.mxu0 0.0
  %1967 = vmatprep.subr.mxu0 0.0
  %1968 = vmatpush2.msra.mxu0 0.0
  %1969 = vmatprep.subr.mxu0 0.0
  %1970 = vmatpush2.msra.mxu0 0.0
  %1971 = vmatprep.subr.mxu0 0.0
  %1972 = vmatpush2.msra.mxu0 0.0
  %1973 = vmatprep.subr.mxu0 0.0
  %1974 = vmatpush2.msra.mxu0 0.0
  %1975 = vmatprep.subr.mxu0 0.0
  %1976 = vmatpush2.msra.mxu0 0.0
  %1977 = vmatprep.subr.mxu0 0.0
  %1978 = vmatpush2.msra.mxu0 0.0
  %1979 = vmatprep.subr.mxu0 0.0
  %1980 = vmatpush2.msra.mxu0 0.0
  %1981 = vmatprep.subr.mxu0 0.0
  %1982 = vmatpush2.msra.mxu0 0.0
  %1983 = vmatprep.subr.mxu0 0.0
  %1984 = vmatpush2.msra.mxu0 0.0
  %1985 = vmatprep.subr.mxu0 0.0
  %1986 = vmatpush2.msra.mxu0 0.0
  %1987 = vmatprep.subr.mxu0 0.0
  %1988 = vmatpush2.msra.mxu0 0.0
  %1989 = vmatprep.subr.mxu0 0.0
  %1990 = vmatpush2.msra.mxu0 0.0
  %1991 = vmatprep.mubr.f32.mxu0 0.0
  %1992 = vmatmul.mubr.f32.gmra.mxu0 %v1925
  %v1993 = vpop.f32.mrf.mxu0
  %v1994 = vadd.f32 0.0, %v1993
  %v1995 = vpop.f32.mrf.mxu0
  %1996 = vdwg.mxu0
  %v1997 = vmul.f32 %v1915, %v1836
  %v1998 = vmul.f32 %v1994, %v1838
  %v2000 = vsel %vm382, %v1997, 0
  %v2003 = vsel %vm382, %v1998, 0
  %2005 = vmatprep.subr.mxu0 0.0
  %2006 = vmatpush1.msra.mxu0 0.0
  %2007 = vmatprep.subr.mxu0 0.0
  %2008 = vmatpush1.msra.mxu0 0.0
  %2009 = vmatprep.subr.mxu0 0.0
  %2010 = vmatpush1.msra.mxu0 0.0
  %2011 = vmatprep.subr.mxu0 0.0
  %2012 = vmatpush1.msra.mxu0 0.0
  %2013 = vmatprep.subr.mxu0 0.0
  %2014 = vmatpush1.msra.mxu0 0.0
  %2015 = vmatprep.subr.mxu0 0.0
  %2016 = vmatpush1.msra.mxu0 0.0
  %2017 = vmatprep.subr.mxu0 0.0
  %2018 = vmatpush1.msra.mxu0 0.0
  %2019 = vmatprep.subr.mxu0 0.0
  %2020 = vmatpush1.msra.mxu0 0.0
  %2021 = vmatprep.subr.mxu0 0.0
  %2022 = vmatpush1.msra.mxu0 0.0
  %2023 = vmatprep.subr.mxu0 0.0
  %2024 = vmatpush1.msra.mxu0 0.0
  %2025 = vmatprep.subr.mxu0 0.0
  %2026 = vmatpush1.msra.mxu0 0.0
  %2027 = vmatprep.subr.mxu0 0.0
  %2028 = vmatpush1.msra.mxu0 0.0
  %2029 = vmatprep.subr.mxu0 0.0
  %2030 = vmatpush1.msra.mxu0 %v381
  %2031 = vmatprep.subr.mxu0 0.0
  %2032 = vmatpush1.msra.mxu0 %v380
  %2033 = vmatprep.subr.mxu0 0.0
  %2034 = vmatpush1.msra.mxu0 %v379
  %2035 = vmatprep.subr.mxu0 0.0
  %2036 = vmatpush1.msra.mxu0 %v378
  %2037 = vmatprep.subr.mxu0 0.0
  %2038 = vmatpush2.msra.mxu0 0.0
  %2039 = vmatprep.subr.mxu0 0.0
  %2040 = vmatpush2.msra.mxu0 0.0
  %2041 = vmatprep.subr.mxu0 0.0
  %2042 = vmatpush2.msra.mxu0 0.0
  %2043 = vmatprep.subr.mxu0 0.0
  %2044 = vmatpush2.msra.mxu0 0.0
  %2045 = vmatprep.subr.mxu0 0.0
  %2046 = vmatpush2.msra.mxu0 0.0
  %2047 = vmatprep.subr.mxu0 0.0
  %2048 = vmatpush2.msra.mxu0 0.0
  %2049 = vmatprep.subr.mxu0 0.0
  %2050 = vmatpush2.msra.mxu0 0.0
  %2051 = vmatprep.subr.mxu0 0.0
  %2052 = vmatpush2.msra.mxu0 0.0
  %2053 = vmatprep.subr.mxu0 0.0
  %2054 = vmatpush2.msra.mxu0 0.0
  %2055 = vmatprep.subr.mxu0 0.0
  %2056 = vmatpush2.msra.mxu0 0.0
  %2057 = vmatprep.subr.mxu0 0.0
  %2058 = vmatpush2.msra.mxu0 0.0
  %2059 = vmatprep.subr.mxu0 0.0
  %2060 = vmatpush2.msra.mxu0 0.0
  %2061 = vmatprep.subr.mxu0 0.0
  %2062 = vmatpush2.msra.mxu0 0.0
  %2063 = vmatprep.subr.mxu0 0.0
  %2064 = vmatpush2.msra.mxu0 0.0
  %2065 = vmatprep.subr.mxu0 0.0
  %2066 = vmatpush2.msra.mxu0 0.0
  %2067 = vmatprep.subr.mxu0 0.0
  %2068 = vmatpush2.msra.mxu0 0.0
  %2069 = vmatprep.mubr.f32.mxu0 0.0
  %2070 = vmatmul.mubr.f32.gmra.mxu0 %v2000
  %v2071 = vpop.f32.mrf.mxu0
  %v2072 = vadd.f32 0.0, %v2071
  %v2073 = vpop.f32.mrf.mxu0
  %2074 = vmatprep.mubr.f32.mxu0 0.0
  %2075 = vmatmul.mubr.f32.gmra.mxu0 %v2003
  %v2076 = vpop.f32.mrf.mxu0
  %v2077 = vadd.f32 0.0, %v2076
  %v2078 = vpop.f32.mrf.mxu0
  %2079 = vdwg.mxu0
  %v2080 = vadd.f32 %v1651, %v2072
  %v2081 = vadd.f32 %v1652, %v2077
  %v2082 = vld [vmem:[%s10] sm:$0x1]
  %v2084 = vlaneseq
  %v2085 = vshrl.u32 %v2084, 7
  %v2086 = vsub.s32 0, %v2085
  %v2087 = vrot.slane %v2082, %v2086
  %v2089 = vadd.f32 %v2080, %v2087
  %v2090 = vadd.f32 %v2081, %v2087
  %v2091 = vadd.f32 %v2089, %v44
  %v2092 = vadd.f32 %v2090, %v45
  %2093 = vadd.xlane.f32.xlu0 %v2091
  %v2094 = vpop.xlane.xlu0 %2093
  %2095 = vadd.xlane.f32.xlu0 %v2092
  %v2096 = vpop.xlane.xlu0 %2095
  %v2097 = vrcp.pop 128.0
  %v2098 = vmul.f32 %v2094, %v2097
  %v2099 = vmul.f32 %v2096, %v2097
  %v2100 = vsub.f32 %v2091, %v2098
  %v2101 = vsub.f32 %v2092, %v2099
  %v2102 = vmul.f32 %v2100, %v2100
  %v2103 = vmul.f32 %v2101, %v2101
  %2104 = vadd.xlane.f32.xlu0 %v2102
  %v2105 = vpop.xlane.xlu0 %2104
  %2106 = vadd.xlane.f32.xlu0 %v2103
  %v2107 = vpop.xlane.xlu0 %2106
  %v2108 = vmul.f32 %v2105, %v2097
  %v2109 = vmul.f32 %v2107, %v2097
  %v2110 = vadd.f32 %v2108, 1e-05
  %v2111 = vadd.f32 %v2109, 1e-05
  %v2112 = vrsqrt.pop %v2110
  %v2113 = vrsqrt.pop %v2111
  %v2114 = vmul.f32 %v2100, %v2112
  %v2115 = vmul.f32 %v2101, %v2113
  %v2116 = vld [vmem:[%s11] sm:$0x1]
  %v2118 = vlaneseq
  %v2119 = vshrl.u32 %v2118, 7
  %v2120 = vsub.s32 0, %v2119
  %v2121 = vrot.slane %v2116, %v2120
  %v2123 = vmul.f32 %v2114, %v2121
  %v2124 = vmul.f32 %v2115, %v2121
  %v2125 = vld [vmem:[%s12] sm:$0x1]
  %v2127 = vlaneseq
  %v2128 = vshrl.u32 %v2127, 7
  %v2129 = vsub.s32 0, %v2128
  %v2130 = vrot.slane %v2125, %v2129
  %v2132 = vadd.f32 %v2123, %v2130
  %v2133 = vadd.f32 %v2124, %v2130
  %2134 = vst [vmem:[%s13] sm:$0xff] %v2132
  %2135 = vst [vmem:[%s13 + $0x8] sm:$0xff] %v2133
  // Predicated region
  $region54: #{decoder_forward.7} parent=0 // pred_check
    _
  $region55: #{decoder_forward.7} parent=0 // pred_check_branch
    %2137 = sbr.rel (0) target = $region57
  $region56: #{decoder_forward.7} parent=0 // pred_region
    _
  $region57: #{decoder_forward.7} parent=0 // pred_fallthru
    _
  // Predicated region
  $region58: #{decoder_forward.7} parent=0 // pred_check
    _
  $region59: #{decoder_forward.7} parent=0 // pred_check_branch
    %2139 = sbr.rel (0) target = $region61
  $region60: #{decoder_forward.7} parent=0 // pred_region
    _
  $region61: #{decoder_forward.7} parent=0 // pred_fallthru
    _

// kernel: decoder_forward.6
$region0: #{decoder_forward.6}
  #allocation0 [shape = 'u32[]', space=smem, size = 0x4, offset = 0x4, fixed_abs, tag = 'smem constant byte address 0x4 - core index']
  #allocation1 [shape = 'u32[144,128]{1,0:T(1,128)}', space=vmem, size = 0x12000, scoped, tag = 'internal scratch']
  %s0 = inlined_call_operand.vmem [shape: f32[2,8,128], index: 0, kind: input, shape index: {}, may-alias: {0,1}]
  %s1 = inlined_call_operand.vmem [shape: f32[2,8,128], index: 1, kind: input, shape index: {}, may-alias: {0,1}]
  %s2 = inlined_call_operand.vmem [shape: f32[2,8,8], index: 2, kind: input, shape index: {}]
  %s3 = inlined_call_operand.vmem [shape: f32[128,128], index: 3, kind: input, shape index: {}]
  %s4 = inlined_call_operand.vmem [shape: f32[1,128], index: 4, kind: input, shape index: {}]
  %s5 = inlined_call_operand.vmem [shape: f32[128,128], index: 5, kind: input, shape index: {}]
  %s6 = inlined_call_operand.vmem [shape: f32[1,128], index: 6, kind: input, shape index: {}]
  %s7 = inlined_call_operand.vmem [shape: f32[128,128], index: 7, kind: input, shape index: {}]
  %s8 = inlined_call_operand.vmem [shape: f32[1,128], index: 8, kind: input, shape index: {}]
  %s9 = inlined_call_operand.vmem [shape: f32[128,128], index: 9, kind: input, shape index: {}]
  %s10 = inlined_call_operand.vmem [shape: f32[1,128], index: 10, kind: input, shape index: {}]
  %s11 = inlined_call_operand.vmem [shape: f32[1,128], index: 11, kind: input, shape index: {}]
  %s12 = inlined_call_operand.vmem [shape: f32[1,128], index: 12, kind: input, shape index: {}]
  %s13 = inlined_call_operand.vmem [shape: f32[2,8,128], index: 13, kind: output, shape index: {}]
  %s14 = sld [smem:[#allocation0]]
  $region62: #{decoder_forward.6} parent=0
    _
  %s16 = ssub.s32 1, %s14
  %s17 = scalar_select 0, %s16, %s14
  // Predicated region
  $region2: #{decoder_forward.6} parent=0 // pred_check
    _
  $region3: #{decoder_forward.6} parent=0 // pred_check_branch
    %19 = sbr.rel (0) target = $region5
  $region4: #{decoder_forward.6} parent=0 // pred_region
    _
  $region5: #{decoder_forward.6} parent=0 // pred_fallthru
    _
  // Predicated region
  $region6: #{decoder_forward.6} parent=0 // pred_check
    _
  $region7: #{decoder_forward.6} parent=0 // pred_check_branch
    %21 = sbr.rel (0) target = $region9
  $region8: #{decoder_forward.6} parent=0 // pred_region
    _
  $region9: #{decoder_forward.6} parent=0 // pred_fallthru
    _
  // Predicated region
  $region10: #{decoder_forward.6} parent=0 // pred_check
    _
  $region11: #{decoder_forward.6} parent=0 // pred_check_branch
    %23 = sbr.rel (0) target = $region13
  $region12: #{decoder_forward.6} parent=0 // pred_region
    _
  $region13: #{decoder_forward.6} parent=0 // pred_fallthru
    _
  // Predicated region
  $region14: #{decoder_forward.6} parent=0 // pred_check
    _
  $region15: #{decoder_forward.6} parent=0 // pred_check_branch
    %25 = sbr.rel (0) target = $region17
  $region16: #{decoder_forward.6} parent=0 // pred_region
    _
  $region17: #{decoder_forward.6} parent=0 // pred_fallthru
    _
  // Predicated region
  $region18: #{decoder_forward.6} parent=0 // pred_check
    _
  $region19: #{decoder_forward.6} parent=0 // pred_check_branch
    %27 = sbr.rel (0) target = $region21
  $region20: #{decoder_forward.6} parent=0 // pred_region
    _
  $region21: #{decoder_forward.6} parent=0 // pred_fallthru
    _
  // Predicated region
  $region22: #{decoder_forward.6} parent=0 // pred_check
    _
  $region23: #{decoder_forward.6} parent=0 // pred_check_branch
    %29 = sbr.rel (0) target = $region25
  $region24: #{decoder_forward.6} parent=0 // pred_region
    _
  $region25: #{decoder_forward.6} parent=0 // pred_fallthru
    _
  // Predicated region
  $region26: #{decoder_forward.6} parent=0 // pred_check
    _
  $region27: #{decoder_forward.6} parent=0 // pred_check_branch
    %31 = sbr.rel (0) target = $region29
  $region28: #{decoder_forward.6} parent=0 // pred_region
    _
  $region29: #{decoder_forward.6} parent=0 // pred_fallthru
    _
  // Predicated region
  $region30: #{decoder_forward.6} parent=0 // pred_check
    _
  $region31: #{decoder_forward.6} parent=0 // pred_check_branch
    %33 = sbr.rel (0) target = $region33
  $region32: #{decoder_forward.6} parent=0 // pred_region
    _
  $region33: #{decoder_forward.6} parent=0 // pred_fallthru
    _
  // Predicated region
  $region34: #{decoder_forward.6} parent=0 // pred_check
    _
  $region35: #{decoder_forward.6} parent=0 // pred_check_branch
    %35 = sbr.rel (0) target = $region37
  $region36: #{decoder_forward.6} parent=0 // pred_region
    _
  $region37: #{decoder_forward.6} parent=0 // pred_fallthru
    _
  // Predicated region
  $region38: #{decoder_forward.6} parent=0 // pred_check
    _
  $region39: #{decoder_forward.6} parent=0 // pred_check_branch
    %37 = sbr.rel (0) target = $region41
  $region40: #{decoder_forward.6} parent=0 // pred_region
    _
  $region41: #{decoder_forward.6} parent=0 // pred_fallthru
    _
  // Predicated region
  $region42: #{decoder_forward.6} parent=0 // pred_check
    _
  $region43: #{decoder_forward.6} parent=0 // pred_check_branch
    %39 = sbr.rel (0) target = $region45
  $region44: #{decoder_forward.6} parent=0 // pred_region
    _
  $region45: #{decoder_forward.6} parent=0 // pred_fallthru
    _
  // Predicated region
  $region46: #{decoder_forward.6} parent=0 // pred_check
    _
  $region47: #{decoder_forward.6} parent=0 // pred_check_branch
    %41 = sbr.rel (0) target = $region49
  $region48: #{decoder_forward.6} parent=0 // pred_region
    _
  $region49: #{decoder_forward.6} parent=0 // pred_fallthru
    _
  // Predicated region
  $region50: #{decoder_forward.6} parent=0 // pred_check
    _
  $region51: #{decoder_forward.6} parent=0 // pred_check_branch
    %43 = sbr.rel (0) target = $region53
  $region52: #{decoder_forward.6} parent=0 // pred_region
    _
  $region53: #{decoder_forward.6} parent=0 // pred_fallthru
    _
  %v44 = vld [vmem:[%s0] sm:$0xff]
  %v45 = vld [vmem:[%s0 + $0x8] sm:$0xff]
  %v46 = vld [vmem:[%s1] sm:$0xff]
  %v47 = vld [vmem:[%s1 + $0x8] sm:$0xff]
  %v48 = vld [vmem:[%s3] sm:$0xff]
  %v49 = vld [vmem:[%s3 + $0x8] sm:$0xff]
  %v50 = vld [vmem:[%s3 + $0x10] sm:$0xff]
  %v51 = vld [vmem:[%s3 + $0x18] sm:$0xff]
  %v52 = vld [vmem:[%s3 + $0x20] sm:$0xff]
  %v53 = vld [vmem:[%s3 + $0x28] sm:$0xff]
  %v54 = vld [vmem:[%s3 + $0x30] sm:$0xff]
  %v55 = vld [vmem:[%s3 + $0x38] sm:$0xff]
  %v56 = vld [vmem:[%s3 + $0x40] sm:$0xff]
  %v57 = vld [vmem:[%s3 + $0x48] sm:$0xff]
  %v58 = vld [vmem:[%s3 + $0x50] sm:$0xff]
  %v59 = vld [vmem:[%s3 + $0x58] sm:$0xff]
  %v60 = vld [vmem:[%s3 + $0x60] sm:$0xff]
  %v61 = vld [vmem:[%s3 + $0x68] sm:$0xff]
  %v62 = vld [vmem:[%s3 + $0x70] sm:$0xff]
  %v63 = vld [vmem:[%s3 + $0x78] sm:$0xff]
  %v64 = vld [vmem:[%s4] sm:$0x1]
  %v66 = vlaneseq
  %v67 = vshrl.u32 %v66, 7
  %v68 = vsub.s32 0, %v67
  %v69 = vrot.slane %v64, %v68
  %71 = vmatprep.subr.mxu0 0.0
  %72 = vmatpush1.msra.mxu0 %v63
  %73 = vmatprep.subr.mxu0 0.0
  %74 = vmatpush1.msra.mxu0 %v62
  %75 = vmatprep.subr.mxu0 0.0
  %76 = vmatpush1.msra.mxu0 %v61
  %77 = vmatprep.subr.mxu0 0.0
  %78 = vmatpush1.msra.mxu0 %v60
  %79 = vmatprep.subr.mxu0 0.0
  %80 = vmatpush1.msra.mxu0 %v59
  %81 = vmatprep.subr.mxu0 0.0
  %82 = vmatpush1.msra.mxu0 %v58
  %83 = vmatprep.subr.mxu0 0.0
  %84 = vmatpush1.msra.mxu0 %v57
  %85 = vmatprep.subr.mxu0 0.0
  %86 = vmatpush1.msra.mxu0 %v56
  %87 = vmatprep.subr.mxu0 0.0
  %88 = vmatpush1.msra.mxu0 %v55
  %89 = vmatprep.subr.mxu0 0.0
  %90 = vmatpush1.msra.mxu0 %v54
  %91 = vmatprep.subr.mxu0 0.0
  %92 = vmatpush1.msra.mxu0 %v53
  %93 = vmatprep.subr.mxu0 0.0
  %94 = vmatpush1.msra.mxu0 %v52
  %95 = vmatprep.subr.mxu0 0.0
  %96 = vmatpush1.msra.mxu0 %v51
  %97 = vmatprep.subr.mxu0 0.0
  %98 = vmatpush1.msra.mxu0 %v50
  %99 = vmatprep.subr.mxu0 0.0
  %100 = vmatpush1.msra.mxu0 %v49
  %101 = vmatprep.subr.mxu0 0.0
  %102 = vmatpush1.msra.mxu0 %v48
  %103 = vmatprep.subr.mxu0 0.0
  %104 = vmatpush2.msra.mxu0 0.0
  %105 = vmatprep.subr.mxu0 0.0
  %106 = vmatpush2.msra.mxu0 0.0
  %107 = vmatprep.subr.mxu0 0.0
  %108 = vmatpush2.msra.mxu0 0.0
  %109 = vmatprep.subr.mxu0 0.0
  %110 = vmatpush2.msra.mxu0 0.0
  %111 = vmatprep.subr.mxu0 0.0
  %112 = vmatpush2.msra.mxu0 0.0
  %113 = vmatprep.subr.mxu0 0.0
  %114 = vmatpush2.msra.mxu0 0.0
  %115 = vmatprep.subr.mxu0 0.0
  %116 = vmatpush2.msra.mxu0 0.0
  %117 = vmatprep.subr.mxu0 0.0
  %118 = vmatpush2.msra.mxu0 0.0
  %119 = vmatprep.subr.mxu0 0.0
  %120 = vmatpush2.msra.mxu0 0.0
  %121 = vmatprep.subr.mxu0 0.0
  %122 = vmatpush2.msra.mxu0 0.0
  %123 = vmatprep.subr.mxu0 0.0
  %124 = vmatpush2.msra.mxu0 0.0
  %125 = vmatprep.subr.mxu0 0.0
  %126 = vmatpush2.msra.mxu0 0.0
  %127 = vmatprep.subr.mxu0 0.0
  %128 = vmatpush2.msra.mxu0 0.0
  %129 = vmatprep.subr.mxu0 0.0
  %130 = vmatpush2.msra.mxu0 0.0
  %131 = vmatprep.subr.mxu0 0.0
  %132 = vmatpush2.msra.mxu0 0.0
  %133 = vmatprep.subr.mxu0 0.0
  %134 = vmatpush2.msra.mxu0 0.0
  %135 = vmatprep.mubr.f32.mxu0 0.0
  %136 = vmatmul.mubr.f32.gmra.mxu0 %v44
  %v137 = vpop.f32.mrf.mxu0
  %v138 = vadd.f32 %v69, %v137
  %v139 = vpop.f32.mrf.mxu0
  %140 = vmatprep.mubr.f32.mxu0 0.0
  %141 = vmatmul.mubr.f32.gmra.mxu0 %v45
  %v142 = vpop.f32.mrf.mxu0
  %v143 = vadd.f32 %v69, %v142
  %v144 = vpop.f32.mrf.mxu0
  %145 = vdwg.mxu0
  %v146 = vld [vmem:[%s5] sm:$0xff]
  %v147 = vld [vmem:[%s5 + $0x8] sm:$0xff]
  %v148 = vld [vmem:[%s5 + $0x10] sm:$0xff]
  %v149 = vld [vmem:[%s5 + $0x18] sm:$0xff]
  %v150 = vld [vmem:[%s5 + $0x20] sm:$0xff]
  %v151 = vld [vmem:[%s5 + $0x28] sm:$0xff]
  %v152 = vld [vmem:[%s5 + $0x30] sm:$0xff]
  %v153 = vld [vmem:[%s5 + $0x38] sm:$0xff]
  %v154 = vld [vmem:[%s5 + $0x40] sm:$0xff]
  %v155 = vld [vmem:[%s5 + $0x48] sm:$0xff]
  %v156 = vld [vmem:[%s5 + $0x50] sm:$0xff]
  %v157 = vld [vmem:[%s5 + $0x58] sm:$0xff]
  %v158 = vld [vmem:[%s5 + $0x60] sm:$0xff]
  %v159 = vld [vmem:[%s5 + $0x68] sm:$0xff]
  %v160 = vld [vmem:[%s5 + $0x70] sm:$0xff]
  %v161 = vld [vmem:[%s5 + $0x78] sm:$0xff]
  %v162 = vld [vmem:[%s6] sm:$0x1]
  %v164 = vlaneseq
  %v165 = vshrl.u32 %v164, 7
  %v166 = vsub.s32 0, %v165
  %v167 = vrot.slane %v162, %v166
  %169 = vmatprep.subr.mxu0 0.0
  %170 = vmatpush1.msra.mxu0 %v161
  %171 = vmatprep.subr.mxu0 0.0
  %172 = vmatpush1.msra.mxu0 %v160
  %173 = vmatprep.subr.mxu0 0.0
  %174 = vmatpush1.msra.mxu0 %v159
  %175 = vmatprep.subr.mxu0 0.0
  %176 = vmatpush1.msra.mxu0 %v158
  %177 = vmatprep.subr.mxu0 0.0
  %178 = vmatpush1.msra.mxu0 %v157
  %179 = vmatprep.subr.mxu0 0.0
  %180 = vmatpush1.msra.mxu0 %v156
  %181 = vmatprep.subr.mxu0 0.0
  %182 = vmatpush1.msra.mxu0 %v155
  %183 = vmatprep.subr.mxu0 0.0
  %184 = vmatpush1.msra.mxu0 %v154
  %185 = vmatprep.subr.mxu0 0.0
  %186 = vmatpush1.msra.mxu0 %v153
  %187 = vmatprep.subr.mxu0 0.0
  %188 = vmatpush1.msra.mxu0 %v152
  %189 = vmatprep.subr.mxu0 0.0
  %190 = vmatpush1.msra.mxu0 %v151
  %191 = vmatprep.subr.mxu0 0.0
  %192 = vmatpush1.msra.mxu0 %v150
  %193 = vmatprep.subr.mxu0 0.0
  %194 = vmatpush1.msra.mxu0 %v149
  %195 = vmatprep.subr.mxu0 0.0
  %196 = vmatpush1.msra.mxu0 %v148
  %197 = vmatprep.subr.mxu0 0.0
  %198 = vmatpush1.msra.mxu0 %v147
  %199 = vmatprep.subr.mxu0 0.0
  %200 = vmatpush1.msra.mxu0 %v146
  %201 = vmatprep.subr.mxu0 0.0
  %202 = vmatpush2.msra.mxu0 0.0
  %203 = vmatprep.subr.mxu0 0.0
  %204 = vmatpush2.msra.mxu0 0.0
  %205 = vmatprep.subr.mxu0 0.0
  %206 = vmatpush2.msra.mxu0 0.0
  %207 = vmatprep.subr.mxu0 0.0
  %208 = vmatpush2.msra.mxu0 0.0
  %209 = vmatprep.subr.mxu0 0.0
  %210 = vmatpush2.msra.mxu0 0.0
  %211 = vmatprep.subr.mxu0 0.0
  %212 = vmatpush2.msra.mxu0 0.0
  %213 = vmatprep.subr.mxu0 0.0
  %214 = vmatpush2.msra.mxu0 0.0
  %215 = vmatprep.subr.mxu0 0.0
  %216 = vmatpush2.msra.mxu0 0.0
  %217 = vmatprep.subr.mxu0 0.0
  %218 = vmatpush2.msra.mxu0 0.0
  %219 = vmatprep.subr.mxu0 0.0
  %220 = vmatpush2.msra.mxu0 0.0
  %221 = vmatprep.subr.mxu0 0.0
  %222 = vmatpush2.msra.mxu0 0.0
  %223 = vmatprep.subr.mxu0 0.0
  %224 = vmatpush2.msra.mxu0 0.0
  %225 = vmatprep.subr.mxu0 0.0
  %226 = vmatpush2.msra.mxu0 0.0
  %227 = vmatprep.subr.mxu0 0.0
  %228 = vmatpush2.msra.mxu0 0.0
  %229 = vmatprep.subr.mxu0 0.0
  %230 = vmatpush2.msra.mxu0 0.0
  %231 = vmatprep.subr.mxu0 0.0
  %232 = vmatpush2.msra.mxu0 0.0
  %233 = vmatprep.mubr.f32.mxu0 0.0
  %234 = vmatmul.mubr.f32.gmra.mxu0 %v46
  %v235 = vpop.f32.mrf.mxu0
  %v236 = vadd.f32 %v167, %v235
  %v237 = vpop.f32.mrf.mxu0
  %238 = vmatprep.mubr.f32.mxu0 0.0
  %239 = vmatmul.mubr.f32.gmra.mxu0 %v47
  %v240 = vpop.f32.mrf.mxu0
  %v241 = vadd.f32 %v167, %v240
  %v242 = vpop.f32.mrf.mxu0
  %243 = vdwg.mxu0
  %v244 = vld [vmem:[%s7] sm:$0xff]
  %v245 = vld [vmem:[%s7 + $0x8] sm:$0xff]
  %v246 = vld [vmem:[%s7 + $0x10] sm:$0xff]
  %v247 = vld [vmem:[%s7 + $0x18] sm:$0xff]
  %v248 = vld [vmem:[%s7 + $0x20] sm:$0xff]
  %v249 = vld [vmem:[%s7 + $0x28] sm:$0xff]
  %v250 = vld [vmem:[%s7 + $0x30] sm:$0xff]
  %v251 = vld [vmem:[%s7 + $0x38] sm:$0xff]
  %v252 = vld [vmem:[%s7 + $0x40] sm:$0xff]
  %v253 = vld [vmem:[%s7 + $0x48] sm:$0xff]
  %v254 = vld [vmem:[%s7 + $0x50] sm:$0xff]
  %v255 = vld [vmem:[%s7 + $0x58] sm:$0xff]
  %v256 = vld [vmem:[%s7 + $0x60] sm:$0xff]
  %v257 = vld [vmem:[%s7 + $0x68] sm:$0xff]
  %v258 = vld [vmem:[%s7 + $0x70] sm:$0xff]
  %v259 = vld [vmem:[%s7 + $0x78] sm:$0xff]
  %v260 = vld [vmem:[%s8] sm:$0x1]
  %v262 = vlaneseq
  %v263 = vshrl.u32 %v262, 7
  %v264 = vsub.s32 0, %v263
  %v265 = vrot.slane %v260, %v264
  %267 = vmatprep.subr.mxu0 0.0
  %268 = vmatpush1.msra.mxu0 %v259
  %269 = vmatprep.subr.mxu0 0.0
  %270 = vmatpush1.msra.mxu0 %v258
  %271 = vmatprep.subr.mxu0 0.0
  %272 = vmatpush1.msra.mxu0 %v257
  %273 = vmatprep.subr.mxu0 0.0
  %274 = vmatpush1.msra.mxu0 %v256
  %275 = vmatprep.subr.mxu0 0.0
  %276 = vmatpush1.msra.mxu0 %v255
  %277 = vmatprep.subr.mxu0 0.0
  %278 = vmatpush1.msra.mxu0 %v254
  %279 = vmatprep.subr.mxu0 0.0
  %280 = vmatpush1.msra.mxu0 %v253
  %281 = vmatprep.subr.mxu0 0.0
  %282 = vmatpush1.msra.mxu0 %v252
  %283 = vmatprep.subr.mxu0 0.0
  %284 = vmatpush1.msra.mxu0 %v251
  %285 = vmatprep.subr.mxu0 0.0
  %286 = vmatpush1.msra.mxu0 %v250
  %287 = vmatprep.subr.mxu0 0.0
  %288 = vmatpush1.msra.mxu0 %v249
  %289 = vmatprep.subr.mxu0 0.0
  %290 = vmatpush1.msra.mxu0 %v248
  %291 = vmatprep.subr.mxu0 0.0
  %292 = vmatpush1.msra.mxu0 %v247
  %293 = vmatprep.subr.mxu0 0.0
  %294 = vmatpush1.msra.mxu0 %v246
  %295 = vmatprep.subr.mxu0 0.0
  %296 = vmatpush1.msra.mxu0 %v245
  %297 = vmatprep.subr.mxu0 0.0
  %298 = vmatpush1.msra.mxu0 %v244
  %299 = vmatprep.subr.mxu0 0.0
  %300 = vmatpush2.msra.mxu0 0.0
  %301 = vmatprep.subr.mxu0 0.0
  %302 = vmatpush2.msra.mxu0 0.0
  %303 = vmatprep.subr.mxu0 0.0
  %304 = vmatpush2.msra.mxu0 0.0
  %305 = vmatprep.subr.mxu0 0.0
  %306 = vmatpush2.msra.mxu0 0.0
  %307 = vmatprep.subr.mxu0 0.0
  %308 = vmatpush2.msra.mxu0 0.0
  %309 = vmatprep.subr.mxu0 0.0
  %310 = vmatpush2.msra.mxu0 0.0
  %311 = vmatprep.subr.mxu0 0.0
  %312 = vmatpush2.msra.mxu0 0.0
  %313 = vmatprep.subr.mxu0 0.0
  %314 = vmatpush2.msra.mxu0 0.0
  %315 = vmatprep.subr.mxu0 0.0
  %316 = vmatpush2.msra.mxu0 0.0
  %317 = vmatprep.subr.mxu0 0.0
  %318 = vmatpush2.msra.mxu0 0.0
  %319 = vmatprep.subr.mxu0 0.0
  %320 = vmatpush2.msra.mxu0 0.0
  %321 = vmatprep.subr.mxu0 0.0
  %322 = vmatpush2.msra.mxu0 0.0
  %323 = vmatprep.subr.mxu0 0.0
  %324 = vmatpush2.msra.mxu0 0.0
  %325 = vmatprep.subr.mxu0 0.0
  %326 = vmatpush2.msra.mxu0 0.0
  %327 = vmatprep.subr.mxu0 0.0
  %328 = vmatpush2.msra.mxu0 0.0
  %329 = vmatprep.subr.mxu0 0.0
  %330 = vmatpush2.msra.mxu0 0.0
  %331 = vmatprep.mubr.f32.mxu0 0.0
  %332 = vmatmul.mubr.f32.gmra.mxu0 %v46
  %v333 = vpop.f32.mrf.mxu0
  %v334 = vadd.f32 %v265, %v333
  %v335 = vpop.f32.mrf.mxu0
  %336 = vmatprep.mubr.f32.mxu0 0.0
  %337 = vmatmul.mubr.f32.gmra.mxu0 %v47
  %v338 = vpop.f32.mrf.mxu0
  %v339 = vadd.f32 %v265, %v338
  %v340 = vpop.f32.mrf.mxu0
  %341 = vdwg.mxu0
  %v342 = vld [vmem:[%s2] sm:$0xff]
  %v343 = vld [vmem:[%s2 + $0x8] sm:$0xff]
  %v344 = vld [vmem:[%s9] sm:$0xff]
  %v345 = vld [vmem:[%s9 + $0x8] sm:$0xff]
  %v346 = vld [vmem:[%s9 + $0x10] sm:$0xff]
  %v347 = vld [vmem:[%s9 + $0x18] sm:$0xff]
  %v348 = vld [vmem:[%s9 + $0x20] sm:$0xff]
  %v349 = vld [vmem:[%s9 + $0x28] sm:$0xff]
  %v350 = vld [vmem:[%s9 + $0x30] sm:$0xff]
  %v351 = vld [vmem:[%s9 + $0x38] sm:$0xff]
  %v352 = vld [vmem:[%s9 + $0x40] sm:$0xff]
  %v353 = vld [vmem:[%s9 + $0x48] sm:$0xff]
  %v354 = vld [vmem:[%s9 + $0x50] sm:$0xff]
  %v355 = vld [vmem:[%s9 + $0x58] sm:$0xff]
  %v356 = vld [vmem:[%s9 + $0x60] sm:$0xff]
  %v357 = vld [vmem:[%s9 + $0x68] sm:$0xff]
  %v358 = vld [vmem:[%s9 + $0x70] sm:$0xff]
  %v359 = vld [vmem:[%s9 + $0x78] sm:$0xff]
  %vm360 = vcmask 261120
  %v362 = vsel %vm360, %v138, 0
  %v365 = vsel %vm360, %v236, 0
  %367 = vmatprep.subr.mxu0 0.0
  %368 = vmatpush1.xpose.msra.mxu0 0.0
  %369 = vmatprep.subr.mxu0 0.0
  %370 = vmatpush1.xpose.msra.mxu0 0.0
  %371 = vmatprep.subr.mxu0 0.0
  %372 = vmatpush1.xpose.msra.mxu0 0.0
  %373 = vmatprep.subr.mxu0 0.0
  %374 = vmatpush1.xpose.msra.mxu0 0.0
  %375 = vmatprep.subr.mxu0 0.0
  %376 = vmatpush1.xpose.msra.mxu0 0.0
  %377 = vmatprep.subr.mxu0 0.0
  %378 = vmatpush1.xpose.msra.mxu0 0.0
  %379 = vmatprep.subr.mxu0 0.0
  %380 = vmatpush1.xpose.msra.mxu0 0.0
  %381 = vmatprep.subr.mxu0 0.0
  %382 = vmatpush1.xpose.msra.mxu0 0.0
  %383 = vmatprep.subr.mxu0 0.0
  %384 = vmatpush1.xpose.msra.mxu0 0.0
  %385 = vmatprep.subr.mxu0 0.0
  %386 = vmatpush1.xpose.msra.mxu0 0.0
  %387 = vmatprep.subr.mxu0 0.0
  %388 = vmatpush1.xpose.msra.mxu0 0.0
  %389 = vmatprep.subr.mxu0 0.0
  %390 = vmatpush1.xpose.msra.mxu0 0.0
  %391 = vmatprep.subr.mxu0 0.0
  %392 = vmatpush1.xpose.msra.mxu0 0.0
  %393 = vmatprep.subr.mxu0 0.0
  %394 = vmatpush1.xpose.msra.mxu0 0.0
  %395 = vmatprep.subr.mxu0 0.0
  %396 = vmatpush1.xpose.msra.mxu0 0.0
  %397 = vmatprep.subr.mxu0 0.0
  %398 = vmatpush1.xpose.msra.mxu0 %v365
  %399 = vmatprep.subr.mxu0 0.0
  %400 = vmatpush2.xpose.msra.mxu0 0.0
  %401 = vmatprep.subr.mxu0 0.0
  %402 = vmatpush2.xpose.msra.mxu0 0.0
  %403 = vmatprep.subr.mxu0 0.0
  %404 = vmatpush2.xpose.msra.mxu0 0.0
  %405 = vmatprep.subr.mxu0 0.0
  %406 = vmatpush2.xpose.msra.mxu0 0.0
  %407 = vmatprep.subr.mxu0 0.0
  %408 = vmatpush2.xpose.msra.mxu0 0.0
  %409 = vmatprep.subr.mxu0 0.0
  %410 = vmatpush2.xpose.msra.mxu0 0.0
  %411 = vmatprep.subr.mxu0 0.0
  %412 = vmatpush2.xpose.msra.mxu0 0.0
  %413 = vmatprep.subr.mxu0 0.0
  %414 = vmatpush2.xpose.msra.mxu0 0.0
  %415 = vmatprep.subr.mxu0 0.0
  %416 = vmatpush2.xpose.msra.mxu0 0.0
  %417 = vmatprep.subr.mxu0 0.0
  %418 = vmatpush2.xpose.msra.mxu0 0.0
  %419 = vmatprep.subr.mxu0 0.0
  %420 = vmatpush2.xpose.msra.mxu0 0.0
  %421 = vmatprep.subr.mxu0 0.0
  %422 = vmatpush2.xpose.msra.mxu0 0.0
  %423 = vmatprep.subr.mxu0 0.0
  %424 = vmatpush2.xpose.msra.mxu0 0.0
  %425 = vmatprep.subr.mxu0 0.0
  %426 = vmatpush2.xpose.msra.mxu0 0.0
  %427 = vmatprep.subr.mxu0 0.0
  %428 = vmatpush2.xpose.msra.mxu0 0.0
  %429 = vmatprep.subr.mxu0 0.0
  %430 = vmatpush2.xpose.msra.mxu0 0.0
  %431 = vmatprep.mubr.f32.mxu0 0.0
  %432 = vmatmul.mubr.f32.gmra.mxu0 %v362
  %v433 = vpop.f32.mrf.mxu0
  %v434 = vadd.f32 %v342, %v433
  %v435 = vpop.f32.mrf.mxu0
  %436 = vdwg.mxu0
  %v438 = vsel %vm360, %v143, 0
  %v441 = vsel %vm360, %v241, 0
  %443 = vmatprep.subr.mxu0 0.0
  %444 = vmatpush1.xpose.msra.mxu0 0.0
  %445 = vmatprep.subr.mxu0 0.0
  %446 = vmatpush1.xpose.msra.mxu0 0.0
  %447 = vmatprep.subr.mxu0 0.0
  %448 = vmatpush1.xpose.msra.mxu0 0.0
  %449 = vmatprep.subr.mxu0 0.0
  %450 = vmatpush1.xpose.msra.mxu0 0.0
  %451 = vmatprep.subr.mxu0 0.0
  %452 = vmatpush1.xpose.msra.mxu0 0.0
  %453 = vmatprep.subr.mxu0 0.0
  %454 = vmatpush1.xpose.msra.mxu0 0.0
  %455 = vmatprep.subr.mxu0 0.0
  %456 = vmatpush1.xpose.msra.mxu0 0.0
  %457 = vmatprep.subr.mxu0 0.0
  %458 = vmatpush1.xpose.msra.mxu0 0.0
  %459 = vmatprep.subr.mxu0 0.0
  %460 = vmatpush1.xpose.msra.mxu0 0.0
  %461 = vmatprep.subr.mxu0 0.0
  %462 = vmatpush1.xpose.msra.mxu0 0.0
  %463 = vmatprep.subr.mxu0 0.0
  %464 = vmatpush1.xpose.msra.mxu0 0.0
  %465 = vmatprep.subr.mxu0 0.0
  %466 = vmatpush1.xpose.msra.mxu0 0.0
  %467 = vmatprep.subr.mxu0 0.0
  %468 = vmatpush1.xpose.msra.mxu0 0.0
  %469 = vmatprep.subr.mxu0 0.0
  %470 = vmatpush1.xpose.msra.mxu0 0.0
  %471 = vmatprep.subr.mxu0 0.0
  %472 = vmatpush1.xpose.msra.mxu0 0.0
  %473 = vmatprep.subr.mxu0 0.0
  %474 = vmatpush1.xpose.msra.mxu0 %v441
  %475 = vmatprep.subr.mxu0 0.0
  %476 = vmatpush2.xpose.msra.mxu0 0.0
  %477 = vmatprep.subr.mxu0 0.0
  %478 = vmatpush2.xpose.msra.mxu0 0.0
  %479 = vmatprep.subr.mxu0 0.0
  %480 = vmatpush2.xpose.msra.mxu0 0.0
  %481 = vmatprep.subr.mxu0 0.0
  %482 = vmatpush2.xpose.msra.mxu0 0.0
  %483 = vmatprep.subr.mxu0 0.0
  %484 = vmatpush2.xpose.msra.mxu0 0.0
  %485 = vmatprep.subr.mxu0 0.0
  %486 = vmatpush2.xpose.msra.mxu0 0.0
  %487 = vmatprep.subr.mxu0 0.0
  %488 = vmatpush2.xpose.msra.mxu0 0.0
  %489 = vmatprep.subr.mxu0 0.0
  %490 = vmatpush2.xpose.msra.mxu0 0.0
  %491 = vmatprep.subr.mxu0 0.0
  %492 = vmatpush2.xpose.msra.mxu0 0.0
  %493 = vmatprep.subr.mxu0 0.0
  %494 = vmatpush2.xpose.msra.mxu0 0.0
  %495 = vmatprep.subr.mxu0 0.0
  %496 = vmatpush2.xpose.msra.mxu0 0.0
  %497 = vmatprep.subr.mxu0 0.0
  %498 = vmatpush2.xpose.msra.mxu0 0.0
  %499 = vmatprep.subr.mxu0 0.0
  %500 = vmatpush2.xpose.msra.mxu0 0.0
  %501 = vmatprep.subr.mxu0 0.0
  %502 = vmatpush2.xpose.msra.mxu0 0.0
  %503 = vmatprep.subr.mxu0 0.0
  %504 = vmatpush2.xpose.msra.mxu0 0.0
  %505 = vmatprep.subr.mxu0 0.0
  %506 = vmatpush2.xpose.msra.mxu0 0.0
  %507 = vmatprep.mubr.f32.mxu0 0.0
  %508 = vmatmul.mubr.f32.gmra.mxu0 %v438
  %v509 = vpop.f32.mrf.mxu0
  %v510 = vadd.f32 %v343, %v509
  %v511 = vpop.f32.mrf.mxu0
  %512 = vdwg.mxu0
  %vm513 = vcmask 64512
  %v514 = vsel %vm513, %v434, -inf
  %515 = vmax.xlane.f32.xlu0 %v514
  %v516 = vpop.xlane.xlu0 %515
  %v517 = vsel %vm513, %v510, -inf
  %518 = vmax.xlane.f32.xlu0 %v517
  %v519 = vpop.xlane.xlu0 %518
  %v520 = vsub.f32 %v434, %v516
  %v521 = vsub.f32 %v510, %v519
  %v522 = vmul.f32 %v520, 1.442695
  %v523 = vpow.pop %v522
  %v524 = vmul.f32 %v521, 1.442695
  %v525 = vpow.pop %v524
  %v526 = vsel %vm513, %v523, 0.0
  %527 = vadd.xlane.f32.xlu0 %v526
  %v528 = vpop.xlane.xlu0 %527
  %v529 = vsel %vm513, %v525, 0.0
  %530 = vadd.xlane.f32.xlu0 %v529
  %v531 = vpop.xlane.xlu0 %530
  %v532 = vrcp.pop %v528
  %v533 = vmul.f32 1.0, %v532
  %v534 = vrcp.pop %v531
  %v535 = vmul.f32 1.0, %v534
  %v537 = vsel %vm513, %v523, 0
  %539 = vmatprep.subr.mxu0 0.0
  %540 = vmatpush1.msra.mxu0 0.0
  %541 = vmatprep.subr.mxu0 0.0
  %542 = vmatpush1.msra.mxu0 0.0
  %543 = vmatprep.subr.mxu0 0.0
  %544 = vmatpush1.msra.mxu0 0.0
  %545 = vmatprep.subr.mxu0 0.0
  %546 = vmatpush1.msra.mxu0 0.0
  %547 = vmatprep.subr.mxu0 0.0
  %548 = vmatpush1.msra.mxu0 0.0
  %549 = vmatprep.subr.mxu0 0.0
  %550 = vmatpush1.msra.mxu0 0.0
  %551 = vmatprep.subr.mxu0 0.0
  %552 = vmatpush1.msra.mxu0 0.0
  %553 = vmatprep.subr.mxu0 0.0
  %554 = vmatpush1.msra.mxu0 0.0
  %555 = vmatprep.subr.mxu0 0.0
  %556 = vmatpush1.msra.mxu0 0.0
  %557 = vmatprep.subr.mxu0 0.0
  %558 = vmatpush1.msra.mxu0 0.0
  %559 = vmatprep.subr.mxu0 0.0
  %560 = vmatpush1.msra.mxu0 0.0
  %561 = vmatprep.subr.mxu0 0.0
  %562 = vmatpush1.msra.mxu0 0.0
  %563 = vmatprep.subr.mxu0 0.0
  %564 = vmatpush1.msra.mxu0 0.0
  %565 = vmatprep.subr.mxu0 0.0
  %566 = vmatpush1.msra.mxu0 0.0
  %567 = vmatprep.subr.mxu0 0.0
  %568 = vmatpush1.msra.mxu0 0.0
  %569 = vmatprep.subr.mxu0 0.0
  %570 = vmatpush1.msra.mxu0 %v334
  %571 = vmatprep.subr.mxu0 0.0
  %572 = vmatpush2.msra.mxu0 0.0
  %573 = vmatprep.subr.mxu0 0.0
  %574 = vmatpush2.msra.mxu0 0.0
  %575 = vmatprep.subr.mxu0 0.0
  %576 = vmatpush2.msra.mxu0 0.0
  %577 = vmatprep.subr.mxu0 0.0
  %578 = vmatpush2.msra.mxu0 0.0
  %579 = vmatprep.subr.mxu0 0.0
  %580 = vmatpush2.msra.mxu0 0.0
  %581 = vmatprep.subr.mxu0 0.0
  %582 = vmatpush2.msra.mxu0 0.0
  %583 = vmatprep.subr.mxu0 0.0
  %584 = vmatpush2.msra.mxu0 0.0
  %585 = vmatprep.subr.mxu0 0.0
  %586 = vmatpush2.msra.mxu0 0.0
  %587 = vmatprep.subr.mxu0 0.0
  %588 = vmatpush2.msra.mxu0 0.0
  %589 = vmatprep.subr.mxu0 0.0
  %590 = vmatpush2.msra.mxu0 0.0
  %591 = vmatprep.subr.mxu0 0.0
  %592 = vmatpush2.msra.mxu0 0.0
  %593 = vmatprep.subr.mxu0 0.0
  %594 = vmatpush2.msra.mxu0 0.0
  %595 = vmatprep.subr.mxu0 0.0
  %596 = vmatpush2.msra.mxu0 0.0
  %597 = vmatprep.subr.mxu0 0.0
  %598 = vmatpush2.msra.mxu0 0.0
  %599 = vmatprep.subr.mxu0 0.0
  %600 = vmatpush2.msra.mxu0 0.0
  %601 = vmatprep.subr.mxu0 0.0
  %602 = vmatpush2.msra.mxu0 0.0
  %603 = vmatprep.mubr.f32.mxu0 0.0
  %604 = vmatmul.mubr.f32.gmra.mxu0 %v537
  %v605 = vpop.f32.mrf.mxu0
  %v606 = vadd.f32 0.0, %v605
  %v607 = vpop.f32.mrf.mxu0
  %608 = vdwg.mxu0
  %v610 = vsel %vm513, %v525, 0
  %612 = vmatprep.subr.mxu0 0.0
  %613 = vmatpush1.msra.mxu0 0.0
  %614 = vmatprep.subr.mxu0 0.0
  %615 = vmatpush1.msra.mxu0 0.0
  %616 = vmatprep.subr.mxu0 0.0
  %617 = vmatpush1.msra.mxu0 0.0
  %618 = vmatprep.subr.mxu0 0.0
  %619 = vmatpush1.msra.mxu0 0.0
  %620 = vmatprep.subr.mxu0 0.0
  %621 = vmatpush1.msra.mxu0 0.0
  %622 = vmatprep.subr.mxu0 0.0
  %623 = vmatpush1.msra.mxu0 0.0
  %624 = vmatprep.subr.mxu0 0.0
  %625 = vmatpush1.msra.mxu0 0.0
  %626 = vmatprep.subr.mxu0 0.0
  %627 = vmatpush1.msra.mxu0 0.0
  %628 = vmatprep.subr.mxu0 0.0
  %629 = vmatpush1.msra.mxu0 0.0
  %630 = vmatprep.subr.mxu0 0.0
  %631 = vmatpush1.msra.mxu0 0.0
  %632 = vmatprep.subr.mxu0 0.0
  %633 = vmatpush1.msra.mxu0 0.0
  %634 = vmatprep.subr.mxu0 0.0
  %635 = vmatpush1.msra.mxu0 0.0
  %636 = vmatprep.subr.mxu0 0.0
  %637 = vmatpush1.msra.mxu0 0.0
  %638 = vmatprep.subr.mxu0 0.0
  %639 = vmatpush1.msra.mxu0 0.0
  %640 = vmatprep.subr.mxu0 0.0
  %641 = vmatpush1.msra.mxu0 0.0
  %642 = vmatprep.subr.mxu0 0.0
  %643 = vmatpush1.msra.mxu0 %v339
  %644 = vmatprep.subr.mxu0 0.0
  %645 = vmatpush2.msra.mxu0 0.0
  %646 = vmatprep.subr.mxu0 0.0
  %647 = vmatpush2.msra.mxu0 0.0
  %648 = vmatprep.subr.mxu0 0.0
  %649 = vmatpush2.msra.mxu0 0.0
  %650 = vmatprep.subr.mxu0 0.0
  %651 = vmatpush2.msra.mxu0 0.0
  %652 = vmatprep.subr.mxu0 0.0
  %653 = vmatpush2.msra.mxu0 0.0
  %654 = vmatprep.subr.mxu0 0.0
  %655 = vmatpush2.msra.mxu0 0.0
  %656 = vmatprep.subr.mxu0 0.0
  %657 = vmatpush2.msra.mxu0 0.0
  %658 = vmatprep.subr.mxu0 0.0
  %659 = vmatpush2.msra.mxu0 0.0
  %660 = vmatprep.subr.mxu0 0.0
  %661 = vmatpush2.msra.mxu0 0.0
  %662 = vmatprep.subr.mxu0 0.0
  %663 = vmatpush2.msra.mxu0 0.0
  %664 = vmatprep.subr.mxu0 0.0
  %665 = vmatpush2.msra.mxu0 0.0
  %666 = vmatprep.subr.mxu0 0.0
  %667 = vmatpush2.msra.mxu0 0.0
  %668 = vmatprep.subr.mxu0 0.0
  %669 = vmatpush2.msra.mxu0 0.0
  %670 = vmatprep.subr.mxu0 0.0
  %671 = vmatpush2.msra.mxu0 0.0
  %672 = vmatprep.subr.mxu0 0.0
  %673 = vmatpush2.msra.mxu0 0.0
  %674 = vmatprep.subr.mxu0 0.0
  %675 = vmatpush2.msra.mxu0 0.0
  %676 = vmatprep.mubr.f32.mxu0 0.0
  %677 = vmatmul.mubr.f32.gmra.mxu0 %v610
  %v678 = vpop.f32.mrf.mxu0
  %v679 = vadd.f32 0.0, %v678
  %v680 = vpop.f32.mrf.mxu0
  %681 = vdwg.mxu0
  %v682 = vmul.f32 %v606, %v533
  %v683 = vmul.f32 %v679, %v535
  %684 = vrot.lane.b32.xlu0 %v138, 96
  %v685 = vpop.permute.xlu0 %684
  %686 = vrot.lane.b32.xlu0 %v236, 96
  %v687 = vpop.permute.xlu0 %686
  %v688 = vsel %vm360, %v685, 0
  %v690 = vsel %vm360, %v687, 0
  %692 = vmatprep.subr.mxu0 0.0
  %693 = vmatpush1.xpose.msra.mxu0 0.0
  %694 = vmatprep.subr.mxu0 0.0
  %695 = vmatpush1.xpose.msra.mxu0 0.0
  %696 = vmatprep.subr.mxu0 0.0
  %697 = vmatpush1.xpose.msra.mxu0 0.0
  %698 = vmatprep.subr.mxu0 0.0
  %699 = vmatpush1.xpose.msra.mxu0 0.0
  %700 = vmatprep.subr.mxu0 0.0
  %701 = vmatpush1.xpose.msra.mxu0 0.0
  %702 = vmatprep.subr.mxu0 0.0
  %703 = vmatpush1.xpose.msra.mxu0 0.0
  %704 = vmatprep.subr.mxu0 0.0
  %705 = vmatpush1.xpose.msra.mxu0 0.0
  %706 = vmatprep.subr.mxu0 0.0
  %707 = vmatpush1.xpose.msra.mxu0 0.0
  %708 = vmatprep.subr.mxu0 0.0
  %709 = vmatpush1.xpose.msra.mxu0 0.0
  %710 = vmatprep.subr.mxu0 0.0
  %711 = vmatpush1.xpose.msra.mxu0 0.0
  %712 = vmatprep.subr.mxu0 0.0
  %713 = vmatpush1.xpose.msra.mxu0 0.0
  %714 = vmatprep.subr.mxu0 0.0
  %715 = vmatpush1.xpose.msra.mxu0 0.0
  %716 = vmatprep.subr.mxu0 0.0
  %717 = vmatpush1.xpose.msra.mxu0 0.0
  %718 = vmatprep.subr.mxu0 0.0
  %719 = vmatpush1.xpose.msra.mxu0 0.0
  %720 = vmatprep.subr.mxu0 0.0
  %721 = vmatpush1.xpose.msra.mxu0 0.0
  %722 = vmatprep.subr.mxu0 0.0
  %723 = vmatpush1.xpose.msra.mxu0 %v690
  %724 = vmatprep.subr.mxu0 0.0
  %725 = vmatpush2.xpose.msra.mxu0 0.0
  %726 = vmatprep.subr.mxu0 0.0
  %727 = vmatpush2.xpose.msra.mxu0 0.0
  %728 = vmatprep.subr.mxu0 0.0
  %729 = vmatpush2.xpose.msra.mxu0 0.0
  %730 = vmatprep.subr.mxu0 0.0
  %731 = vmatpush2.xpose.msra.mxu0 0.0
  %732 = vmatprep.subr.mxu0 0.0
  %733 = vmatpush2.xpose.msra.mxu0 0.0
  %734 = vmatprep.subr.mxu0 0.0
  %735 = vmatpush2.xpose.msra.mxu0 0.0
  %736 = vmatprep.subr.mxu0 0.0
  %737 = vmatpush2.xpose.msra.mxu0 0.0
  %738 = vmatprep.subr.mxu0 0.0
  %739 = vmatpush2.xpose.msra.mxu0 0.0
  %740 = vmatprep.subr.mxu0 0.0
  %741 = vmatpush2.xpose.msra.mxu0 0.0
  %742 = vmatprep.subr.mxu0 0.0
  %743 = vmatpush2.xpose.msra.mxu0 0.0
  %744 = vmatprep.subr.mxu0 0.0
  %745 = vmatpush2.xpose.msra.mxu0 0.0
  %746 = vmatprep.subr.mxu0 0.0
  %747 = vmatpush2.xpose.msra.mxu0 0.0
  %748 = vmatprep.subr.mxu0 0.0
  %749 = vmatpush2.xpose.msra.mxu0 0.0
  %750 = vmatprep.subr.mxu0 0.0
  %751 = vmatpush2.xpose.msra.mxu0 0.0
  %752 = vmatprep.subr.mxu0 0.0
  %753 = vmatpush2.xpose.msra.mxu0 0.0
  %754 = vmatprep.subr.mxu0 0.0
  %755 = vmatpush2.xpose.msra.mxu0 0.0
  %756 = vmatprep.mubr.f32.mxu0 0.0
  %757 = vmatmul.mubr.f32.gmra.mxu0 %v688
  %v758 = vpop.f32.mrf.mxu0
  %v759 = vadd.f32 %v342, %v758
  %v760 = vpop.f32.mrf.mxu0
  %761 = vdwg.mxu0
  %762 = vrot.lane.b32.xlu0 %v143, 96
  %v763 = vpop.permute.xlu0 %762
  %764 = vrot.lane.b32.xlu0 %v241, 96
  %v765 = vpop.permute.xlu0 %764
  %v766 = vsel %vm360, %v763, 0
  %v768 = vsel %vm360, %v765, 0
  %770 = vmatprep.subr.mxu0 0.0
  %771 = vmatpush1.xpose.msra.mxu0 0.0
  %772 = vmatprep.subr.mxu0 0.0
  %773 = vmatpush1.xpose.msra.mxu0 0.0
  %774 = vmatprep.subr.mxu0 0.0
  %775 = vmatpush1.xpose.msra.mxu0 0.0
  %776 = vmatprep.subr.mxu0 0.0
  %777 = vmatpush1.xpose.msra.mxu0 0.0
  %778 = vmatprep.subr.mxu0 0.0
  %779 = vmatpush1.xpose.msra.mxu0 0.0
  %780 = vmatprep.subr.mxu0 0.0
  %781 = vmatpush1.xpose.msra.mxu0 0.0
  %782 = vmatprep.subr.mxu0 0.0
  %783 = vmatpush1.xpose.msra.mxu0 0.0
  %784 = vmatprep.subr.mxu0 0.0
  %785 = vmatpush1.xpose.msra.mxu0 0.0
  %786 = vmatprep.subr.mxu0 0.0
  %787 = vmatpush1.xpose.msra.mxu0 0.0
  %788 = vmatprep.subr.mxu0 0.0
  %789 = vmatpush1.xpose.msra.mxu0 0.0
  %790 = vmatprep.subr.mxu0 0.0
  %791 = vmatpush1.xpose.msra.mxu0 0.0
  %792 = vmatprep.subr.mxu0 0.0
  %793 = vmatpush1.xpose.msra.mxu0 0.0
  %794 = vmatprep.subr.mxu0 0.0
  %795 = vmatpush1.xpose.msra.mxu0 0.0
  %796 = vmatprep.subr.mxu0 0.0
  %797 = vmatpush1.xpose.msra.mxu0 0.0
  %798 = vmatprep.subr.mxu0 0.0
  %799 = vmatpush1.xpose.msra.mxu0 0.0
  %800 = vmatprep.subr.mxu0 0.0
  %801 = vmatpush1.xpose.msra.mxu0 %v768
  %802 = vmatprep.subr.mxu0 0.0
  %803 = vmatpush2.xpose.msra.mxu0 0.0
  %804 = vmatprep.subr.mxu0 0.0
  %805 = vmatpush2.xpose.msra.mxu0 0.0
  %806 = vmatprep.subr.mxu0 0.0
  %807 = vmatpush2.xpose.msra.mxu0 0.0
  %808 = vmatprep.subr.mxu0 0.0
  %809 = vmatpush2.xpose.msra.mxu0 0.0
  %810 = vmatprep.subr.mxu0 0.0
  %811 = vmatpush2.xpose.msra.mxu0 0.0
  %812 = vmatprep.subr.mxu0 0.0
  %813 = vmatpush2.xpose.msra.mxu0 0.0
  %814 = vmatprep.subr.mxu0 0.0
  %815 = vmatpush2.xpose.msra.mxu0 0.0
  %816 = vmatprep.subr.mxu0 0.0
  %817 = vmatpush2.xpose.msra.mxu0 0.0
  %818 = vmatprep.subr.mxu0 0.0
  %819 = vmatpush2.xpose.msra.mxu0 0.0
  %820 = vmatprep.subr.mxu0 0.0
  %821 = vmatpush2.xpose.msra.mxu0 0.0
  %822 = vmatprep.subr.mxu0 0.0
  %823 = vmatpush2.xpose.msra.mxu0 0.0
  %824 = vmatprep.subr.mxu0 0.0
  %825 = vmatpush2.xpose.msra.mxu0 0.0
  %826 = vmatprep.subr.mxu0 0.0
  %827 = vmatpush2.xpose.msra.mxu0 0.0
  %828 = vmatprep.subr.mxu0 0.0
  %829 = vmatpush2.xpose.msra.mxu0 0.0
  %830 = vmatprep.subr.mxu0 0.0
  %831 = vmatpush2.xpose.msra.mxu0 0.0
  %832 = vmatprep.subr.mxu0 0.0
  %833 = vmatpush2.xpose.msra.mxu0 0.0
  %834 = vmatprep.mubr.f32.mxu0 0.0
  %835 = vmatmul.mubr.f32.gmra.mxu0 %v766
  %v836 = vpop.f32.mrf.mxu0
  %v837 = vadd.f32 %v343, %v836
  %v838 = vpop.f32.mrf.mxu0
  %839 = vdwg.mxu0
  %v840 = vsel %vm513, %v759, -inf
  %841 = vmax.xlane.f32.xlu0 %v840
  %v842 = vpop.xlane.xlu0 %841
  %v843 = vsel %vm513, %v837, -inf
  %844 = vmax.xlane.f32.xlu0 %v843
  %v845 = vpop.xlane.xlu0 %844
  %v846 = vsub.f32 %v759, %v842
  %v847 = vsub.f32 %v837, %v845
  %v848 = vmul.f32 %v846, 1.442695
  %v849 = vpow.pop %v848
  %v850 = vmul.f32 %v847, 1.442695
  %v851 = vpow.pop %v850
  %v852 = vsel %vm513, %v849, 0.0
  %853 = vadd.xlane.f32.xlu0 %v852
  %v854 = vpop.xlane.xlu0 %853
  %v855 = vsel %vm513, %v851, 0.0
  %856 = vadd.xlane.f32.xlu0 %v855
  %v857 = vpop.xlane.xlu0 %856
  %v858 = vrcp.pop %v854
  %v859 = vmul.f32 1.0, %v858
  %v860 = vrcp.pop %v857
  %v861 = vmul.f32 1.0, %v860
  %863 = vrot.lane.b32.xlu0 %v334, 96
  %v864 = vpop.permute.xlu0 %863
  %v867 = vsel %vm513, %v849, 0
  %869 = vmatprep.subr.mxu0 0.0
  %870 = vmatpush1.msra.mxu0 0.0
  %871 = vmatprep.subr.mxu0 0.0
  %872 = vmatpush1.msra.mxu0 0.0
  %873 = vmatprep.subr.mxu0 0.0
  %874 = vmatpush1.msra.mxu0 0.0
  %875 = vmatprep.subr.mxu0 0.0
  %876 = vmatpush1.msra.mxu0 0.0
  %877 = vmatprep.subr.mxu0 0.0
  %878 = vmatpush1.msra.mxu0 0.0
  %879 = vmatprep.subr.mxu0 0.0
  %880 = vmatpush1.msra.mxu0 0.0
  %881 = vmatprep.subr.mxu0 0.0
  %882 = vmatpush1.msra.mxu0 0.0
  %883 = vmatprep.subr.mxu0 0.0
  %884 = vmatpush1.msra.mxu0 0.0
  %885 = vmatprep.subr.mxu0 0.0
  %886 = vmatpush1.msra.mxu0 0.0
  %887 = vmatprep.subr.mxu0 0.0
  %888 = vmatpush1.msra.mxu0 0.0
  %889 = vmatprep.subr.mxu0 0.0
  %890 = vmatpush1.msra.mxu0 0.0
  %891 = vmatprep.subr.mxu0 0.0
  %892 = vmatpush1.msra.mxu0 0.0
  %893 = vmatprep.subr.mxu0 0.0
  %894 = vmatpush1.msra.mxu0 0.0
  %895 = vmatprep.subr.mxu0 0.0
  %896 = vmatpush1.msra.mxu0 0.0
  %897 = vmatprep.subr.mxu0 0.0
  %898 = vmatpush1.msra.mxu0 0.0
  %899 = vmatprep.subr.mxu0 0.0
  %900 = vmatpush1.msra.mxu0 %v864
  %901 = vmatprep.subr.mxu0 0.0
  %902 = vmatpush2.msra.mxu0 0.0
  %903 = vmatprep.subr.mxu0 0.0
  %904 = vmatpush2.msra.mxu0 0.0
  %905 = vmatprep.subr.mxu0 0.0
  %906 = vmatpush2.msra.mxu0 0.0
  %907 = vmatprep.subr.mxu0 0.0
  %908 = vmatpush2.msra.mxu0 0.0
  %909 = vmatprep.subr.mxu0 0.0
  %910 = vmatpush2.msra.mxu0 0.0
  %911 = vmatprep.subr.mxu0 0.0
  %912 = vmatpush2.msra.mxu0 0.0
  %913 = vmatprep.subr.mxu0 0.0
  %914 = vmatpush2.msra.mxu0 0.0
  %915 = vmatprep.subr.mxu0 0.0
  %916 = vmatpush2.msra.mxu0 0.0
  %917 = vmatprep.subr.mxu0 0.0
  %918 = vmatpush2.msra.mxu0 0.0
  %919 = vmatprep.subr.mxu0 0.0
  %920 = vmatpush2.msra.mxu0 0.0
  %921 = vmatprep.subr.mxu0 0.0
  %922 = vmatpush2.msra.mxu0 0.0
  %923 = vmatprep.subr.mxu0 0.0
  %924 = vmatpush2.msra.mxu0 0.0
  %925 = vmatprep.subr.mxu0 0.0
  %926 = vmatpush2.msra.mxu0 0.0
  %927 = vmatprep.subr.mxu0 0.0
  %928 = vmatpush2.msra.mxu0 0.0
  %929 = vmatprep.subr.mxu0 0.0
  %930 = vmatpush2.msra.mxu0 0.0
  %931 = vmatprep.subr.mxu0 0.0
  %932 = vmatpush2.msra.mxu0 0.0
  %933 = vmatprep.mubr.f32.mxu0 0.0
  %934 = vmatmul.mubr.f32.gmra.mxu0 %v867
  %v935 = vpop.f32.mrf.mxu0
  %v936 = vadd.f32 0.0, %v935
  %v937 = vpop.f32.mrf.mxu0
  %938 = vdwg.mxu0
  %940 = vrot.lane.b32.xlu0 %v339, 96
  %v941 = vpop.permute.xlu0 %940
  %v944 = vsel %vm513, %v851, 0
  %946 = vmatprep.subr.mxu0 0.0
  %947 = vmatpush1.msra.mxu0 0.0
  %948 = vmatprep.subr.mxu0 0.0
  %949 = vmatpush1.msra.mxu0 0.0
  %950 = vmatprep.subr.mxu0 0.0
  %951 = vmatpush1.msra.mxu0 0.0
  %952 = vmatprep.subr.mxu0 0.0
  %953 = vmatpush1.msra.mxu0 0.0
  %954 = vmatprep.subr.mxu0 0.0
  %955 = vmatpush1.msra.mxu0 0.0
  %956 = vmatprep.subr.mxu0 0.0
  %957 = vmatpush1.msra.mxu0 0.0
  %958 = vmatprep.subr.mxu0 0.0
  %959 = vmatpush1.msra.mxu0 0.0
  %960 = vmatprep.subr.mxu0 0.0
  %961 = vmatpush1.msra.mxu0 0.0
  %962 = vmatprep.subr.mxu0 0.0
  %963 = vmatpush1.msra.mxu0 0.0
  %964 = vmatprep.subr.mxu0 0.0
  %965 = vmatpush1.msra.mxu0 0.0
  %966 = vmatprep.subr.mxu0 0.0
  %967 = vmatpush1.msra.mxu0 0.0
  %968 = vmatprep.subr.mxu0 0.0
  %969 = vmatpush1.msra.mxu0 0.0
  %970 = vmatprep.subr.mxu0 0.0
  %971 = vmatpush1.msra.mxu0 0.0
  %972 = vmatprep.subr.mxu0 0.0
  %973 = vmatpush1.msra.mxu0 0.0
  %974 = vmatprep.subr.mxu0 0.0
  %975 = vmatpush1.msra.mxu0 0.0
  %976 = vmatprep.subr.mxu0 0.0
  %977 = vmatpush1.msra.mxu0 %v941
  %978 = vmatprep.subr.mxu0 0.0
  %979 = vmatpush2.msra.mxu0 0.0
  %980 = vmatprep.subr.mxu0 0.0
  %981 = vmatpush2.msra.mxu0 0.0
  %982 = vmatprep.subr.mxu0 0.0
  %983 = vmatpush2.msra.mxu0 0.0
  %984 = vmatprep.subr.mxu0 0.0
  %985 = vmatpush2.msra.mxu0 0.0
  %986 = vmatprep.subr.mxu0 0.0
  %987 = vmatpush2.msra.mxu0 0.0
  %988 = vmatprep.subr.mxu0 0.0
  %989 = vmatpush2.msra.mxu0 0.0
  %990 = vmatprep.subr.mxu0 0.0
  %991 = vmatpush2.msra.mxu0 0.0
  %992 = vmatprep.subr.mxu0 0.0
  %993 = vmatpush2.msra.mxu0 0.0
  %994 = vmatprep.subr.mxu0 0.0
  %995 = vmatpush2.msra.mxu0 0.0
  %996 = vmatprep.subr.mxu0 0.0
  %997 = vmatpush2.msra.mxu0 0.0
  %998 = vmatprep.subr.mxu0 0.0
  %999 = vmatpush2.msra.mxu0 0.0
  %1000 = vmatprep.subr.mxu0 0.0
  %1001 = vmatpush2.msra.mxu0 0.0
  %1002 = vmatprep.subr.mxu0 0.0
  %1003 = vmatpush2.msra.mxu0 0.0
  %1004 = vmatprep.subr.mxu0 0.0
  %1005 = vmatpush2.msra.mxu0 0.0
  %1006 = vmatprep.subr.mxu0 0.0
  %1007 = vmatpush2.msra.mxu0 0.0
  %1008 = vmatprep.subr.mxu0 0.0
  %1009 = vmatpush2.msra.mxu0 0.0
  %1010 = vmatprep.mubr.f32.mxu0 0.0
  %1011 = vmatmul.mubr.f32.gmra.mxu0 %v944
  %v1012 = vpop.f32.mrf.mxu0
  %v1013 = vadd.f32 0.0, %v1012
  %v1014 = vpop.f32.mrf.mxu0
  %1015 = vdwg.mxu0
  %v1016 = vmul.f32 %v936, %v859
  %v1017 = vmul.f32 %v1013, %v861
  %v1019 = vsel %vm360, %v1016, 0
  %v1022 = vsel %vm360, %v1017, 0
  %1024 = vmatprep.subr.mxu0 0.0
  %1025 = vmatpush1.msra.mxu0 0.0
  %1026 = vmatprep.subr.mxu0 0.0
  %1027 = vmatpush1.msra.mxu0 0.0
  %1028 = vmatprep.subr.mxu0 0.0
  %1029 = vmatpush1.msra.mxu0 0.0
  %1030 = vmatprep.subr.mxu0 0.0
  %1031 = vmatpush1.msra.mxu0 0.0
  %1032 = vmatprep.subr.mxu0 0.0
  %1033 = vmatpush1.msra.mxu0 0.0
  %1034 = vmatprep.subr.mxu0 0.0
  %1035 = vmatpush1.msra.mxu0 0.0
  %1036 = vmatprep.subr.mxu0 0.0
  %1037 = vmatpush1.msra.mxu0 0.0
  %1038 = vmatprep.subr.mxu0 0.0
  %1039 = vmatpush1.msra.mxu0 0.0
  %1040 = vmatprep.subr.mxu0 0.0
  %1041 = vmatpush1.msra.mxu0 0.0
  %1042 = vmatprep.subr.mxu0 0.0
  %1043 = vmatpush1.msra.mxu0 0.0
  %1044 = vmatprep.subr.mxu0 0.0
  %1045 = vmatpush1.msra.mxu0 0.0
  %1046 = vmatprep.subr.mxu0 0.0
  %1047 = vmatpush1.msra.mxu0 0.0
  %1048 = vmatprep.subr.mxu0 0.0
  %1049 = vmatpush1.msra.mxu0 %v351
  %1050 = vmatprep.subr.mxu0 0.0
  %1051 = vmatpush1.msra.mxu0 %v350
  %1052 = vmatprep.subr.mxu0 0.0
  %1053 = vmatpush1.msra.mxu0 %v349
  %1054 = vmatprep.subr.mxu0 0.0
  %1055 = vmatpush1.msra.mxu0 %v348
  %1056 = vmatprep.subr.mxu0 0.0
  %1057 = vmatpush2.msra.mxu0 0.0
  %1058 = vmatprep.subr.mxu0 0.0
  %1059 = vmatpush2.msra.mxu0 0.0
  %1060 = vmatprep.subr.mxu0 0.0
  %1061 = vmatpush2.msra.mxu0 0.0
  %1062 = vmatprep.subr.mxu0 0.0
  %1063 = vmatpush2.msra.mxu0 0.0
  %1064 = vmatprep.subr.mxu0 0.0
  %1065 = vmatpush2.msra.mxu0 0.0
  %1066 = vmatprep.subr.mxu0 0.0
  %1067 = vmatpush2.msra.mxu0 0.0
  %1068 = vmatprep.subr.mxu0 0.0
  %1069 = vmatpush2.msra.mxu0 0.0
  %1070 = vmatprep.subr.mxu0 0.0
  %1071 = vmatpush2.msra.mxu0 0.0
  %1072 = vmatprep.subr.mxu0 0.0
  %1073 = vmatpush2.msra.mxu0 0.0
  %1074 = vmatprep.subr.mxu0 0.0
  %1075 = vmatpush2.msra.mxu0 0.0
  %1076 = vmatprep.subr.mxu0 0.0
  %1077 = vmatpush2.msra.mxu0 0.0
  %1078 = vmatprep.subr.mxu0 0.0
  %1079 = vmatpush2.msra.mxu0 0.0
  %1080 = vmatprep.subr.mxu0 0.0
  %1081 = vmatpush2.msra.mxu0 0.0
  %1082 = vmatprep.subr.mxu0 0.0
  %1083 = vmatpush2.msra.mxu0 0.0
  %1084 = vmatprep.subr.mxu0 0.0
  %1085 = vmatpush2.msra.mxu0 0.0
  %1086 = vmatprep.subr.mxu0 0.0
  %1087 = vmatpush2.msra.mxu0 0.0
  %1088 = vmatprep.mubr.f32.mxu0 0.0
  %1089 = vmatmul.mubr.f32.gmra.mxu0 %v1019
  %v1090 = vpop.f32.mrf.mxu0
  %v1091 = vadd.f32 0.0, %v1090
  %v1092 = vpop.f32.mrf.mxu0
  %1093 = vmatprep.mubr.f32.mxu0 0.0
  %1094 = vmatmul.mubr.f32.gmra.mxu0 %v1022
  %v1095 = vpop.f32.mrf.mxu0
  %v1096 = vadd.f32 0.0, %v1095
  %v1097 = vpop.f32.mrf.mxu0
  %1098 = vdwg.mxu0
  %v1100 = vsel %vm360, %v682, 0
  %v1103 = vsel %vm360, %v683, 0
  %1105 = vmatprep.subr.mxu0 0.0
  %1106 = vmatpush1.msra.mxu0 0.0
  %1107 = vmatprep.subr.mxu0 0.0
  %1108 = vmatpush1.msra.mxu0 0.0
  %1109 = vmatprep.subr.mxu0 0.0
  %1110 = vmatpush1.msra.mxu0 0.0
  %1111 = vmatprep.subr.mxu0 0.0
  %1112 = vmatpush1.msra.mxu0 0.0
  %1113 = vmatprep.subr.mxu0 0.0
  %1114 = vmatpush1.msra.mxu0 0.0
  %1115 = vmatprep.subr.mxu0 0.0
  %1116 = vmatpush1.msra.mxu0 0.0
  %1117 = vmatprep.subr.mxu0 0.0
  %1118 = vmatpush1.msra.mxu0 0.0
  %1119 = vmatprep.subr.mxu0 0.0
  %1120 = vmatpush1.msra.mxu0 0.0
  %1121 = vmatprep.subr.mxu0 0.0
  %1122 = vmatpush1.msra.mxu0 0.0
  %1123 = vmatprep.subr.mxu0 0.0
  %1124 = vmatpush1.msra.mxu0 0.0
  %1125 = vmatprep.subr.mxu0 0.0
  %1126 = vmatpush1.msra.mxu0 0.0
  %1127 = vmatprep.subr.mxu0 0.0
  %1128 = vmatpush1.msra.mxu0 0.0
  %1129 = vmatprep.subr.mxu0 0.0
  %1130 = vmatpush1.msra.mxu0 %v347
  %1131 = vmatprep.subr.mxu0 0.0
  %1132 = vmatpush1.msra.mxu0 %v346
  %1133 = vmatprep.subr.mxu0 0.0
  %1134 = vmatpush1.msra.mxu0 %v345
  %1135 = vmatprep.subr.mxu0 0.0
  %1136 = vmatpush1.msra.mxu0 %v344
  %1137 = vmatprep.subr.mxu0 0.0
  %1138 = vmatpush2.msra.mxu0 0.0
  %1139 = vmatprep.subr.mxu0 0.0
  %1140 = vmatpush2.msra.mxu0 0.0
  %1141 = vmatprep.subr.mxu0 0.0
  %1142 = vmatpush2.msra.mxu0 0.0
  %1143 = vmatprep.subr.mxu0 0.0
  %1144 = vmatpush2.msra.mxu0 0.0
  %1145 = vmatprep.subr.mxu0 0.0
  %1146 = vmatpush2.msra.mxu0 0.0
  %1147 = vmatprep.subr.mxu0 0.0
  %1148 = vmatpush2.msra.mxu0 0.0
  %1149 = vmatprep.subr.mxu0 0.0
  %1150 = vmatpush2.msra.mxu0 0.0
  %1151 = vmatprep.subr.mxu0 0.0
  %1152 = vmatpush2.msra.mxu0 0.0
  %1153 = vmatprep.subr.mxu0 0.0
  %1154 = vmatpush2.msra.mxu0 0.0
  %1155 = vmatprep.subr.mxu0 0.0
  %1156 = vmatpush2.msra.mxu0 0.0
  %1157 = vmatprep.subr.mxu0 0.0
  %1158 = vmatpush2.msra.mxu0 0.0
  %1159 = vmatprep.subr.mxu0 0.0
  %1160 = vmatpush2.msra.mxu0 0.0
  %1161 = vmatprep.subr.mxu0 0.0
  %1162 = vmatpush2.msra.mxu0 0.0
  %1163 = vmatprep.subr.mxu0 0.0
  %1164 = vmatpush2.msra.mxu0 0.0
  %1165 = vmatprep.subr.mxu0 0.0
  %1166 = vmatpush2.msra.mxu0 0.0
  %1167 = vmatprep.subr.mxu0 0.0
  %1168 = vmatpush2.msra.mxu0 0.0
  %1169 = vmatprep.mubr.f32.mxu0 0.0
  %1170 = vmatmul.mubr.f32.gmra.mxu0 %v1100
  %v1171 = vpop.f32.mrf.mxu0
  %v1172 = vadd.f32 %v1091, %v1171
  %v1173 = vpop.f32.mrf.mxu0
  %1174 = vmatprep.mubr.f32.mxu0 0.0
  %1175 = vmatmul.mubr.f32.gmra.mxu0 %v1103
  %v1176 = vpop.f32.mrf.mxu0
  %v1177 = vadd.f32 %v1096, %v1176
  %v1178 = vpop.f32.mrf.mxu0
  %1179 = vdwg.mxu0
  %1180 = vrot.lane.b32.xlu0 %v138, 64
  %v1181 = vpop.permute.xlu0 %1180
  %1182 = vrot.lane.b32.xlu0 %v236, 64
  %v1183 = vpop.permute.xlu0 %1182
  %v1184 = vsel %vm360, %v1181, 0
  %v1186 = vsel %vm360, %v1183, 0
  %1188 = vmatprep.subr.mxu0 0.0
  %1189 = vmatpush1.xpose.msra.mxu0 0.0
  %1190 = vmatprep.subr.mxu0 0.0
  %1191 = vmatpush1.xpose.msra.mxu0 0.0
  %1192 = vmatprep.subr.mxu0 0.0
  %1193 = vmatpush1.xpose.msra.mxu0 0.0
  %1194 = vmatprep.subr.mxu0 0.0
  %1195 = vmatpush1.xpose.msra.mxu0 0.0
  %1196 = vmatprep.subr.mxu0 0.0
  %1197 = vmatpush1.xpose.msra.mxu0 0.0
  %1198 = vmatprep.subr.mxu0 0.0
  %1199 = vmatpush1.xpose.msra.mxu0 0.0
  %1200 = vmatprep.subr.mxu0 0.0
  %1201 = vmatpush1.xpose.msra.mxu0 0.0
  %1202 = vmatprep.subr.mxu0 0.0
  %1203 = vmatpush1.xpose.msra.mxu0 0.0
  %1204 = vmatprep.subr.mxu0 0.0
  %1205 = vmatpush1.xpose.msra.mxu0 0.0
  %1206 = vmatprep.subr.mxu0 0.0
  %1207 = vmatpush1.xpose.msra.mxu0 0.0
  %1208 = vmatprep.subr.mxu0 0.0
  %1209 = vmatpush1.xpose.msra.mxu0 0.0
  %1210 = vmatprep.subr.mxu0 0.0
  %1211 = vmatpush1.xpose.msra.mxu0 0.0
  %1212 = vmatprep.subr.mxu0 0.0
  %1213 = vmatpush1.xpose.msra.mxu0 0.0
  %1214 = vmatprep.subr.mxu0 0.0
  %1215 = vmatpush1.xpose.msra.mxu0 0.0
  %1216 = vmatprep.subr.mxu0 0.0
  %1217 = vmatpush1.xpose.msra.mxu0 0.0
  %1218 = vmatprep.subr.mxu0 0.0
  %1219 = vmatpush1.xpose.msra.mxu0 %v1186
  %1220 = vmatprep.subr.mxu0 0.0
  %1221 = vmatpush2.xpose.msra.mxu0 0.0
  %1222 = vmatprep.subr.mxu0 0.0
  %1223 = vmatpush2.xpose.msra.mxu0 0.0
  %1224 = vmatprep.subr.mxu0 0.0
  %1225 = vmatpush2.xpose.msra.mxu0 0.0
  %1226 = vmatprep.subr.mxu0 0.0
  %1227 = vmatpush2.xpose.msra.mxu0 0.0
  %1228 = vmatprep.subr.mxu0 0.0
  %1229 = vmatpush2.xpose.msra.mxu0 0.0
  %1230 = vmatprep.subr.mxu0 0.0
  %1231 = vmatpush2.xpose.msra.mxu0 0.0
  %1232 = vmatprep.subr.mxu0 0.0
  %1233 = vmatpush2.xpose.msra.mxu0 0.0
  %1234 = vmatprep.subr.mxu0 0.0
  %1235 = vmatpush2.xpose.msra.mxu0 0.0
  %1236 = vmatprep.subr.mxu0 0.0
  %1237 = vmatpush2.xpose.msra.mxu0 0.0
  %1238 = vmatprep.subr.mxu0 0.0
  %1239 = vmatpush2.xpose.msra.mxu0 0.0
  %1240 = vmatprep.subr.mxu0 0.0
  %1241 = vmatpush2.xpose.msra.mxu0 0.0
  %1242 = vmatprep.subr.mxu0 0.0
  %1243 = vmatpush2.xpose.msra.mxu0 0.0
  %1244 = vmatprep.subr.mxu0 0.0
  %1245 = vmatpush2.xpose.msra.mxu0 0.0
  %1246 = vmatprep.subr.mxu0 0.0
  %1247 = vmatpush2.xpose.msra.mxu0 0.0
  %1248 = vmatprep.subr.mxu0 0.0
  %1249 = vmatpush2.xpose.msra.mxu0 0.0
  %1250 = vmatprep.subr.mxu0 0.0
  %1251 = vmatpush2.xpose.msra.mxu0 0.0
  %1252 = vmatprep.mubr.f32.mxu0 0.0
  %1253 = vmatmul.mubr.f32.gmra.mxu0 %v1184
  %v1254 = vpop.f32.mrf.mxu0
  %v1255 = vadd.f32 %v342, %v1254
  %v1256 = vpop.f32.mrf.mxu0
  %1257 = vdwg.mxu0
  %1258 = vrot.lane.b32.xlu0 %v143, 64
  %v1259 = vpop.permute.xlu0 %1258
  %1260 = vrot.lane.b32.xlu0 %v241, 64
  %v1261 = vpop.permute.xlu0 %1260
  %v1262 = vsel %vm360, %v1259, 0
  %v1264 = vsel %vm360, %v1261, 0
  %1266 = vmatprep.subr.mxu0 0.0
  %1267 = vmatpush1.xpose.msra.mxu0 0.0
  %1268 = vmatprep.subr.mxu0 0.0
  %1269 = vmatpush1.xpose.msra.mxu0 0.0
  %1270 = vmatprep.subr.mxu0 0.0
  %1271 = vmatpush1.xpose.msra.mxu0 0.0
  %1272 = vmatprep.subr.mxu0 0.0
  %1273 = vmatpush1.xpose.msra.mxu0 0.0
  %1274 = vmatprep.subr.mxu0 0.0
  %1275 = vmatpush1.xpose.msra.mxu0 0.0
  %1276 = vmatprep.subr.mxu0 0.0
  %1277 = vmatpush1.xpose.msra.mxu0 0.0
  %1278 = vmatprep.subr.mxu0 0.0
  %1279 = vmatpush1.xpose.msra.mxu0 0.0
  %1280 = vmatprep.subr.mxu0 0.0
  %1281 = vmatpush1.xpose.msra.mxu0 0.0
  %1282 = vmatprep.subr.mxu0 0.0
  %1283 = vmatpush1.xpose.msra.mxu0 0.0
  %1284 = vmatprep.subr.mxu0 0.0
  %1285 = vmatpush1.xpose.msra.mxu0 0.0
  %1286 = vmatprep.subr.mxu0 0.0
  %1287 = vmatpush1.xpose.msra.mxu0 0.0
  %1288 = vmatprep.subr.mxu0 0.0
  %1289 = vmatpush1.xpose.msra.mxu0 0.0
  %1290 = vmatprep.subr.mxu0 0.0
  %1291 = vmatpush1.xpose.msra.mxu0 0.0
  %1292 = vmatprep.subr.mxu0 0.0
  %1293 = vmatpush1.xpose.msra.mxu0 0.0
  %1294 = vmatprep.subr.mxu0 0.0
  %1295 = vmatpush1.xpose.msra.mxu0 0.0
  %1296 = vmatprep.subr.mxu0 0.0
  %1297 = vmatpush1.xpose.msra.mxu0 %v1264
  %1298 = vmatprep.subr.mxu0 0.0
  %1299 = vmatpush2.xpose.msra.mxu0 0.0
  %1300 = vmatprep.subr.mxu0 0.0
  %1301 = vmatpush2.xpose.msra.mxu0 0.0
  %1302 = vmatprep.subr.mxu0 0.0
  %1303 = vmatpush2.xpose.msra.mxu0 0.0
  %1304 = vmatprep.subr.mxu0 0.0
  %1305 = vmatpush2.xpose.msra.mxu0 0.0
  %1306 = vmatprep.subr.mxu0 0.0
  %1307 = vmatpush2.xpose.msra.mxu0 0.0
  %1308 = vmatprep.subr.mxu0 0.0
  %1309 = vmatpush2.xpose.msra.mxu0 0.0
  %1310 = vmatprep.subr.mxu0 0.0
  %1311 = vmatpush2.xpose.msra.mxu0 0.0
  %1312 = vmatprep.subr.mxu0 0.0
  %1313 = vmatpush2.xpose.msra.mxu0 0.0
  %1314 = vmatprep.subr.mxu0 0.0
  %1315 = vmatpush2.xpose.msra.mxu0 0.0
  %1316 = vmatprep.subr.mxu0 0.0
  %1317 = vmatpush2.xpose.msra.mxu0 0.0
  %1318 = vmatprep.subr.mxu0 0.0
  %1319 = vmatpush2.xpose.msra.mxu0 0.0
  %1320 = vmatprep.subr.mxu0 0.0
  %1321 = vmatpush2.xpose.msra.mxu0 0.0
  %1322 = vmatprep.subr.mxu0 0.0
  %1323 = vmatpush2.xpose.msra.mxu0 0.0
  %1324 = vmatprep.subr.mxu0 0.0
  %1325 = vmatpush2.xpose.msra.mxu0 0.0
  %1326 = vmatprep.subr.mxu0 0.0
  %1327 = vmatpush2.xpose.msra.mxu0 0.0
  %1328 = vmatprep.subr.mxu0 0.0
  %1329 = vmatpush2.xpose.msra.mxu0 0.0
  %1330 = vmatprep.mubr.f32.mxu0 0.0
  %1331 = vmatmul.mubr.f32.gmra.mxu0 %v1262
  %v1332 = vpop.f32.mrf.mxu0
  %v1333 = vadd.f32 %v343, %v1332
  %v1334 = vpop.f32.mrf.mxu0
  %1335 = vdwg.mxu0
  %v1336 = vsel %vm513, %v1255, -inf
  %1337 = vmax.xlane.f32.xlu0 %v1336
  %v1338 = vpop.xlane.xlu0 %1337
  %v1339 = vsel %vm513, %v1333, -inf
  %1340 = vmax.xlane.f32.xlu0 %v1339
  %v1341 = vpop.xlane.xlu0 %1340
  %v1342 = vsub.f32 %v1255, %v1338
  %v1343 = vsub.f32 %v1333, %v1341
  %v1344 = vmul.f32 %v1342, 1.442695
  %v1345 = vpow.pop %v1344
  %v1346 = vmul.f32 %v1343, 1.442695
  %v1347 = vpow.pop %v1346
  %v1348 = vsel %vm513, %v1345, 0.0
  %1349 = vadd.xlane.f32.xlu0 %v1348
  %v1350 = vpop.xlane.xlu0 %1349
  %v1351 = vsel %vm513, %v1347, 0.0
  %1352 = vadd.xlane.f32.xlu0 %v1351
  %v1353 = vpop.xlane.xlu0 %1352
  %v1354 = vrcp.pop %v1350
  %v1355 = vmul.f32 1.0, %v1354
  %v1356 = vrcp.pop %v1353
  %v1357 = vmul.f32 1.0, %v1356
  %1358 = vrot.lane.b32.xlu0 %v334, 64
  %v1359 = vpop.permute.xlu0 %1358
  %v1362 = vsel %vm513, %v1345, 0
  %1364 = vmatprep.subr.mxu0 0.0
  %1365 = vmatpush1.msra.mxu0 0.0
  %1366 = vmatprep.subr.mxu0 0.0
  %1367 = vmatpush1.msra.mxu0 0.0
  %1368 = vmatprep.subr.mxu0 0.0
  %1369 = vmatpush1.msra.mxu0 0.0
  %1370 = vmatprep.subr.mxu0 0.0
  %1371 = vmatpush1.msra.mxu0 0.0
  %1372 = vmatprep.subr.mxu0 0.0
  %1373 = vmatpush1.msra.mxu0 0.0
  %1374 = vmatprep.subr.mxu0 0.0
  %1375 = vmatpush1.msra.mxu0 0.0
  %1376 = vmatprep.subr.mxu0 0.0
  %1377 = vmatpush1.msra.mxu0 0.0
  %1378 = vmatprep.subr.mxu0 0.0
  %1379 = vmatpush1.msra.mxu0 0.0
  %1380 = vmatprep.subr.mxu0 0.0
  %1381 = vmatpush1.msra.mxu0 0.0
  %1382 = vmatprep.subr.mxu0 0.0
  %1383 = vmatpush1.msra.mxu0 0.0
  %1384 = vmatprep.subr.mxu0 0.0
  %1385 = vmatpush1.msra.mxu0 0.0
  %1386 = vmatprep.subr.mxu0 0.0
  %1387 = vmatpush1.msra.mxu0 0.0
  %1388 = vmatprep.subr.mxu0 0.0
  %1389 = vmatpush1.msra.mxu0 0.0
  %1390 = vmatprep.subr.mxu0 0.0
  %1391 = vmatpush1.msra.mxu0 0.0
  %1392 = vmatprep.subr.mxu0 0.0
  %1393 = vmatpush1.msra.mxu0 0.0
  %1394 = vmatprep.subr.mxu0 0.0
  %1395 = vmatpush1.msra.mxu0 %v1359
  %1396 = vmatprep.subr.mxu0 0.0
  %1397 = vmatpush2.msra.mxu0 0.0
  %1398 = vmatprep.subr.mxu0 0.0
  %1399 = vmatpush2.msra.mxu0 0.0
  %1400 = vmatprep.subr.mxu0 0.0
  %1401 = vmatpush2.msra.mxu0 0.0
  %1402 = vmatprep.subr.mxu0 0.0
  %1403 = vmatpush2.msra.mxu0 0.0
  %1404 = vmatprep.subr.mxu0 0.0
  %1405 = vmatpush2.msra.mxu0 0.0
  %1406 = vmatprep.subr.mxu0 0.0
  %1407 = vmatpush2.msra.mxu0 0.0
  %1408 = vmatprep.subr.mxu0 0.0
  %1409 = vmatpush2.msra.mxu0 0.0
  %1410 = vmatprep.subr.mxu0 0.0
  %1411 = vmatpush2.msra.mxu0 0.0
  %1412 = vmatprep.subr.mxu0 0.0
  %1413 = vmatpush2.msra.mxu0 0.0
  %1414 = vmatprep.subr.mxu0 0.0
  %1415 = vmatpush2.msra.mxu0 0.0
  %1416 = vmatprep.subr.mxu0 0.0
  %1417 = vmatpush2.msra.mxu0 0.0
  %1418 = vmatprep.subr.mxu0 0.0
  %1419 = vmatpush2.msra.mxu0 0.0
  %1420 = vmatprep.subr.mxu0 0.0
  %1421 = vmatpush2.msra.mxu0 0.0
  %1422 = vmatprep.subr.mxu0 0.0
  %1423 = vmatpush2.msra.mxu0 0.0
  %1424 = vmatprep.subr.mxu0 0.0
  %1425 = vmatpush2.msra.mxu0 0.0
  %1426 = vmatprep.subr.mxu0 0.0
  %1427 = vmatpush2.msra.mxu0 0.0
  %1428 = vmatprep.mubr.f32.mxu0 0.0
  %1429 = vmatmul.mubr.f32.gmra.mxu0 %v1362
  %v1430 = vpop.f32.mrf.mxu0
  %v1431 = vadd.f32 0.0, %v1430
  %v1432 = vpop.f32.mrf.mxu0
  %1433 = vdwg.mxu0
  %1434 = vrot.lane.b32.xlu0 %v339, 64
  %v1435 = vpop.permute.xlu0 %1434
  %v1438 = vsel %vm513, %v1347, 0
  %1440 = vmatprep.subr.mxu0 0.0
  %1441 = vmatpush1.msra.mxu0 0.0
  %1442 = vmatprep.subr.mxu0 0.0
  %1443 = vmatpush1.msra.mxu0 0.0
  %1444 = vmatprep.subr.mxu0 0.0
  %1445 = vmatpush1.msra.mxu0 0.0
  %1446 = vmatprep.subr.mxu0 0.0
  %1447 = vmatpush1.msra.mxu0 0.0
  %1448 = vmatprep.subr.mxu0 0.0
  %1449 = vmatpush1.msra.mxu0 0.0
  %1450 = vmatprep.subr.mxu0 0.0
  %1451 = vmatpush1.msra.mxu0 0.0
  %1452 = vmatprep.subr.mxu0 0.0
  %1453 = vmatpush1.msra.mxu0 0.0
  %1454 = vmatprep.subr.mxu0 0.0
  %1455 = vmatpush1.msra.mxu0 0.0
  %1456 = vmatprep.subr.mxu0 0.0
  %1457 = vmatpush1.msra.mxu0 0.0
  %1458 = vmatprep.subr.mxu0 0.0
  %1459 = vmatpush1.msra.mxu0 0.0
  %1460 = vmatprep.subr.mxu0 0.0
  %1461 = vmatpush1.msra.mxu0 0.0
  %1462 = vmatprep.subr.mxu0 0.0
  %1463 = vmatpush1.msra.mxu0 0.0
  %1464 = vmatprep.subr.mxu0 0.0
  %1465 = vmatpush1.msra.mxu0 0.0
  %1466 = vmatprep.subr.mxu0 0.0
  %1467 = vmatpush1.msra.mxu0 0.0
  %1468 = vmatprep.subr.mxu0 0.0
  %1469 = vmatpush1.msra.mxu0 0.0
  %1470 = vmatprep.subr.mxu0 0.0
  %1471 = vmatpush1.msra.mxu0 %v1435
  %1472 = vmatprep.subr.mxu0 0.0
  %1473 = vmatpush2.msra.mxu0 0.0
  %1474 = vmatprep.subr.mxu0 0.0
  %1475 = vmatpush2.msra.mxu0 0.0
  %1476 = vmatprep.subr.mxu0 0.0
  %1477 = vmatpush2.msra.mxu0 0.0
  %1478 = vmatprep.subr.mxu0 0.0
  %1479 = vmatpush2.msra.mxu0 0.0
  %1480 = vmatprep.subr.mxu0 0.0
  %1481 = vmatpush2.msra.mxu0 0.0
  %1482 = vmatprep.subr.mxu0 0.0
  %1483 = vmatpush2.msra.mxu0 0.0
  %1484 = vmatprep.subr.mxu0 0.0
  %1485 = vmatpush2.msra.mxu0 0.0
  %1486 = vmatprep.subr.mxu0 0.0
  %1487 = vmatpush2.msra.mxu0 0.0
  %1488 = vmatprep.subr.mxu0 0.0
  %1489 = vmatpush2.msra.mxu0 0.0
  %1490 = vmatprep.subr.mxu0 0.0
  %1491 = vmatpush2.msra.mxu0 0.0
  %1492 = vmatprep.subr.mxu0 0.0
  %1493 = vmatpush2.msra.mxu0 0.0
  %1494 = vmatprep.subr.mxu0 0.0
  %1495 = vmatpush2.msra.mxu0 0.0
  %1496 = vmatprep.subr.mxu0 0.0
  %1497 = vmatpush2.msra.mxu0 0.0
  %1498 = vmatprep.subr.mxu0 0.0
  %1499 = vmatpush2.msra.mxu0 0.0
  %1500 = vmatprep.subr.mxu0 0.0
  %1501 = vmatpush2.msra.mxu0 0.0
  %1502 = vmatprep.subr.mxu0 0.0
  %1503 = vmatpush2.msra.mxu0 0.0
  %1504 = vmatprep.mubr.f32.mxu0 0.0
  %1505 = vmatmul.mubr.f32.gmra.mxu0 %v1438
  %v1506 = vpop.f32.mrf.mxu0
  %v1507 = vadd.f32 0.0, %v1506
  %v1508 = vpop.f32.mrf.mxu0
  %1509 = vdwg.mxu0
  %v1510 = vmul.f32 %v1431, %v1355
  %v1511 = vmul.f32 %v1507, %v1357
  %v1513 = vsel %vm360, %v1510, 0
  %v1516 = vsel %vm360, %v1511, 0
  %1518 = vmatprep.subr.mxu0 0.0
  %1519 = vmatpush1.msra.mxu0 0.0
  %1520 = vmatprep.subr.mxu0 0.0
  %1521 = vmatpush1.msra.mxu0 0.0
  %1522 = vmatprep.subr.mxu0 0.0
  %1523 = vmatpush1.msra.mxu0 0.0
  %1524 = vmatprep.subr.mxu0 0.0
  %1525 = vmatpush1.msra.mxu0 0.0
  %1526 = vmatprep.subr.mxu0 0.0
  %1527 = vmatpush1.msra.mxu0 0.0
  %1528 = vmatprep.subr.mxu0 0.0
  %1529 = vmatpush1.msra.mxu0 0.0
  %1530 = vmatprep.subr.mxu0 0.0
  %1531 = vmatpush1.msra.mxu0 0.0
  %1532 = vmatprep.subr.mxu0 0.0
  %1533 = vmatpush1.msra.mxu0 0.0
  %1534 = vmatprep.subr.mxu0 0.0
  %1535 = vmatpush1.msra.mxu0 0.0
  %1536 = vmatprep.subr.mxu0 0.0
  %1537 = vmatpush1.msra.mxu0 0.0
  %1538 = vmatprep.subr.mxu0 0.0
  %1539 = vmatpush1.msra.mxu0 0.0
  %1540 = vmatprep.subr.mxu0 0.0
  %1541 = vmatpush1.msra.mxu0 0.0
  %1542 = vmatprep.subr.mxu0 0.0
  %1543 = vmatpush1.msra.mxu0 %v355
  %1544 = vmatprep.subr.mxu0 0.0
  %1545 = vmatpush1.msra.mxu0 %v354
  %1546 = vmatprep.subr.mxu0 0.0
  %1547 = vmatpush1.msra.mxu0 %v353
  %1548 = vmatprep.subr.mxu0 0.0
  %1549 = vmatpush1.msra.mxu0 %v352
  %1550 = vmatprep.subr.mxu0 0.0
  %1551 = vmatpush2.msra.mxu0 0.0
  %1552 = vmatprep.subr.mxu0 0.0
  %1553 = vmatpush2.msra.mxu0 0.0
  %1554 = vmatprep.subr.mxu0 0.0
  %1555 = vmatpush2.msra.mxu0 0.0
  %1556 = vmatprep.subr.mxu0 0.0
  %1557 = vmatpush2.msra.mxu0 0.0
  %1558 = vmatprep.subr.mxu0 0.0
  %1559 = vmatpush2.msra.mxu0 0.0
  %1560 = vmatprep.subr.mxu0 0.0
  %1561 = vmatpush2.msra.mxu0 0.0
  %1562 = vmatprep.subr.mxu0 0.0
  %1563 = vmatpush2.msra.mxu0 0.0
  %1564 = vmatprep.subr.mxu0 0.0
  %1565 = vmatpush2.msra.mxu0 0.0
  %1566 = vmatprep.subr.mxu0 0.0
  %1567 = vmatpush2.msra.mxu0 0.0
  %1568 = vmatprep.subr.mxu0 0.0
  %1569 = vmatpush2.msra.mxu0 0.0
  %1570 = vmatprep.subr.mxu0 0.0
  %1571 = vmatpush2.msra.mxu0 0.0
  %1572 = vmatprep.subr.mxu0 0.0
  %1573 = vmatpush2.msra.mxu0 0.0
  %1574 = vmatprep.subr.mxu0 0.0
  %1575 = vmatpush2.msra.mxu0 0.0
  %1576 = vmatprep.subr.mxu0 0.0
  %1577 = vmatpush2.msra.mxu0 0.0
  %1578 = vmatprep.subr.mxu0 0.0
  %1579 = vmatpush2.msra.mxu0 0.0
  %1580 = vmatprep.subr.mxu0 0.0
  %1581 = vmatpush2.msra.mxu0 0.0
  %1582 = vmatprep.mubr.f32.mxu0 0.0
  %1583 = vmatmul.mubr.f32.gmra.mxu0 %v1513
  %v1584 = vpop.f32.mrf.mxu0
  %v1585 = vadd.f32 0.0, %v1584
  %v1586 = vpop.f32.mrf.mxu0
  %1587 = vmatprep.mubr.f32.mxu0 0.0
  %1588 = vmatmul.mubr.f32.gmra.mxu0 %v1516
  %v1589 = vpop.f32.mrf.mxu0
  %v1590 = vadd.f32 0.0, %v1589
  %v1591 = vpop.f32.mrf.mxu0
  %1592 = vdwg.mxu0
  %v1593 = vadd.f32 %v1172, %v1585
  %v1594 = vadd.f32 %v1177, %v1590
  %1595 = vrot.lane.b32.xlu0 %v138, 32
  %v1596 = vpop.permute.xlu0 %1595
  %1597 = vrot.lane.b32.xlu0 %v236, 32
  %v1598 = vpop.permute.xlu0 %1597
  %v1599 = vsel %vm360, %v1596, 0
  %v1601 = vsel %vm360, %v1598, 0
  %1603 = vmatprep.subr.mxu0 0.0
  %1604 = vmatpush1.xpose.msra.mxu0 0.0
  %1605 = vmatprep.subr.mxu0 0.0
  %1606 = vmatpush1.xpose.msra.mxu0 0.0
  %1607 = vmatprep.subr.mxu0 0.0
  %1608 = vmatpush1.xpose.msra.mxu0 0.0
  %1609 = vmatprep.subr.mxu0 0.0
  %1610 = vmatpush1.xpose.msra.mxu0 0.0
  %1611 = vmatprep.subr.mxu0 0.0
  %1612 = vmatpush1.xpose.msra.mxu0 0.0
  %1613 = vmatprep.subr.mxu0 0.0
  %1614 = vmatpush1.xpose.msra.mxu0 0.0
  %1615 = vmatprep.subr.mxu0 0.0
  %1616 = vmatpush1.xpose.msra.mxu0 0.0
  %1617 = vmatprep.subr.mxu0 0.0
  %1618 = vmatpush1.xpose.msra.mxu0 0.0
  %1619 = vmatprep.subr.mxu0 0.0
  %1620 = vmatpush1.xpose.msra.mxu0 0.0
  %1621 = vmatprep.subr.mxu0 0.0
  %1622 = vmatpush1.xpose.msra.mxu0 0.0
  %1623 = vmatprep.subr.mxu0 0.0
  %1624 = vmatpush1.xpose.msra.mxu0 0.0
  %1625 = vmatprep.subr.mxu0 0.0
  %1626 = vmatpush1.xpose.msra.mxu0 0.0
  %1627 = vmatprep.subr.mxu0 0.0
  %1628 = vmatpush1.xpose.msra.mxu0 0.0
  %1629 = vmatprep.subr.mxu0 0.0
  %1630 = vmatpush1.xpose.msra.mxu0 0.0
  %1631 = vmatprep.subr.mxu0 0.0
  %1632 = vmatpush1.xpose.msra.mxu0 0.0
  %1633 = vmatprep.subr.mxu0 0.0
  %1634 = vmatpush1.xpose.msra.mxu0 %v1601
  %1635 = vmatprep.subr.mxu0 0.0
  %1636 = vmatpush2.xpose.msra.mxu0 0.0
  %1637 = vmatprep.subr.mxu0 0.0
  %1638 = vmatpush2.xpose.msra.mxu0 0.0
  %1639 = vmatprep.subr.mxu0 0.0
  %1640 = vmatpush2.xpose.msra.mxu0 0.0
  %1641 = vmatprep.subr.mxu0 0.0
  %1642 = vmatpush2.xpose.msra.mxu0 0.0
  %1643 = vmatprep.subr.mxu0 0.0
  %1644 = vmatpush2.xpose.msra.mxu0 0.0
  %1645 = vmatprep.subr.mxu0 0.0
  %1646 = vmatpush2.xpose.msra.mxu0 0.0
  %1647 = vmatprep.subr.mxu0 0.0
  %1648 = vmatpush2.xpose.msra.mxu0 0.0
  %1649 = vmatprep.subr.mxu0 0.0
  %1650 = vmatpush2.xpose.msra.mxu0 0.0
  %1651 = vmatprep.subr.mxu0 0.0
  %1652 = vmatpush2.xpose.msra.mxu0 0.0
  %1653 = vmatprep.subr.mxu0 0.0
  %1654 = vmatpush2.xpose.msra.mxu0 0.0
  %1655 = vmatprep.subr.mxu0 0.0
  %1656 = vmatpush2.xpose.msra.mxu0 0.0
  %1657 = vmatprep.subr.mxu0 0.0
  %1658 = vmatpush2.xpose.msra.mxu0 0.0
  %1659 = vmatprep.subr.mxu0 0.0
  %1660 = vmatpush2.xpose.msra.mxu0 0.0
  %1661 = vmatprep.subr.mxu0 0.0
  %1662 = vmatpush2.xpose.msra.mxu0 0.0
  %1663 = vmatprep.subr.mxu0 0.0
  %1664 = vmatpush2.xpose.msra.mxu0 0.0
  %1665 = vmatprep.subr.mxu0 0.0
  %1666 = vmatpush2.xpose.msra.mxu0 0.0
  %1667 = vmatprep.mubr.f32.mxu0 0.0
  %1668 = vmatmul.mubr.f32.gmra.mxu0 %v1599
  %v1669 = vpop.f32.mrf.mxu0
  %v1670 = vadd.f32 %v342, %v1669
  %v1671 = vpop.f32.mrf.mxu0
  %1672 = vdwg.mxu0
  %1673 = vrot.lane.b32.xlu0 %v143, 32
  %v1674 = vpop.permute.xlu0 %1673
  %1675 = vrot.lane.b32.xlu0 %v241, 32
  %v1676 = vpop.permute.xlu0 %1675
  %v1677 = vsel %vm360, %v1674, 0
  %v1679 = vsel %vm360, %v1676, 0
  %1681 = vmatprep.subr.mxu0 0.0
  %1682 = vmatpush1.xpose.msra.mxu0 0.0
  %1683 = vmatprep.subr.mxu0 0.0
  %1684 = vmatpush1.xpose.msra.mxu0 0.0
  %1685 = vmatprep.subr.mxu0 0.0
  %1686 = vmatpush1.xpose.msra.mxu0 0.0
  %1687 = vmatprep.subr.mxu0 0.0
  %1688 = vmatpush1.xpose.msra.mxu0 0.0
  %1689 = vmatprep.subr.mxu0 0.0
  %1690 = vmatpush1.xpose.msra.mxu0 0.0
  %1691 = vmatprep.subr.mxu0 0.0
  %1692 = vmatpush1.xpose.msra.mxu0 0.0
  %1693 = vmatprep.subr.mxu0 0.0
  %1694 = vmatpush1.xpose.msra.mxu0 0.0
  %1695 = vmatprep.subr.mxu0 0.0
  %1696 = vmatpush1.xpose.msra.mxu0 0.0
  %1697 = vmatprep.subr.mxu0 0.0
  %1698 = vmatpush1.xpose.msra.mxu0 0.0
  %1699 = vmatprep.subr.mxu0 0.0
  %1700 = vmatpush1.xpose.msra.mxu0 0.0
  %1701 = vmatprep.subr.mxu0 0.0
  %1702 = vmatpush1.xpose.msra.mxu0 0.0
  %1703 = vmatprep.subr.mxu0 0.0
  %1704 = vmatpush1.xpose.msra.mxu0 0.0
  %1705 = vmatprep.subr.mxu0 0.0
  %1706 = vmatpush1.xpose.msra.mxu0 0.0
  %1707 = vmatprep.subr.mxu0 0.0
  %1708 = vmatpush1.xpose.msra.mxu0 0.0
  %1709 = vmatprep.subr.mxu0 0.0
  %1710 = vmatpush1.xpose.msra.mxu0 0.0
  %1711 = vmatprep.subr.mxu0 0.0
  %1712 = vmatpush1.xpose.msra.mxu0 %v1679
  %1713 = vmatprep.subr.mxu0 0.0
  %1714 = vmatpush2.xpose.msra.mxu0 0.0
  %1715 = vmatprep.subr.mxu0 0.0
  %1716 = vmatpush2.xpose.msra.mxu0 0.0
  %1717 = vmatprep.subr.mxu0 0.0
  %1718 = vmatpush2.xpose.msra.mxu0 0.0
  %1719 = vmatprep.subr.mxu0 0.0
  %1720 = vmatpush2.xpose.msra.mxu0 0.0
  %1721 = vmatprep.subr.mxu0 0.0
  %1722 = vmatpush2.xpose.msra.mxu0 0.0
  %1723 = vmatprep.subr.mxu0 0.0
  %1724 = vmatpush2.xpose.msra.mxu0 0.0
  %1725 = vmatprep.subr.mxu0 0.0
  %1726 = vmatpush2.xpose.msra.mxu0 0.0
  %1727 = vmatprep.subr.mxu0 0.0
  %1728 = vmatpush2.xpose.msra.mxu0 0.0
  %1729 = vmatprep.subr.mxu0 0.0
  %1730 = vmatpush2.xpose.msra.mxu0 0.0
  %1731 = vmatprep.subr.mxu0 0.0
  %1732 = vmatpush2.xpose.msra.mxu0 0.0
  %1733 = vmatprep.subr.mxu0 0.0
  %1734 = vmatpush2.xpose.msra.mxu0 0.0
  %1735 = vmatprep.subr.mxu0 0.0
  %1736 = vmatpush2.xpose.msra.mxu0 0.0
  %1737 = vmatprep.subr.mxu0 0.0
  %1738 = vmatpush2.xpose.msra.mxu0 0.0
  %1739 = vmatprep.subr.mxu0 0.0
  %1740 = vmatpush2.xpose.msra.mxu0 0.0
  %1741 = vmatprep.subr.mxu0 0.0
  %1742 = vmatpush2.xpose.msra.mxu0 0.0
  %1743 = vmatprep.subr.mxu0 0.0
  %1744 = vmatpush2.xpose.msra.mxu0 0.0
  %1745 = vmatprep.mubr.f32.mxu0 0.0
  %1746 = vmatmul.mubr.f32.gmra.mxu0 %v1677
  %v1747 = vpop.f32.mrf.mxu0
  %v1748 = vadd.f32 %v343, %v1747
  %v1749 = vpop.f32.mrf.mxu0
  %1750 = vdwg.mxu0
  %v1751 = vsel %vm513, %v1670, -inf
  %1752 = vmax.xlane.f32.xlu0 %v1751
  %v1753 = vpop.xlane.xlu0 %1752
  %v1754 = vsel %vm513, %v1748, -inf
  %1755 = vmax.xlane.f32.xlu0 %v1754
  %v1756 = vpop.xlane.xlu0 %1755
  %v1757 = vsub.f32 %v1670, %v1753
  %v1758 = vsub.f32 %v1748, %v1756
  %v1759 = vmul.f32 %v1757, 1.442695
  %v1760 = vpow.pop %v1759
  %v1761 = vmul.f32 %v1758, 1.442695
  %v1762 = vpow.pop %v1761
  %v1763 = vsel %vm513, %v1760, 0.0
  %1764 = vadd.xlane.f32.xlu0 %v1763
  %v1765 = vpop.xlane.xlu0 %1764
  %v1766 = vsel %vm513, %v1762, 0.0
  %1767 = vadd.xlane.f32.xlu0 %v1766
  %v1768 = vpop.xlane.xlu0 %1767
  %v1769 = vrcp.pop %v1765
  %v1770 = vmul.f32 1.0, %v1769
  %v1771 = vrcp.pop %v1768
  %v1772 = vmul.f32 1.0, %v1771
  %1773 = vrot.lane.b32.xlu0 %v334, 32
  %v1774 = vpop.permute.xlu0 %1773
  %v1777 = vsel %vm513, %v1760, 0
  %1779 = vmatprep.subr.mxu0 0.0
  %1780 = vmatpush1.msra.mxu0 0.0
  %1781 = vmatprep.subr.mxu0 0.0
  %1782 = vmatpush1.msra.mxu0 0.0
  %1783 = vmatprep.subr.mxu0 0.0
  %1784 = vmatpush1.msra.mxu0 0.0
  %1785 = vmatprep.subr.mxu0 0.0
  %1786 = vmatpush1.msra.mxu0 0.0
  %1787 = vmatprep.subr.mxu0 0.0
  %1788 = vmatpush1.msra.mxu0 0.0
  %1789 = vmatprep.subr.mxu0 0.0
  %1790 = vmatpush1.msra.mxu0 0.0
  %1791 = vmatprep.subr.mxu0 0.0
  %1792 = vmatpush1.msra.mxu0 0.0
  %1793 = vmatprep.subr.mxu0 0.0
  %1794 = vmatpush1.msra.mxu0 0.0
  %1795 = vmatprep.subr.mxu0 0.0
  %1796 = vmatpush1.msra.mxu0 0.0
  %1797 = vmatprep.subr.mxu0 0.0
  %1798 = vmatpush1.msra.mxu0 0.0
  %1799 = vmatprep.subr.mxu0 0.0
  %1800 = vmatpush1.msra.mxu0 0.0
  %1801 = vmatprep.subr.mxu0 0.0
  %1802 = vmatpush1.msra.mxu0 0.0
  %1803 = vmatprep.subr.mxu0 0.0
  %1804 = vmatpush1.msra.mxu0 0.0
  %1805 = vmatprep.subr.mxu0 0.0
  %1806 = vmatpush1.msra.mxu0 0.0
  %1807 = vmatprep.subr.mxu0 0.0
  %1808 = vmatpush1.msra.mxu0 0.0
  %1809 = vmatprep.subr.mxu0 0.0
  %1810 = vmatpush1.msra.mxu0 %v1774
  %1811 = vmatprep.subr.mxu0 0.0
  %1812 = vmatpush2.msra.mxu0 0.0
  %1813 = vmatprep.subr.mxu0 0.0
  %1814 = vmatpush2.msra.mxu0 0.0
  %1815 = vmatprep.subr.mxu0 0.0
  %1816 = vmatpush2.msra.mxu0 0.0
  %1817 = vmatprep.subr.mxu0 0.0
  %1818 = vmatpush2.msra.mxu0 0.0
  %1819 = vmatprep.subr.mxu0 0.0
  %1820 = vmatpush2.msra.mxu0 0.0
  %1821 = vmatprep.subr.mxu0 0.0
  %1822 = vmatpush2.msra.mxu0 0.0
  %1823 = vmatprep.subr.mxu0 0.0
  %1824 = vmatpush2.msra.mxu0 0.0
  %1825 = vmatprep.subr.mxu0 0.0
  %1826 = vmatpush2.msra.mxu0 0.0
  %1827 = vmatprep.subr.mxu0 0.0
  %1828 = vmatpush2.msra.mxu0 0.0
  %1829 = vmatprep.subr.mxu0 0.0
  %1830 = vmatpush2.msra.mxu0 0.0
  %1831 = vmatprep.subr.mxu0 0.0
  %1832 = vmatpush2.msra.mxu0 0.0
  %1833 = vmatprep.subr.mxu0 0.0
  %1834 = vmatpush2.msra.mxu0 0.0
  %1835 = vmatprep.subr.mxu0 0.0
  %1836 = vmatpush2.msra.mxu0 0.0
  %1837 = vmatprep.subr.mxu0 0.0
  %1838 = vmatpush2.msra.mxu0 0.0
  %1839 = vmatprep.subr.mxu0 0.0
  %1840 = vmatpush2.msra.mxu0 0.0
  %1841 = vmatprep.subr.mxu0 0.0
  %1842 = vmatpush2.msra.mxu0 0.0
  %1843 = vmatprep.mubr.f32.mxu0 0.0
  %1844 = vmatmul.mubr.f32.gmra.mxu0 %v1777
  %v1845 = vpop.f32.mrf.mxu0
  %v1846 = vadd.f32 0.0, %v1845
  %v1847 = vpop.f32.mrf.mxu0
  %1848 = vdwg.mxu0
  %1849 = vrot.lane.b32.xlu0 %v339, 32
  %v1850 = vpop.permute.xlu0 %1849
  %v1853 = vsel %vm513, %v1762, 0
  %1855 = vmatprep.subr.mxu0 0.0
  %1856 = vmatpush1.msra.mxu0 0.0
  %1857 = vmatprep.subr.mxu0 0.0
  %1858 = vmatpush1.msra.mxu0 0.0
  %1859 = vmatprep.subr.mxu0 0.0
  %1860 = vmatpush1.msra.mxu0 0.0
  %1861 = vmatprep.subr.mxu0 0.0
  %1862 = vmatpush1.msra.mxu0 0.0
  %1863 = vmatprep.subr.mxu0 0.0
  %1864 = vmatpush1.msra.mxu0 0.0
  %1865 = vmatprep.subr.mxu0 0.0
  %1866 = vmatpush1.msra.mxu0 0.0
  %1867 = vmatprep.subr.mxu0 0.0
  %1868 = vmatpush1.msra.mxu0 0.0
  %1869 = vmatprep.subr.mxu0 0.0
  %1870 = vmatpush1.msra.mxu0 0.0
  %1871 = vmatprep.subr.mxu0 0.0
  %1872 = vmatpush1.msra.mxu0 0.0
  %1873 = vmatprep.subr.mxu0 0.0
  %1874 = vmatpush1.msra.mxu0 0.0
  %1875 = vmatprep.subr.mxu0 0.0
  %1876 = vmatpush1.msra.mxu0 0.0
  %1877 = vmatprep.subr.mxu0 0.0
  %1878 = vmatpush1.msra.mxu0 0.0
  %1879 = vmatprep.subr.mxu0 0.0
  %1880 = vmatpush1.msra.mxu0 0.0
  %1881 = vmatprep.subr.mxu0 0.0
  %1882 = vmatpush1.msra.mxu0 0.0
  %1883 = vmatprep.subr.mxu0 0.0
  %1884 = vmatpush1.msra.mxu0 0.0
  %1885 = vmatprep.subr.mxu0 0.0
  %1886 = vmatpush1.msra.mxu0 %v1850
  %1887 = vmatprep.subr.mxu0 0.0
  %1888 = vmatpush2.msra.mxu0 0.0
  %1889 = vmatprep.subr.mxu0 0.0
  %1890 = vmatpush2.msra.mxu0 0.0
  %1891 = vmatprep.subr.mxu0 0.0
  %1892 = vmatpush2.msra.mxu0 0.0
  %1893 = vmatprep.subr.mxu0 0.0
  %1894 = vmatpush2.msra.mxu0 0.0
  %1895 = vmatprep.subr.mxu0 0.0
  %1896 = vmatpush2.msra.mxu0 0.0
  %1897 = vmatprep.subr.mxu0 0.0
  %1898 = vmatpush2.msra.mxu0 0.0
  %1899 = vmatprep.subr.mxu0 0.0
  %1900 = vmatpush2.msra.mxu0 0.0
  %1901 = vmatprep.subr.mxu0 0.0
  %1902 = vmatpush2.msra.mxu0 0.0
  %1903 = vmatprep.subr.mxu0 0.0
  %1904 = vmatpush2.msra.mxu0 0.0
  %1905 = vmatprep.subr.mxu0 0.0
  %1906 = vmatpush2.msra.mxu0 0.0
  %1907 = vmatprep.subr.mxu0 0.0
  %1908 = vmatpush2.msra.mxu0 0.0
  %1909 = vmatprep.subr.mxu0 0.0
  %1910 = vmatpush2.msra.mxu0 0.0
  %1911 = vmatprep.subr.mxu0 0.0
  %1912 = vmatpush2.msra.mxu0 0.0
  %1913 = vmatprep.subr.mxu0 0.0
  %1914 = vmatpush2.msra.mxu0 0.0
  %1915 = vmatprep.subr.mxu0 0.0
  %1916 = vmatpush2.msra.mxu0 0.0
  %1917 = vmatprep.subr.mxu0 0.0
  %1918 = vmatpush2.msra.mxu0 0.0
  %1919 = vmatprep.mubr.f32.mxu0 0.0
  %1920 = vmatmul.mubr.f32.gmra.mxu0 %v1853
  %v1921 = vpop.f32.mrf.mxu0
  %v1922 = vadd.f32 0.0, %v1921
  %v1923 = vpop.f32.mrf.mxu0
  %1924 = vdwg.mxu0
  %v1925 = vmul.f32 %v1846, %v1770
  %v1926 = vmul.f32 %v1922, %v1772
  %v1928 = vsel %vm360, %v1925, 0
  %v1931 = vsel %vm360, %v1926, 0
  %1933 = vmatprep.subr.mxu0 0.0
  %1934 = vmatpush1.msra.mxu0 0.0
  %1935 = vmatprep.subr.mxu0 0.0
  %1936 = vmatpush1.msra.mxu0 0.0
  %1937 = vmatprep.subr.mxu0 0.0
  %1938 = vmatpush1.msra.mxu0 0.0
  %1939 = vmatprep.subr.mxu0 0.0
  %1940 = vmatpush1.msra.mxu0 0.0
  %1941 = vmatprep.subr.mxu0 0.0
  %1942 = vmatpush1.msra.mxu0 0.0
  %1943 = vmatprep.subr.mxu0 0.0
  %1944 = vmatpush1.msra.mxu0 0.0
  %1945 = vmatprep.subr.mxu0 0.0
  %1946 = vmatpush1.msra.mxu0 0.0
  %1947 = vmatprep.subr.mxu0 0.0
  %1948 = vmatpush1.msra.mxu0 0.0
  %1949 = vmatprep.subr.mxu0 0.0
  %1950 = vmatpush1.msra.mxu0 0.0
  %1951 = vmatprep.subr.mxu0 0.0
  %1952 = vmatpush1.msra.mxu0 0.0
  %1953 = vmatprep.subr.mxu0 0.0
  %1954 = vmatpush1.msra.mxu0 0.0
  %1955 = vmatprep.subr.mxu0 0.0
  %1956 = vmatpush1.msra.mxu0 0.0
  %1957 = vmatprep.subr.mxu0 0.0
  %1958 = vmatpush1.msra.mxu0 %v359
  %1959 = vmatprep.subr.mxu0 0.0
  %1960 = vmatpush1.msra.mxu0 %v358
  %1961 = vmatprep.subr.mxu0 0.0
  %1962 = vmatpush1.msra.mxu0 %v357
  %1963 = vmatprep.subr.mxu0 0.0
  %1964 = vmatpush1.msra.mxu0 %v356
  %1965 = vmatprep.subr.mxu0 0.0
  %1966 = vmatpush2.msra.mxu0 0.0
  %1967 = vmatprep.subr.mxu0 0.0
  %1968 = vmatpush2.msra.mxu0 0.0
  %1969 = vmatprep.subr.mxu0 0.0
  %1970 = vmatpush2.msra.mxu0 0.0
  %1971 = vmatprep.subr.mxu0 0.0
  %1972 = vmatpush2.msra.mxu0 0.0
  %1973 = vmatprep.subr.mxu0 0.0
  %1974 = vmatpush2.msra.mxu0 0.0
  %1975 = vmatprep.subr.mxu0 0.0
  %1976 = vmatpush2.msra.mxu0 0.0
  %1977 = vmatprep.subr.mxu0 0.0
  %1978 = vmatpush2.msra.mxu0 0.0
  %1979 = vmatprep.subr.mxu0 0.0
  %1980 = vmatpush2.msra.mxu0 0.0
  %1981 = vmatprep.subr.mxu0 0.0
  %1982 = vmatpush2.msra.mxu0 0.0
  %1983 = vmatprep.subr.mxu0 0.0
  %1984 = vmatpush2.msra.mxu0 0.0
  %1985 = vmatprep.subr.mxu0 0.0
  %1986 = vmatpush2.msra.mxu0 0.0
  %1987 = vmatprep.subr.mxu0 0.0
  %1988 = vmatpush2.msra.mxu0 0.0
  %1989 = vmatprep.subr.mxu0 0.0
  %1990 = vmatpush2.msra.mxu0 0.0
  %1991 = vmatprep.subr.mxu0 0.0
  %1992 = vmatpush2.msra.mxu0 0.0
  %1993 = vmatprep.subr.mxu0 0.0
  %1994 = vmatpush2.msra.mxu0 0.0
  %1995 = vmatprep.subr.mxu0 0.0
  %1996 = vmatpush2.msra.mxu0 0.0
  %1997 = vmatprep.mubr.f32.mxu0 0.0
  %1998 = vmatmul.mubr.f32.gmra.mxu0 %v1928
  %v1999 = vpop.f32.mrf.mxu0
  %v2000 = vadd.f32 0.0, %v1999
  %v2001 = vpop.f32.mrf.mxu0
  %2002 = vmatprep.mubr.f32.mxu0 0.0
  %2003 = vmatmul.mubr.f32.gmra.mxu0 %v1931
  %v2004 = vpop.f32.mrf.mxu0
  %v2005 = vadd.f32 0.0, %v2004
  %v2006 = vpop.f32.mrf.mxu0
  %2007 = vdwg.mxu0
  %v2008 = vadd.f32 %v1593, %v2000
  %v2009 = vadd.f32 %v1594, %v2005
  %v2010 = vld [vmem:[%s10] sm:$0x1]
  %v2012 = vlaneseq
  %v2013 = vshrl.u32 %v2012, 7
  %v2014 = vsub.s32 0, %v2013
  %v2015 = vrot.slane %v2010, %v2014
  %v2017 = vadd.f32 %v2008, %v2015
  %v2018 = vadd.f32 %v2009, %v2015
  %v2019 = vadd.f32 %v2017, %v44
  %v2020 = vadd.f32 %v2018, %v45
  %2021 = vadd.xlane.f32.xlu0 %v2019
  %v2022 = vpop.xlane.xlu0 %2021
  %2023 = vadd.xlane.f32.xlu0 %v2020
  %v2024 = vpop.xlane.xlu0 %2023
  %v2025 = vrcp.pop 128.0
  %v2026 = vmul.f32 %v2022, %v2025
  %v2027 = vmul.f32 %v2024, %v2025
  %v2028 = vsub.f32 %v2019, %v2026
  %v2029 = vsub.f32 %v2020, %v2027
  %v2030 = vmul.f32 %v2028, %v2028
  %v2031 = vmul.f32 %v2029, %v2029
  %2032 = vadd.xlane.f32.xlu0 %v2030
  %v2033 = vpop.xlane.xlu0 %2032
  %2034 = vadd.xlane.f32.xlu0 %v2031
  %v2035 = vpop.xlane.xlu0 %2034
  %v2036 = vmul.f32 %v2033, %v2025
  %v2037 = vmul.f32 %v2035, %v2025
  %v2038 = vadd.f32 %v2036, 1e-05
  %v2039 = vadd.f32 %v2037, 1e-05
  %v2040 = vrsqrt.pop %v2038
  %v2041 = vrsqrt.pop %v2039
  %v2042 = vmul.f32 %v2028, %v2040
  %v2043 = vmul.f32 %v2029, %v2041
  %v2044 = vld [vmem:[%s11] sm:$0x1]
  %v2046 = vlaneseq
  %v2047 = vshrl.u32 %v2046, 7
  %v2048 = vsub.s32 0, %v2047
  %v2049 = vrot.slane %v2044, %v2048
  %v2051 = vmul.f32 %v2042, %v2049
  %v2052 = vmul.f32 %v2043, %v2049
  %v2053 = vld [vmem:[%s12] sm:$0x1]
  %v2055 = vlaneseq
  %v2056 = vshrl.u32 %v2055, 7
  %v2057 = vsub.s32 0, %v2056
  %v2058 = vrot.slane %v2053, %v2057
  %v2060 = vadd.f32 %v2051, %v2058
  %v2061 = vadd.f32 %v2052, %v2058
  %2062 = vst [vmem:[%s13] sm:$0xff] %v2060
  %2063 = vst [vmem:[%s13 + $0x8] sm:$0xff] %v2061
  // Predicated region
  $region54: #{decoder_forward.6} parent=0 // pred_check
    _
  $region55: #{decoder_forward.6} parent=0 // pred_check_branch
    %2065 = sbr.rel (0) target = $region57
  $region56: #{decoder_forward.6} parent=0 // pred_region
    _
  $region57: #{decoder_forward.6} parent=0 // pred_fallthru
    _
  // Predicated region
  $region58: #{decoder_forward.6} parent=0 // pred_check
    _
  $region59: #{decoder_forward.6} parent=0 // pred_check_branch
    %2067 = sbr.rel (0) target = $region61
  $region60: #{decoder_forward.6} parent=0 // pred_region
    _
  $region61: #{decoder_forward.6} parent=0 // pred_fallthru
    _

</llo_original>
